<compile_context>
chip_gen: v5e
topology: v5e:2x2
jax: 0.10.0
libtpu: 0.0.40
codegen_flags: <defaults>
</compile_context>

<pallas_src>
import math

import jax
import jax.numpy as jnp
from jax.experimental import pallas as pl
from jax.experimental.pallas import tpu as pltpu


def _round_up(x, m):
    return (x + m - 1) // m * m


def _sine_embed_kernel(inv_y_ref, inv_x_ref, phase_ref, y_ref, x_ref, o_ref):
    """Writes one (nf2, TILE) NCHW block of the positional embedding.

    inv_y_ref / inv_x_ref / phase_ref: (nf2, 1) f32 feature constants.
        inv_y = 1/dim_t on the first num_pos_feats rows, 0 elsewhere (mirror
        for inv_x); phase alternates 0 / pi/2 so cos(a) == sin(a + pi/2).
    y_ref / x_ref: (1, 1, TILE) f32 flattened spatial embeds for this tile.
    o_ref: (1, nf2, TILE) output block (f32 or bf16).
    """
    y = y_ref[0]                                   # (1, TILE)
    x = x_ref[0]                                   # (1, TILE)
    # (1, TILE) x (nf2, 1) broadcasts -> (nf2, TILE); single EUP sin per elem,
    # VPU FMAs hide under it and under the output-store DMA.
    ang = y * inv_y_ref[...] + x * inv_x_ref[...] + phase_ref[...]
    o_ref[0] = jnp.sin(ang).astype(o_ref.dtype)


def position_embedding_sine(x, mask=None, *, num_pos_feats=64, temperature=10000,
                            normalize=False, scale=None, out_dtype=jnp.float32,
                            tile_lanes=1024):
    """Matches PositionEmbeddingSine.forward. x is NCHW: (B, C, H, W)."""
    if scale is not None and normalize is False:
        raise ValueError('normalize should be True if scale is passed')
    if scale is None:
        scale = 2 * math.pi

    B, _, H, W = x.shape
    nf2 = 2 * num_pos_feats
    HW = H * W
    eps = 1e-6

    # Lane tile: multiple of 128, at most tile_lanes. The last tile may be a
    # partial (masked) store if HW is ragged; inputs are padded so reads stay
    # in bounds and deterministic.
    tile = min(_round_up(tile_lanes, 128), _round_up(HW, 128))
    num_tiles = -(-HW // tile)
    pad_len = num_tiles * tile

    # ---- feature-axis constants (constant index_map -> DMA'd once) ----------
    k = jnp.arange(num_pos_feats, dtype=jnp.float32)
    dim_t = jnp.float32(temperature) ** (
        2.0 * jnp.floor(k / 2.0) / jnp.float32(num_pos_feats))
    inv_half = 1.0 / dim_t                                         # (npf,)
    zeros = jnp.zeros((num_pos_feats,), jnp.float32)
    inv_y = jnp.concatenate([inv_half, zeros]).reshape(nf2, 1)     # y half
    inv_x = jnp.concatenate([zeros, inv_half]).reshape(nf2, 1)     # x half
    phase_half = jnp.where(jnp.arange(num_pos_feats) % 2 == 0,
                           0.0, math.pi / 2.0).astype(jnp.float32)
    phase = jnp.concatenate([phase_half, phase_half]).reshape(nf2, 1)

    # ---- flat spatial embeds: nf2x smaller than the output -----------------
    # TODO(synk): if this tiny (B,H,W) prologue ever shows in profiles, it can
    # be folded back in-kernel as triangular matmuls on the MXU at t == 0.
    if mask is None:
        # cumsum of all-ones == index + 1; batch-invariant.
        y2d = jnp.broadcast_to(
            jnp.arange(1, H + 1, dtype=jnp.float32)[:, None], (H, W))
        x2d = jnp.broadcast_to(
            jnp.arange(1, W + 1, dtype=jnp.float32)[None, :], (H, W))
        if normalize:
            y2d = y2d / (H + eps) * scale
            x2d = x2d / (W + eps) * scale
        y_row = y2d.reshape(1, 1, HW)
        x_row = x2d.reshape(1, 1, HW)
    else:
        not_mask = jnp.logical_not(mask).astype(jnp.float32)        # (B, H, W)
        y2d = jnp.cumsum(not_mask, axis=1)
        x2d = jnp.cumsum(not_mask, axis=2)
        if normalize:
            y2d = y2d / (y2d[:, -1:, :] + eps) * scale
            x2d = x2d / (x2d[:, :, -1:] + eps) * scale
        y_row = y2d.reshape(B, 1, HW)
        x_row = x2d.reshape(B, 1, HW)

    if pad_len != HW:
        padw = ((0, 0), (0, 0), (0, pad_len - HW))
        y_row = jnp.pad(y_row, padw)
        x_row = jnp.pad(x_row, padw)

    if y_row.shape[0] > 1:
        emb_idx = lambda b, t: (b, 0, t)
    else:                                   # batch-invariant (mask is None)
        emb_idx = lambda b, t: (0, 0, t)
    const_idx = lambda b, t: (0, 0)

    out = pl.pallas_call(
        _sine_embed_kernel,
        out_shape=jax.ShapeDtypeStruct((B, nf2, HW), out_dtype),
        grid_spec=pltpu.PrefetchScalarGridSpec(
            num_scalar_prefetch=0,
            grid=(B, num_tiles),
            in_specs=[
                pl.BlockSpec((nf2, 1), const_idx),       # inv_y (1/dim_t | 0)
                pl.BlockSpec((nf2, 1), const_idx),       # inv_x (0 | 1/dim_t)
                pl.BlockSpec((nf2, 1), const_idx),       # sin/cos phase
                pl.BlockSpec((1, 1, tile), emb_idx),     # flat y embeds
                pl.BlockSpec((1, 1, tile), emb_idx),     # flat x embeds
            ],
            out_specs=pl.BlockSpec((1, nf2, tile), lambda b, t: (b, 0, t)),
        ),
        compiler_params=pltpu.CompilerParams(
            dimension_semantics=("parallel", "parallel")),
    )(inv_y, inv_x, phase, y_row, x_row)

    # (B, nf2, H*W) -> (B, nf2, H, W): contiguous reshape, no data movement.
    return out.reshape(B, nf2, H, W)


def _reference(x, mask=None, *, num_pos_feats=64, temperature=10000,
               normalize=False, scale=None):
    """Pure-JAX transcription of the PyTorch forward, for verification."""
    if scale is None:
        scale = 2 * math.pi
    B, _, H, W = x.shape
    if mask is None:
        mask = jnp.zeros((B, H, W), dtype=jnp.bool_)
    not_mask = (~mask)
    y_embed = jnp.cumsum(not_mask.astype(jnp.float32), axis=1)
    x_embed = jnp.cumsum(not_mask.astype(jnp.float32), axis=2)
    if normalize:
        eps = 1e-6
        y_embed = y_embed / (y_embed[:, -1:, :] + eps) * scale
        x_embed = x_embed / (x_embed[:, :, -1:] + eps) * scale
    dim_t = jnp.arange(num_pos_feats, dtype=jnp.float32)
    dim_t = temperature ** (2 * jnp.floor(dim_t / 2) / num_pos_feats)
    pos_x = x_embed[:, :, :, None] / dim_t
    pos_y = y_embed[:, :, :, None] / dim_t
    pos_x = jnp.stack((jnp.sin(pos_x[..., 0::2]), jnp.cos(pos_x[..., 1::2])),
                      axis=4).reshape(B, H, W, -1)
    pos_y = jnp.stack((jnp.sin(pos_y[..., 0::2]), jnp.cos(pos_y[..., 1::2])),
                      axis=4).reshape(B, H, W, -1)
    pos = jnp.concatenate((pos_y, pos_x), axis=3)
    return jnp.transpose(pos, (0, 3, 1, 2))


if __name__ == "__main__":
    key = jax.random.PRNGKey(0)
    B, C, H, W = 2, 4, 16, 16
    num_pos_feats = 64

    # Only the shape of x matters (module has no weights).
    x = jax.random.normal(key, (B, C, H, W), dtype=jnp.float32)

    # Path 1: mask=None (batch-invariant embeds, kernel writes all B copies).
    pos = position_embedding_sine(x, num_pos_feats=num_pos_feats,
                                  temperature=10000, normalize=False)
    pos = jax.block_until_ready(pos)
    ref = _reference(x, num_pos_feats=num_pos_feats, temperature=10000,
                     normalize=False)
    assert pos.shape == (B, 2 * num_pos_feats, H, W), pos.shape
    assert jnp.allclose(pos, ref, atol=2e-5, rtol=2e-5), \
        float(jnp.max(jnp.abs(pos - ref)))

    # Path 2: explicit mask + normalize.
    mask = jax.random.bernoulli(jax.random.PRNGKey(1), 0.3, (B, H, W))
    pos_m = position_embedding_sine(x, mask, num_pos_feats=num_pos_feats,
                                    temperature=10000, normalize=True)
    pos_m = jax.block_until_ready(pos_m)
    ref_m = _reference(x, mask, num_pos_feats=num_pos_feats, temperature=10000,
                       normalize=True)
    assert pos_m.shape == (B, 2 * num_pos_feats, H, W), pos_m.shape
    assert jnp.allclose(pos_m, ref_m, atol=2e-5, rtol=2e-5), \
        float(jnp.max(jnp.abs(pos_m - ref_m)))

    # Path 3: ragged spatial shape (exercises the partial last-tile store).
    Hr, Wr = 7, 9
    xr = jax.random.normal(jax.random.PRNGKey(2), (B, C, Hr, Wr), jnp.float32)
    mask_r = jax.random.bernoulli(jax.random.PRNGKey(3), 0.3, (B, Hr, Wr))
    pos_r = position_embedding_sine(xr, mask_r, num_pos_feats=num_pos_feats,
                                    temperature=10000, normalize=True)
    pos_r = jax.block_until_ready(pos_r)
    ref_r = _reference(xr, mask_r, num_pos_feats=num_pos_feats,
                       temperature=10000, normalize=True)
    assert pos_r.shape == (B, 2 * num_pos_feats, Hr, Wr), pos_r.shape
    assert jnp.allclose(pos_r, ref_r, atol=2e-5, rtol=2e-5), \
        float(jnp.max(jnp.abs(pos_r - ref_r)))

    # Path 4: bf16 output (halved HBM write bytes), loose-tolerance smoke check.
    pos_bf = position_embedding_sine(x, num_pos_feats=num_pos_feats,
                                     temperature=10000, normalize=False,
                                     out_dtype=jnp.bfloat16)
    pos_bf = jax.block_until_ready(pos_bf)
    assert pos_bf.dtype == jnp.bfloat16
    assert jnp.allclose(pos_bf.astype(jnp.float32), ref, atol=2e-2), \
        float(jnp.max(jnp.abs(pos_bf.astype(jnp.float32) - ref)))

    print("KERNEL_OK")
</pallas_src>

<mosaic_0001>
module attributes {stable_mosaic.version = 11 : i64} {
  func.func @_sine_embed_kernel(%arg0: i32, %arg1: i32, %arg2: memref<128x1xf32, #tpu.memory_space<vmem>>, %arg3: memref<128x1xf32, #tpu.memory_space<vmem>>, %arg4: memref<128x1xf32, #tpu.memory_space<vmem>>, %arg5: memref<1x1x256xf32, #tpu.memory_space<vmem>>, %arg6: memref<1x1x256xf32, #tpu.memory_space<vmem>>, %arg7: memref<1x128x256xf32, #tpu.memory_space<vmem>>) attributes {dimension_semantics = [#tpu.dimension_semantics<parallel>, #tpu.dimension_semantics<parallel>], iteration_bounds = array<i64: 2, 1>, scalar_prefetch = 0 : i64, scratch_operands = 0 : i64, tpu.core_type = #tpu.core_type<tc>, window_params = [{pipeline_mode = #tpu.pipeline_mode<synchronous>, transform_indices = @transform_0, window_bounds = array<i64: 128, 1>}, {pipeline_mode = #tpu.pipeline_mode<synchronous>, transform_indices = @transform_1, window_bounds = array<i64: 128, 1>}, {pipeline_mode = #tpu.pipeline_mode<synchronous>, transform_indices = @transform_2, window_bounds = array<i64: 128, 1>}, {transform_indices = @transform_3, window_bounds = array<i64: 1, 1, 256>}, {transform_indices = @transform_4, window_bounds = array<i64: 1, 1, 256>}, {transform_indices = @transform_5, window_bounds = array<i64: 1, 128, 256>}]} {
    %c0 = arith.constant 0 : index
    %c0_0 = arith.constant 0 : index
    %c0_1 = arith.constant 0 : index
    %0 = vector.load %arg5[%c0, %c0_0, %c0_1] : memref<1x1x256xf32, #tpu.memory_space<vmem>>, vector<1x1x256xf32>
    %1 = vector.shape_cast %0 : vector<1x1x256xf32> to vector<1x256xf32>
    %c0_2 = arith.constant 0 : index
    %c0_3 = arith.constant 0 : index
    %c0_4 = arith.constant 0 : index
    %2 = vector.load %arg6[%c0_2, %c0_3, %c0_4] : memref<1x1x256xf32, #tpu.memory_space<vmem>>, vector<1x1x256xf32>
    %3 = vector.shape_cast %2 : vector<1x1x256xf32> to vector<1x256xf32>
    %c0_5 = arith.constant 0 : index
    %c0_6 = arith.constant 0 : index
    %4 = vector.load %arg2[%c0_5, %c0_6] : memref<128x1xf32, #tpu.memory_space<vmem>>, vector<128x1xf32>
    %5 = vector.broadcast %1 : vector<1x256xf32> to vector<128x256xf32>
    %6 = vector.broadcast %4 : vector<128x1xf32> to vector<128x256xf32>
    %7 = arith.mulf %5, %6 : vector<128x256xf32>
    %c0_7 = arith.constant 0 : index
    %c0_8 = arith.constant 0 : index
    %8 = vector.load %arg3[%c0_7, %c0_8] : memref<128x1xf32, #tpu.memory_space<vmem>>, vector<128x1xf32>
    %9 = vector.broadcast %3 : vector<1x256xf32> to vector<128x256xf32>
    %10 = vector.broadcast %8 : vector<128x1xf32> to vector<128x256xf32>
    %11 = arith.mulf %9, %10 : vector<128x256xf32>
    %12 = arith.addf %7, %11 : vector<128x256xf32>
    %c0_9 = arith.constant 0 : index
    %c0_10 = arith.constant 0 : index
    %13 = vector.load %arg4[%c0_9, %c0_10] : memref<128x1xf32, #tpu.memory_space<vmem>>, vector<128x1xf32>
    %14 = vector.broadcast %13 : vector<128x1xf32> to vector<128x256xf32>
    %15 = arith.addf %12, %14 : vector<128x256xf32>
    %16 = math.sin %15 : vector<128x256xf32>
    %c0_11 = arith.constant 0 : index
    %c0_12 = arith.constant 0 : index
    %c0_13 = arith.constant 0 : index
    %17 = vector.load %arg7[%c0_11, %c0_12, %c0_13] : memref<1x128x256xf32, #tpu.memory_space<vmem>>, vector<1x128x256xf32>
    %18 = vector.shape_cast %17 : vector<1x128x256xf32> to vector<128x256xf32>
    %19 = vector.shape_cast %16 : vector<128x256xf32> to vector<1x128x256xf32>
    tpu.vector_store %arg7[%c0_11, %c0_12, %c0_13], %19 {strides = array<i32>} : memref<1x128x256xf32, #tpu.memory_space<vmem>>, vector<1x128x256xf32>,
    return
  }
  func.func @transform_0(%arg0: i32, %arg1: i32) -> (i32, i32) {
    %c0_i32 = arith.constant 0 : i32
    %c0_i32_0 = arith.constant 0 : i32
    %c0_i32_1 = arith.constant 0 : i32
    return %c0_i32, %c0_i32_0 : i32, i32
  }
  func.func @transform_1(%arg0: i32, %arg1: i32) -> (i32, i32) {
    %c0_i32 = arith.constant 0 : i32
    %c0_i32_0 = arith.constant 0 : i32
    %c0_i32_1 = arith.constant 0 : i32
    return %c0_i32, %c0_i32_0 : i32, i32
  }
  func.func @transform_2(%arg0: i32, %arg1: i32) -> (i32, i32) {
    %c0_i32 = arith.constant 0 : i32
    %c0_i32_0 = arith.constant 0 : i32
    %c0_i32_1 = arith.constant 0 : i32
    return %c0_i32, %c0_i32_0 : i32, i32
  }
  func.func @transform_3(%arg0: i32, %arg1: i32) -> (i32, i32, i32) {
    %c0_i32 = arith.constant 0 : i32
    %c0_i32_0 = arith.constant 0 : i32
    %c0_i32_1 = arith.constant 0 : i32
    return %c0_i32, %c0_i32_0, %arg1 : i32, i32, i32
  }
  func.func @transform_4(%arg0: i32, %arg1: i32) -> (i32, i32, i32) {
    %c0_i32 = arith.constant 0 : i32
    %c0_i32_0 = arith.constant 0 : i32
    %c0_i32_1 = arith.constant 0 : i32
    return %c0_i32, %c0_i32_0, %arg1 : i32, i32, i32
  }
  func.func @transform_5(%arg0: i32, %arg1: i32) -> (i32, i32, i32) {
    %c0_i32 = arith.constant 0 : i32
    %c0_i32_0 = arith.constant 0 : i32
    return %arg0, %c0_i32, %arg1 : i32, i32, i32
  }
}

</mosaic_0001>

<llo_original>
// kernel: tpu_custom_call.1
$region0: #{tpu_custom_call.1}
  #allocation0 [shape = 'u32[]', space=smem, size = 0x4, offset = 0x4, fixed_abs, tag = 'smem constant byte address 0x4 - core index']
  #allocation1 [shape = 'u32[72,128]{1,0:T(1,128)}', space=vmem, size = 0x9000, scoped, tag = 'internal scratch']
  %s0 = inlined_call_operand.vmem [shape: f32[128,1], index: 0, kind: input, shape index: {}]
  %s1 = inlined_call_operand.vmem [shape: f32[128,1], index: 1, kind: input, shape index: {}]
  %s2 = inlined_call_operand.vmem [shape: f32[128,1], index: 2, kind: input, shape index: {}]
  %s3 = inlined_call_operand.vmem [shape: f32[1,1,256], index: 3, kind: input, shape index: {}]
  %s4 = inlined_call_operand.vmem [shape: f32[1,1,256], index: 4, kind: input, shape index: {}]
  %s5 = inlined_call_operand.hbm [shape: f32[2,128,256], index: 5, kind: output, shape index: {}]
  %s6 = sld [smem:[#allocation0]]
  $region53: #{tpu_custom_call.1} parent=0
    _
  %s8 = ssub.s32 1, %s6
  %s9 = scalar_select 0, %s8, %s6
  $region1: #{tpu_custom_call.1} parent=0
    #allocation2 [shape = 'u8[262144]{0}', space=vmem, size = 0x40000, scoped, tag = 'output window, operand 0']
    #allocation3 [shape = 's32[2]{0}', space=sflag, size = 0x8, scoped, tag = 'scoped memory for tpu_custom_call.1']
    %10 = vsyncpa [#allocation3], 0
    %s11 = scalar_lea.sflag [#allocation3], 1
    %12 = vsyncpa %s11, 0
    loop: start=0, step=1, limit=4
    $region2: #{tpu_custom_call.1} parent=1 // loop_pre_header
      _
    $region3: #{tpu_custom_call.1} parent=1 // loop_header
      %s14 = sphi 0, %s18
      %p15 = scmp.ge.s32.totalorder %s14, 4
      %s21 = sphi 0, %s33
      %s22 = sphi 0, %s29
      %s23 = sphi 0, %s21
      %s24 = sphi 0, %s22
      %s25 = sphi 0, %s23
      %s26 = sphi 0, %s24
      %s34 = sphi 0, %s34
      %s36 = sphi 0, %s34
      %s37 = sphi 0, %s36
      %s51 = sphi 0, %s37
      %s55 = sphi 0, %s55
      %s57 = sphi 0, %s55
      %s58 = sphi 0, %s57
      %s72 = sphi 0, %s58
      %s76 = sphi 0, %s76
      %s78 = sphi 0, %s76
      %s79 = sphi 0, %s78
      %s93 = sphi 0, %s79
      %s99 = sphi 0, %s101
      %s102 = sphi 0, %s99
      %s103 = sphi 0, %s102
      %s119 = sphi 0, %s103
      %s125 = sphi 0, %s127
      %s128 = sphi 0, %s125
      %s129 = sphi 0, %s128
      %s145 = sphi 0, %s129
      %s153 = sphi 0, %s155
      %s156 = sphi 0, %s153
      %s157 = sphi 0, %s156
      %s173 = sphi 0, %s157
    $region4: #{tpu_custom_call.1} parent=1 // loop_header_branch
      %17 = sbr.rel (%p15) target = $region8
    $region5: #{tpu_custom_call.1} parent=1 // loop_body
      %s19 = ssub.s32 %s14, 1
      %s20 = ssub.s32 %s14, 2
      %s27 = sadd.s32 1, %s22
      %p28 = scmp.ge.s32.totalorder %s27, 1
      %s29 = scalar_select %p28, 0, %s27
      %s30 = sadd.s32 1, %s21
      %s31 = scalar_select %p28, %s30, %s21
      %p32 = scmp.ge.s32.totalorder %s31, 2
      %s33 = scalar_select %p32, 0, %s31
      %s35 = sadd.s32 %s34, 1
      %p38 = scmp.eq.s32.totalorder %s14, 1
      %p39 = scmp.ne.s32.totalorder %s34, %s36
      %p40 = scmp.eq.s32.totalorder %s14, 0
      %p41 = por %p39, %p40
      %p42 = scmp.ne.s32.totalorder %s34, %s36
      %p43 = scmp.eq.s32.totalorder %s19, 1
      %p44 = por %p42, %p43
      %p45 = scmp.ne.s32.totalorder %s36, %s37
      %p46 = scmp.eq.s32.totalorder %s19, 0
      %p47 = por %p45, %p46
      %p48 = scmp.ne.s32.totalorder %s36, %s37
      %p49 = scmp.eq.s32.totalorder %s20, 1
      %p50 = por %p48, %p49
      %p52 = scmp.ne.s32.totalorder %s37, %s51
      %p53 = scmp.eq.s32.totalorder %s20, 0
      %p54 = por %p52, %p53
      %s56 = sadd.s32 %s55, 1
      %p59 = scmp.eq.s32.totalorder %s14, 1
      %p60 = scmp.ne.s32.totalorder %s55, %s57
      %p61 = scmp.eq.s32.totalorder %s14, 0
      %p62 = por %p60, %p61
      %p63 = scmp.ne.s32.totalorder %s55, %s57
      %p64 = scmp.eq.s32.totalorder %s19, 1
      %p65 = por %p63, %p64
      %p66 = scmp.ne.s32.totalorder %s57, %s58
      %p67 = scmp.eq.s32.totalorder %s19, 0
      %p68 = por %p66, %p67
      %p69 = scmp.ne.s32.totalorder %s57, %s58
      %p70 = scmp.eq.s32.totalorder %s20, 1
      %p71 = por %p69, %p70
      %p73 = scmp.ne.s32.totalorder %s58, %s72
      %p74 = scmp.eq.s32.totalorder %s20, 0
      %p75 = por %p73, %p74
      %s77 = sadd.s32 %s76, 1
      %p80 = scmp.eq.s32.totalorder %s14, 1
      %p81 = scmp.ne.s32.totalorder %s76, %s78
      %p82 = scmp.eq.s32.totalorder %s14, 0
      %p83 = por %p81, %p82
      %p84 = scmp.ne.s32.totalorder %s76, %s78
      %p85 = scmp.eq.s32.totalorder %s19, 1
      %p86 = por %p84, %p85
      %p87 = scmp.ne.s32.totalorder %s78, %s79
      %p88 = scmp.eq.s32.totalorder %s19, 0
      %p89 = por %p87, %p88
      %p90 = scmp.ne.s32.totalorder %s78, %s79
      %p91 = scmp.eq.s32.totalorder %s20, 1
      %p92 = por %p90, %p91
      %p94 = scmp.ne.s32.totalorder %s79, %s93
      %p95 = scmp.eq.s32.totalorder %s20, 0
      %p96 = por %p94, %p95
      %s97 = ssub.s32 %s22, %s29
      %p98 = scmp.eq.s32.totalorder %s97, 0
      %s100 = sadd.s32 %s99, 1
      %s101 = scalar_select %p98, %s99, %s100
      %p104 = pneg %p98
      %p105 = scmp.eq.s32.totalorder %s14, 1
      %p106 = por %p104, %p105
      %p107 = scmp.ne.s32.totalorder %s99, %s102
      %p108 = scmp.eq.s32.totalorder %s14, 0
      %p109 = por %p107, %p108
      %p110 = scmp.ne.s32.totalorder %s99, %s102
      %p111 = scmp.eq.s32.totalorder %s19, 1
      %p112 = por %p110, %p111
      %p113 = scmp.ne.s32.totalorder %s102, %s103
      %p114 = scmp.eq.s32.totalorder %s19, 0
      %p115 = por %p113, %p114
      %p116 = scmp.ne.s32.totalorder %s102, %s103
      %p117 = scmp.eq.s32.totalorder %s20, 1
      %p118 = por %p116, %p117
      %p120 = scmp.ne.s32.totalorder %s103, %s119
      %p121 = scmp.eq.s32.totalorder %s20, 0
      %p122 = por %p120, %p121
      %s123 = ssub.s32 %s22, %s29
      %p124 = scmp.eq.s32.totalorder %s123, 0
      %s126 = sadd.s32 %s125, 1
      %s127 = scalar_select %p124, %s125, %s126
      %p130 = pneg %p124
      %p131 = scmp.eq.s32.totalorder %s14, 1
      %p132 = por %p130, %p131
      %p133 = scmp.ne.s32.totalorder %s125, %s128
      %p134 = scmp.eq.s32.totalorder %s14, 0
      %p135 = por %p133, %p134
      %p136 = scmp.ne.s32.totalorder %s125, %s128
      %p137 = scmp.eq.s32.totalorder %s19, 1
      %p138 = por %p136, %p137
      %p139 = scmp.ne.s32.totalorder %s128, %s129
      %p140 = scmp.eq.s32.totalorder %s19, 0
      %p141 = por %p139, %p140
      %p142 = scmp.ne.s32.totalorder %s128, %s129
      %p143 = scmp.eq.s32.totalorder %s20, 1
      %p144 = por %p142, %p143
      %p146 = scmp.ne.s32.totalorder %s129, %s145
      %p147 = scmp.eq.s32.totalorder %s20, 0
      %p148 = por %p146, %p147
      %s149 = ssub.s32 %s21, %s33
      %s150 = ssub.s32 %s22, %s29
      %s151 = sor.u32 %s149, %s150
      %p152 = scmp.eq.s32.totalorder %s151, 0
      %s154 = sadd.s32 %s153, 1
      %s155 = scalar_select %p152, %s153, %s154
      %p158 = pneg %p152
      %p159 = scmp.eq.s32.totalorder %s14, 1
      %p160 = por %p158, %p159
      %p161 = scmp.ne.s32.totalorder %s153, %s156
      %p162 = scmp.eq.s32.totalorder %s14, 0
      %p163 = por %p161, %p162
      %p164 = scmp.ne.s32.totalorder %s153, %s156
      %p165 = scmp.eq.s32.totalorder %s19, 1
      %p166 = por %p164, %p165
      %p167 = scmp.ne.s32.totalorder %s156, %s157
      %p168 = scmp.eq.s32.totalorder %s19, 0
      %p169 = por %p167, %p168
      %p170 = scmp.ne.s32.totalorder %s156, %s157
      %p171 = scmp.eq.s32.totalorder %s20, 1
      %p172 = por %p170, %p171
      %p174 = scmp.ne.s32.totalorder %s157, %s173
      %p175 = scmp.eq.s32.totalorder %s20, 0
      %p176 = por %p174, %p175
      %p177 = scmp.le.s32.totalorder 1, %s14
      %p178 = scmp.lt.s32.totalorder %s14, 3
      %p179 = pnand %p177, %p178
      %p180 = pneg %p179
      // Predicated region
      $region9: #{tpu_custom_call.1} parent=5 // pred_check
        _
      $region10: #{tpu_custom_call.1} parent=5 // pred_check_branch
        %182 = sbr.rel (%p179) target = $region12
      $region11: #{tpu_custom_call.1} parent=5 // pred_region
        %s183 = ssub.s32 %s14, 1
        // Predicated region
        $region13: #{tpu_custom_call.1} parent=11 // pred_check
          %p184 = pneg %p47
        $region14: #{tpu_custom_call.1} parent=11 // pred_check_branch
          %186 = sbr.rel (%p184) target = $region16
        $region15: #{tpu_custom_call.1} parent=11 // pred_region
          _
        $region16: #{tpu_custom_call.1} parent=11 // pred_fallthru
          _
        // Predicated region
        $region17: #{tpu_custom_call.1} parent=11 // pred_check
          %p187 = pneg %p68
        $region18: #{tpu_custom_call.1} parent=11 // pred_check_branch
          %189 = sbr.rel (%p187) target = $region20
        $region19: #{tpu_custom_call.1} parent=11 // pred_region
          _
        $region20: #{tpu_custom_call.1} parent=11 // pred_fallthru
          _
        // Predicated region
        $region21: #{tpu_custom_call.1} parent=11 // pred_check
          %p190 = pneg %p89
        $region22: #{tpu_custom_call.1} parent=11 // pred_check_branch
          %192 = sbr.rel (%p190) target = $region24
        $region23: #{tpu_custom_call.1} parent=11 // pred_region
          _
        $region24: #{tpu_custom_call.1} parent=11 // pred_fallthru
          _
        // Predicated region
        $region25: #{tpu_custom_call.1} parent=11 // pred_check
          %p193 = pneg %p115
        $region26: #{tpu_custom_call.1} parent=11 // pred_check_branch
          %195 = sbr.rel (%p193) target = $region28
        $region27: #{tpu_custom_call.1} parent=11 // pred_region
          %s196 = smul.u32 2, %s24
          %p197 = scmp.lt.s32.totalorder %s196, 1
          %s198 = scalar_select %p197, %s196, 1
          %s199 = scalar_lea.vmem %s3, %s198
          %s200 = smul.u32 2, %s24
        $region28: #{tpu_custom_call.1} parent=11 // pred_fallthru
          _
        // Predicated region
        $region29: #{tpu_custom_call.1} parent=11 // pred_check
          %p201 = pneg %p141
        $region30: #{tpu_custom_call.1} parent=11 // pred_check_branch
          %203 = sbr.rel (%p201) target = $region32
        $region31: #{tpu_custom_call.1} parent=11 // pred_region
          %s204 = smul.u32 2, %s24
          %p205 = scmp.lt.s32.totalorder %s204, 1
          %s206 = scalar_select %p205, %s204, 1
          %s207 = scalar_lea.vmem %s4, %s206
          %s208 = smul.u32 2, %s24
        $region32: #{tpu_custom_call.1} parent=11 // pred_fallthru
          _
      $region12: #{tpu_custom_call.1} parent=5 // pred_fallthru
        _
      %p209 = scmp.lt.s32.totalorder %s14, 2
      // Predicated region
      $region33: #{tpu_custom_call.1} parent=5 // pred_check
        %p210 = pneg %p209
      $region34: #{tpu_custom_call.1} parent=5 // pred_check_branch
        %212 = sbr.rel (%p210) target = $region36
      $region35: #{tpu_custom_call.1} parent=5 // pred_region
        _
      $region36: #{tpu_custom_call.1} parent=5 // pred_fallthru
        _
      %p213 = scmp.le.s32.totalorder 1, %s14
      %p214 = scmp.lt.s32.totalorder %s14, 3
      %p215 = pnand %p213, %p214
      %p216 = pneg %p215
      // Predicated region
      $region37: #{tpu_custom_call.1} parent=5 // pred_check
        _
      $region38: #{tpu_custom_call.1} parent=5 // pred_check_branch
        %218 = sbr.rel (%p215) target = $region40
      $region39: #{tpu_custom_call.1} parent=5 // pred_region
        %s219 = ssub.s32 %s14, 1
        %p220 = pneg %p47
        %p221 = pneg %p44
        %p222 = pneg %p68
        %p223 = pneg %p65
        %p224 = pneg %p89
        %p225 = pneg %p86
        %s226 = smul.u32 2, %s24
        %p227 = scmp.lt.s32.totalorder %s226, 1
        %s228 = scalar_select %p227, %s226, 1
        %s229 = scalar_lea.vmem %s3, %s228
        %p230 = pneg %p115
        %p231 = pneg %p112
        %s232 = smul.u32 2, %s24
        %p233 = scmp.lt.s32.totalorder %s232, 1
        %s234 = scalar_select %p233, %s232, 1
        %s235 = scalar_lea.vmem %s4, %s234
        %p236 = pneg %p141
        %p237 = pneg %p138
        %p238 = pneg %p169
        %p239 = pneg %p166
        %s240 = sand.u32 %s156, 1
        %s241 = scalar_lea.sflag [#allocation3], %s240
        %s242 = sand.u32 %s156, 1
        %s243 = smul.addr %s242, 256
        %s244 = scalar_lea.vmem [#allocation2], %s243
        %s245 = smul.u32 2, %s24
        %p246 = scmp.lt.s32.totalorder %s245, 1
        %s247 = scalar_select %p246, %s245, 1
        %s248 = scalar_lea.vmem %s3, %s247
        %s249 = smul.u32 2, %s24
        %s250 = smul.u32 2, %s24
        %p251 = scmp.lt.s32.totalorder %s250, 1
        %s252 = scalar_select %p251, %s250, 1
        %s253 = scalar_lea.vmem %s4, %s252
        %s254 = smul.u32 2, %s24
        %s255 = smul.u32 2, %s24
        %v256 = vld [vmem:[%s248] sm:$0x3]
        %v257 = vld [vmem:[%s253] sm:$0x3]
        %v258 = vld [vmem:[%s0] sm:$0xff]
        %v259 = vld [vmem:[%s0 + $0x8] sm:$0xff]
        %v260 = vld [vmem:[%s0 + $0x10] sm:$0xff]
        %v261 = vld [vmem:[%s0 + $0x18] sm:$0xff]
        %v262 = vld [vmem:[%s0 + $0x20] sm:$0xff]
        %v263 = vld [vmem:[%s0 + $0x28] sm:$0xff]
        %v264 = vld [vmem:[%s0 + $0x30] sm:$0xff]
        %v265 = vld [vmem:[%s0 + $0x38] sm:$0xff]
        %v266 = vld [vmem:[%s0 + $0x40] sm:$0xff]
        %v267 = vld [vmem:[%s0 + $0x48] sm:$0xff]
        %v268 = vld [vmem:[%s0 + $0x50] sm:$0xff]
        %v269 = vld [vmem:[%s0 + $0x58] sm:$0xff]
        %v270 = vld [vmem:[%s0 + $0x60] sm:$0xff]
        %v271 = vld [vmem:[%s0 + $0x68] sm:$0xff]
        %v272 = vld [vmem:[%s0 + $0x70] sm:$0xff]
        %v273 = vld [vmem:[%s0 + $0x78] sm:$0xff]
        %v275 = vperm.slane %v256, 0
        %v276 = vperm.slane %v256, 1
        %280 = vset.pattern.permute.xlu0 0
        %281 = vperm.xlu0 %280, %v258
        %v282 = vpop.permute.xlu0 %281
        %285 = vset.pattern.permute.xlu0 0
        %286 = vperm.xlu0 %285, %v259
        %v287 = vpop.permute.xlu0 %286
        %290 = vset.pattern.permute.xlu0 0
        %291 = vperm.xlu0 %290, %v260
        %v292 = vpop.permute.xlu0 %291
        %295 = vset.pattern.permute.xlu0 0
        %296 = vperm.xlu0 %295, %v261
        %v297 = vpop.permute.xlu0 %296
        %300 = vset.pattern.permute.xlu0 0
        %301 = vperm.xlu0 %300, %v262
        %v302 = vpop.permute.xlu0 %301
        %305 = vset.pattern.permute.xlu0 0
        %306 = vperm.xlu0 %305, %v263
        %v307 = vpop.permute.xlu0 %306
        %310 = vset.pattern.permute.xlu0 0
        %311 = vperm.xlu0 %310, %v264
        %v312 = vpop.permute.xlu0 %311
        %315 = vset.pattern.permute.xlu0 0
        %316 = vperm.xlu0 %315, %v265
        %v317 = vpop.permute.xlu0 %316
        %320 = vset.pattern.permute.xlu0 0
        %321 = vperm.xlu0 %320, %v266
        %v322 = vpop.permute.xlu0 %321
        %325 = vset.pattern.permute.xlu0 0
        %326 = vperm.xlu0 %325, %v267
        %v327 = vpop.permute.xlu0 %326
        %330 = vset.pattern.permute.xlu0 0
        %331 = vperm.xlu0 %330, %v268
        %v332 = vpop.permute.xlu0 %331
        %335 = vset.pattern.permute.xlu0 0
        %336 = vperm.xlu0 %335, %v269
        %v337 = vpop.permute.xlu0 %336
        %340 = vset.pattern.permute.xlu0 0
        %341 = vperm.xlu0 %340, %v270
        %v342 = vpop.permute.xlu0 %341
        %345 = vset.pattern.permute.xlu0 0
        %346 = vperm.xlu0 %345, %v271
        %v347 = vpop.permute.xlu0 %346
        %350 = vset.pattern.permute.xlu0 0
        %351 = vperm.xlu0 %350, %v272
        %v352 = vpop.permute.xlu0 %351
        %355 = vset.pattern.permute.xlu0 0
        %356 = vperm.xlu0 %355, %v273
        %v357 = vpop.permute.xlu0 %356
        %v359 = vmul.f32 %v275, %v282
        %v360 = vmul.f32 %v276, %v282
        %v361 = vmul.f32 %v275, %v287
        %v362 = vmul.f32 %v276, %v287
        %v363 = vmul.f32 %v275, %v292
        %v364 = vmul.f32 %v276, %v292
        %v365 = vmul.f32 %v275, %v297
        %v366 = vmul.f32 %v276, %v297
        %v367 = vmul.f32 %v275, %v302
        %v368 = vmul.f32 %v276, %v302
        %v369 = vmul.f32 %v275, %v307
        %v370 = vmul.f32 %v276, %v307
        %v371 = vmul.f32 %v275, %v312
        %v372 = vmul.f32 %v276, %v312
        %v373 = vmul.f32 %v275, %v317
        %v374 = vmul.f32 %v276, %v317
        %v375 = vmul.f32 %v275, %v322
        %v376 = vmul.f32 %v276, %v322
        %v377 = vmul.f32 %v275, %v327
        %v378 = vmul.f32 %v276, %v327
        %v379 = vmul.f32 %v275, %v332
        %v380 = vmul.f32 %v276, %v332
        %v381 = vmul.f32 %v275, %v337
        %v382 = vmul.f32 %v276, %v337
        %v383 = vmul.f32 %v275, %v342
        %v384 = vmul.f32 %v276, %v342
        %v385 = vmul.f32 %v275, %v347
        %v386 = vmul.f32 %v276, %v347
        %v387 = vmul.f32 %v275, %v352
        %v388 = vmul.f32 %v276, %v352
        %v389 = vmul.f32 %v275, %v357
        %v390 = vmul.f32 %v276, %v357
        %v391 = vld [vmem:[%s1] sm:$0xff]
        %v392 = vld [vmem:[%s1 + $0x8] sm:$0xff]
        %v393 = vld [vmem:[%s1 + $0x10] sm:$0xff]
        %v394 = vld [vmem:[%s1 + $0x18] sm:$0xff]
        %v395 = vld [vmem:[%s1 + $0x20] sm:$0xff]
        %v396 = vld [vmem:[%s1 + $0x28] sm:$0xff]
        %v397 = vld [vmem:[%s1 + $0x30] sm:$0xff]
        %v398 = vld [vmem:[%s1 + $0x38] sm:$0xff]
        %v399 = vld [vmem:[%s1 + $0x40] sm:$0xff]
        %v400 = vld [vmem:[%s1 + $0x48] sm:$0xff]
        %v401 = vld [vmem:[%s1 + $0x50] sm:$0xff]
        %v402 = vld [vmem:[%s1 + $0x58] sm:$0xff]
        %v403 = vld [vmem:[%s1 + $0x60] sm:$0xff]
        %v404 = vld [vmem:[%s1 + $0x68] sm:$0xff]
        %v405 = vld [vmem:[%s1 + $0x70] sm:$0xff]
        %v406 = vld [vmem:[%s1 + $0x78] sm:$0xff]
        %v408 = vperm.slane %v257, 0
        %v409 = vperm.slane %v257, 1
        %413 = vset.pattern.permute.xlu0 0
        %414 = vperm.xlu0 %413, %v391
        %v415 = vpop.permute.xlu0 %414
        %418 = vset.pattern.permute.xlu0 0
        %419 = vperm.xlu0 %418, %v392
        %v420 = vpop.permute.xlu0 %419
        %423 = vset.pattern.permute.xlu0 0
        %424 = vperm.xlu0 %423, %v393
        %v425 = vpop.permute.xlu0 %424
        %428 = vset.pattern.permute.xlu0 0
        %429 = vperm.xlu0 %428, %v394
        %v430 = vpop.permute.xlu0 %429
        %433 = vset.pattern.permute.xlu0 0
        %434 = vperm.xlu0 %433, %v395
        %v435 = vpop.permute.xlu0 %434
        %438 = vset.pattern.permute.xlu0 0
        %439 = vperm.xlu0 %438, %v396
        %v440 = vpop.permute.xlu0 %439
        %443 = vset.pattern.permute.xlu0 0
        %444 = vperm.xlu0 %443, %v397
        %v445 = vpop.permute.xlu0 %444
        %448 = vset.pattern.permute.xlu0 0
        %449 = vperm.xlu0 %448, %v398
        %v450 = vpop.permute.xlu0 %449
        %453 = vset.pattern.permute.xlu0 0
        %454 = vperm.xlu0 %453, %v399
        %v455 = vpop.permute.xlu0 %454
        %458 = vset.pattern.permute.xlu0 0
        %459 = vperm.xlu0 %458, %v400
        %v460 = vpop.permute.xlu0 %459
        %463 = vset.pattern.permute.xlu0 0
        %464 = vperm.xlu0 %463, %v401
        %v465 = vpop.permute.xlu0 %464
        %468 = vset.pattern.permute.xlu0 0
        %469 = vperm.xlu0 %468, %v402
        %v470 = vpop.permute.xlu0 %469
        %473 = vset.pattern.permute.xlu0 0
        %474 = vperm.xlu0 %473, %v403
        %v475 = vpop.permute.xlu0 %474
        %478 = vset.pattern.permute.xlu0 0
        %479 = vperm.xlu0 %478, %v404
        %v480 = vpop.permute.xlu0 %479
        %483 = vset.pattern.permute.xlu0 0
        %484 = vperm.xlu0 %483, %v405
        %v485 = vpop.permute.xlu0 %484
        %488 = vset.pattern.permute.xlu0 0
        %489 = vperm.xlu0 %488, %v406
        %v490 = vpop.permute.xlu0 %489
        %v492 = vmul.f32 %v408, %v415
        %v493 = vmul.f32 %v409, %v415
        %v494 = vmul.f32 %v408, %v420
        %v495 = vmul.f32 %v409, %v420
        %v496 = vmul.f32 %v408, %v425
        %v497 = vmul.f32 %v409, %v425
        %v498 = vmul.f32 %v408, %v430
        %v499 = vmul.f32 %v409, %v430
        %v500 = vmul.f32 %v408, %v435
        %v501 = vmul.f32 %v409, %v435
        %v502 = vmul.f32 %v408, %v440
        %v503 = vmul.f32 %v409, %v440
        %v504 = vmul.f32 %v408, %v445
        %v505 = vmul.f32 %v409, %v445
        %v506 = vmul.f32 %v408, %v450
        %v507 = vmul.f32 %v409, %v450
        %v508 = vmul.f32 %v408, %v455
        %v509 = vmul.f32 %v409, %v455
        %v510 = vmul.f32 %v408, %v460
        %v511 = vmul.f32 %v409, %v460
        %v512 = vmul.f32 %v408, %v465
        %v513 = vmul.f32 %v409, %v465
        %v514 = vmul.f32 %v408, %v470
        %v515 = vmul.f32 %v409, %v470
        %v516 = vmul.f32 %v408, %v475
        %v517 = vmul.f32 %v409, %v475
        %v518 = vmul.f32 %v408, %v480
        %v519 = vmul.f32 %v409, %v480
        %v520 = vmul.f32 %v408, %v485
        %v521 = vmul.f32 %v409, %v485
        %v522 = vmul.f32 %v408, %v490
        %v523 = vmul.f32 %v409, %v490
        %v524 = vadd.f32 %v359, %v492
        %v525 = vadd.f32 %v360, %v493
        %v526 = vadd.f32 %v361, %v494
        %v527 = vadd.f32 %v362, %v495
        %v528 = vadd.f32 %v363, %v496
        %v529 = vadd.f32 %v364, %v497
        %v530 = vadd.f32 %v365, %v498
        %v531 = vadd.f32 %v366, %v499
        %v532 = vadd.f32 %v367, %v500
        %v533 = vadd.f32 %v368, %v501
        %v534 = vadd.f32 %v369, %v502
        %v535 = vadd.f32 %v370, %v503
        %v536 = vadd.f32 %v371, %v504
        %v537 = vadd.f32 %v372, %v505
        %v538 = vadd.f32 %v373, %v506
        %v539 = vadd.f32 %v374, %v507
        %v540 = vadd.f32 %v375, %v508
        %v541 = vadd.f32 %v376, %v509
        %v542 = vadd.f32 %v377, %v510
        %v543 = vadd.f32 %v378, %v511
        %v544 = vadd.f32 %v379, %v512
        %v545 = vadd.f32 %v380, %v513
        %v546 = vadd.f32 %v381, %v514
        %v547 = vadd.f32 %v382, %v515
        %v548 = vadd.f32 %v383, %v516
        %v549 = vadd.f32 %v384, %v517
        %v550 = vadd.f32 %v385, %v518
        %v551 = vadd.f32 %v386, %v519
        %v552 = vadd.f32 %v387, %v520
        %v553 = vadd.f32 %v388, %v521
        %v554 = vadd.f32 %v389, %v522
        %v555 = vadd.f32 %v390, %v523
        %v556 = vld [vmem:[%s2] sm:$0xff]
        %v557 = vld [vmem:[%s2 + $0x8] sm:$0xff]
        %v558 = vld [vmem:[%s2 + $0x10] sm:$0xff]
        %v559 = vld [vmem:[%s2 + $0x18] sm:$0xff]
        %v560 = vld [vmem:[%s2 + $0x20] sm:$0xff]
        %v561 = vld [vmem:[%s2 + $0x28] sm:$0xff]
        %v562 = vld [vmem:[%s2 + $0x30] sm:$0xff]
        %v563 = vld [vmem:[%s2 + $0x38] sm:$0xff]
        %v564 = vld [vmem:[%s2 + $0x40] sm:$0xff]
        %v565 = vld [vmem:[%s2 + $0x48] sm:$0xff]
        %v566 = vld [vmem:[%s2 + $0x50] sm:$0xff]
        %v567 = vld [vmem:[%s2 + $0x58] sm:$0xff]
        %v568 = vld [vmem:[%s2 + $0x60] sm:$0xff]
        %v569 = vld [vmem:[%s2 + $0x68] sm:$0xff]
        %v570 = vld [vmem:[%s2 + $0x70] sm:$0xff]
        %v571 = vld [vmem:[%s2 + $0x78] sm:$0xff]
        %573 = vset.pattern.permute.xlu0 0
        %574 = vperm.xlu0 %573, %v556
        %v575 = vpop.permute.xlu0 %574
        %578 = vset.pattern.permute.xlu0 0
        %579 = vperm.xlu0 %578, %v557
        %v580 = vpop.permute.xlu0 %579
        %583 = vset.pattern.permute.xlu0 0
        %584 = vperm.xlu0 %583, %v558
        %v585 = vpop.permute.xlu0 %584
        %588 = vset.pattern.permute.xlu0 0
        %589 = vperm.xlu0 %588, %v559
        %v590 = vpop.permute.xlu0 %589
        %593 = vset.pattern.permute.xlu0 0
        %594 = vperm.xlu0 %593, %v560
        %v595 = vpop.permute.xlu0 %594
        %598 = vset.pattern.permute.xlu0 0
        %599 = vperm.xlu0 %598, %v561
        %v600 = vpop.permute.xlu0 %599
        %603 = vset.pattern.permute.xlu0 0
        %604 = vperm.xlu0 %603, %v562
        %v605 = vpop.permute.xlu0 %604
        %608 = vset.pattern.permute.xlu0 0
        %609 = vperm.xlu0 %608, %v563
        %v610 = vpop.permute.xlu0 %609
        %613 = vset.pattern.permute.xlu0 0
        %614 = vperm.xlu0 %613, %v564
        %v615 = vpop.permute.xlu0 %614
        %618 = vset.pattern.permute.xlu0 0
        %619 = vperm.xlu0 %618, %v565
        %v620 = vpop.permute.xlu0 %619
        %623 = vset.pattern.permute.xlu0 0
        %624 = vperm.xlu0 %623, %v566
        %v625 = vpop.permute.xlu0 %624
        %628 = vset.pattern.permute.xlu0 0
        %629 = vperm.xlu0 %628, %v567
        %v630 = vpop.permute.xlu0 %629
        %633 = vset.pattern.permute.xlu0 0
        %634 = vperm.xlu0 %633, %v568
        %v635 = vpop.permute.xlu0 %634
        %638 = vset.pattern.permute.xlu0 0
        %639 = vperm.xlu0 %638, %v569
        %v640 = vpop.permute.xlu0 %639
        %643 = vset.pattern.permute.xlu0 0
        %644 = vperm.xlu0 %643, %v570
        %v645 = vpop.permute.xlu0 %644
        %648 = vset.pattern.permute.xlu0 0
        %649 = vperm.xlu0 %648, %v571
        %v650 = vpop.permute.xlu0 %649
        %v652 = vadd.f32 %v524, %v575
        %v653 = vadd.f32 %v525, %v575
        %v654 = vadd.f32 %v526, %v580
        %v655 = vadd.f32 %v527, %v580
        %v656 = vadd.f32 %v528, %v585
        %v657 = vadd.f32 %v529, %v585
        %v658 = vadd.f32 %v530, %v590
        %v659 = vadd.f32 %v531, %v590
        %v660 = vadd.f32 %v532, %v595
        %v661 = vadd.f32 %v533, %v595
        %v662 = vadd.f32 %v534, %v600
        %v663 = vadd.f32 %v535, %v600
        %v664 = vadd.f32 %v536, %v605
        %v665 = vadd.f32 %v537, %v605
        %v666 = vadd.f32 %v538, %v610
        %v667 = vadd.f32 %v539, %v610
        %v668 = vadd.f32 %v540, %v615
        %v669 = vadd.f32 %v541, %v615
        %v670 = vadd.f32 %v542, %v620
        %v671 = vadd.f32 %v543, %v620
        %v672 = vadd.f32 %v544, %v625
        %v673 = vadd.f32 %v545, %v625
        %v674 = vadd.f32 %v546, %v630
        %v675 = vadd.f32 %v547, %v630
        %v676 = vadd.f32 %v548, %v635
        %v677 = vadd.f32 %v549, %v635
        %v678 = vadd.f32 %v550, %v640
        %v679 = vadd.f32 %v551, %v640
        %v680 = vadd.f32 %v552, %v645
        %v681 = vadd.f32 %v553, %v645
        %v682 = vadd.f32 %v554, %v650
        %v683 = vadd.f32 %v555, %v650
        %v684 = vand.u32 2147483647, %v652
        %vm685 = vcmp.le.f32.partialorder %v684, 0.7853982
        %vm686 = vcmp.lt.s32.totalorder %v652, 0
        %v687 = vand.u32 %v652, 2139095040
        %v688 = vshrl.u32 %v687, 23
        %v689 = vsub.s32 %v688, 127
        %v690 = vand.u32 2147483647, %v652
        %v691 = vand.u32 %v690, 8388607
        %v692 = vor.u32 %v691, 8388608
        %v693 = vsub.s32 0, %v692
        %v694 = vadd.s32 %v689, 1
        %vm695 = vcmp.gt.s32.totalorder %v694, 0
        %v696 = vsel %vm695, %v694, 0
        %v697 = vshrl.u32 %v696, 5
        %v698 = vand.u32 %v696, 31
        %v699 = vsub.s32 32, %v698
        %v700 = vshrl.u32 683565275, %v699
        %v701 = vshll.u32 683565275, %v698
        %v702 = vshrl.u32 2475754826, %v699
        %v703 = vor.u32 %v701, %v702
        %v704 = vshll.u32 2475754826, %v698
        %v705 = vshrl.u32 2131351028, %v699
        %v706 = vor.u32 %v704, %v705
        %v707 = vshll.u32 2131351028, %v698
        %v708 = vshrl.u32 2102212464, %v699
        %v709 = vor.u32 %v707, %v708
        %v710 = vshll.u32 2102212464, %v698
        %v711 = vshrl.u32 920167782, %v699
        %v712 = vor.u32 %v710, %v711
        %v713 = vshll.u32 920167782, %v698
        %v714 = vshrl.u32 1326507024, %v699
        %v715 = vor.u32 %v713, %v714
        %vm716 = vcmp.lt.s32.totalorder %v697, 1
        %vm717 = vcmp.lt.s32.totalorder %v697, 2
        %vm718 = vcmp.lt.s32.totalorder %v697, 3
        %vm719 = vcmp.lt.s32.totalorder %v697, 4
        %v720 = vsel %vm716, %v700, %v703
        %v721 = vsel %vm719, %v709, 2102212464
        %v722 = vsel %vm718, %v706, %v721
        %v723 = vsel %vm717, %v720, %v722
        %v724 = vsel %vm716, %v703, %v706
        %v725 = vsel %vm719, %v712, 920167782
        %v726 = vsel %vm718, %v709, %v725
        %v727 = vsel %vm717, %v724, %v726
        %v728 = vsel %vm716, %v706, %v709
        %v729 = vsel %vm719, %v715, 1326507024
        %v730 = vsel %vm718, %v712, %v729
        %v731 = vsel %vm717, %v728, %v730
        %v732 = vshll.u32 %v692, 8
        %v733 = vand.u32 %v732, 65535
        %v734 = vshrl.u32 %v732, 16
        %v735 = vand.u32 %v731, 65535
        %v736 = vshrl.u32 %v731, 16
        %v737 = vmul.u32 %v733, %v735
        %v738 = vmul.u32 %v733, %v736
        %v739 = vmul.u32 %v734, %v735
        %v740 = vmul.u32 %v734, %v736
        %v741 = vshll.u32 %v738, 16
        %v742 = vshrl.u32 %v738, 16
        %v743 = vshll.u32 %v739, 16
        %v744 = vshrl.u32 %v739, 16
        %vm745 = vc.u32 %v737, %v741
        %v746 = vsel %vm745, 1, 0
        %v747 = vadd.s32 %v737, %v741
        %v748 = vadd.s32 %v740, %v746
        %vm749 = vc.u32 %v747, %v743
        %v750 = vsel %vm749, 1, 0
        %v751 = vadd.s32 %v747, %v743
        %v752 = vadd.s32 %v748, %v750
        %v753 = vadd.s32 %v752, %v742
        %v754 = vadd.s32 %v753, %v744
        %v755 = vand.u32 %v732, 65535
        %v756 = vshrl.u32 %v732, 16
        %v757 = vand.u32 %v727, 65535
        %v758 = vshrl.u32 %v727, 16
        %v759 = vmul.u32 %v755, %v757
        %v760 = vmul.u32 %v755, %v758
        %v761 = vmul.u32 %v756, %v757
        %v762 = vmul.u32 %v756, %v758
        %v763 = vshll.u32 %v760, 16
        %v764 = vshrl.u32 %v760, 16
        %v765 = vshll.u32 %v761, 16
        %v766 = vshrl.u32 %v761, 16
        %vm767 = vc.u32 %v759, %v763
        %v768 = vsel %vm767, 1, 0
        %v769 = vadd.s32 %v759, %v763
        %v770 = vadd.s32 %v762, %v768
        %vm771 = vc.u32 %v769, %v765
        %v772 = vsel %vm771, 1, 0
        %v773 = vadd.s32 %v769, %v765
        %v774 = vadd.s32 %v770, %v772
        %v775 = vadd.s32 %v774, %v764
        %v776 = vadd.s32 %v775, %v766
        %v777 = vmul.u32 %v732, %v723
        %v778 = vadd.s32 %v754, %v773
        %vm779 = vc.u32 %v754, %v773
        %v780 = vadd.s32 %v776, 1
        %v781 = vsel %vm779, %v780, %v776
        %v782 = vadd.s32 %v777, %v781
        %v783 = vadd.s32 %v782, 536870912
        %v784 = vshrl.u32 %v783, 30
        %v785 = vshll.u32 %v784, 30
        %v786 = vsub.s32 %v782, %v785
        %vm787 = vcmp.lt.s32.totalorder %v786, 0
        %v788 = vsub.s32 0, %v786
        %v789 = vsel %vm787, %v788, %v786
        %v790 = vclz %v789
        %v791 = vsub.s32 %v790, 2
        %vm792 = vcmp.gt.s32.totalorder 0, %v791
        %v793 = vsel %vm792, 0, %v791
        %v794 = vsub.s32 32, %v793
        %v795 = vshll.u32 %v786, %v793
        %v796 = vshrl.u32 %v778, %v794
        %v797 = vor.u32 %v795, %v796
        %v798 = vsub.s32 4294967266, %v793
        %v799 = vadd.s32 %v798, 127
        %v800 = vshll.u32 %v799, 23
        %v801 = vor.u32 4788187, %v800
        %v802 = vand.u32 2147483647, %v801
        %v804 = vcvt.s32.f32 %v797
        %v805 = vmul.f32 %v804, %v802
        %v806 = vxor.u32 %v805, 2147483648
        %v807 = vsel %vm686, %v806, %v805
        %v808 = vsub.s32 4, %v784
        %v809 = vsel %vm686, %v808, %v784
        %v810 = vsel %vm685, %v652, %v807
        %v811 = vsel %vm685, 0, %v809
        %v812 = vmul.f32 %v810, %v810
        %v813 = vmul.f32 %v812, -0.001358992
        %v814 = vadd.f32 %v813, 0.041655596
        %v815 = vmul.f32 %v812, %v814
        %v816 = vadd.f32 %v815, -0.4999988
        %v817 = vmul.f32 %v812, %v816
        %v818 = vadd.f32 1.0, %v817
        %v819 = vmul.f32 %v810, %v810
        %v820 = vmul.f32 %v819, -0.00019511016
        %v821 = vadd.f32 %v820, 0.008332121
        %v822 = vmul.f32 %v819, %v821
        %v823 = vadd.f32 %v822, -0.16666654
        %v824 = vmul.f32 %v819, %v823
        %v825 = vadd.f32 %v824, 1.0
        %v826 = vmul.f32 %v825, %v810
        %vm827 = vweird.f32 %v652
        %v828 = vadd.s32 %v811, 3
        %v829 = vand.u32 %v828, 3
        %vm830 = vcmp.lt.s32.totalorder %v829, 2
        %vm831 = vcmp.eq.s32.totalorder %v829, 0
        %v832 = vxor.u32 %v826, 2147483648
        %v833 = vsel %vm831, %v818, %v832
        %vm834 = vcmp.eq.s32.totalorder %v829, 2
        %v835 = vxor.u32 %v818, 2147483648
        %v836 = vsel %vm834, %v835, %v826
        %v837 = vsel %vm830, %v833, %v836
        %v838 = vsel %vm827, nan, %v837
        %v839 = vand.u32 2147483647, %v653
        %vm840 = vcmp.le.f32.partialorder %v839, 0.7853982
        %vm841 = vcmp.lt.s32.totalorder %v653, 0
        %v842 = vand.u32 %v653, 2139095040
        %v843 = vshrl.u32 %v842, 23
        %v844 = vsub.s32 %v843, 127
        %v845 = vand.u32 2147483647, %v653
        %v846 = vand.u32 %v845, 8388607
        %v847 = vor.u32 %v846, 8388608
        %v848 = vsub.s32 0, %v847
        %v849 = vadd.s32 %v844, 1
        %vm850 = vcmp.gt.s32.totalorder %v849, 0
        %v851 = vsel %vm850, %v849, 0
        %v852 = vshrl.u32 %v851, 5
        %v853 = vand.u32 %v851, 31
        %v854 = vsub.s32 32, %v853
        %v855 = vshrl.u32 683565275, %v854
        %v856 = vshll.u32 683565275, %v853
        %v857 = vshrl.u32 2475754826, %v854
        %v858 = vor.u32 %v856, %v857
        %v859 = vshll.u32 2475754826, %v853
        %v860 = vshrl.u32 2131351028, %v854
        %v861 = vor.u32 %v859, %v860
        %v862 = vshll.u32 2131351028, %v853
        %v863 = vshrl.u32 2102212464, %v854
        %v864 = vor.u32 %v862, %v863
        %v865 = vshll.u32 2102212464, %v853
        %v866 = vshrl.u32 920167782, %v854
        %v867 = vor.u32 %v865, %v866
        %v868 = vshll.u32 920167782, %v853
        %v869 = vshrl.u32 1326507024, %v854
        %v870 = vor.u32 %v868, %v869
        %vm871 = vcmp.lt.s32.totalorder %v852, 1
        %vm872 = vcmp.lt.s32.totalorder %v852, 2
        %vm873 = vcmp.lt.s32.totalorder %v852, 3
        %vm874 = vcmp.lt.s32.totalorder %v852, 4
        %v875 = vsel %vm871, %v855, %v858
        %v876 = vsel %vm874, %v864, 2102212464
        %v877 = vsel %vm873, %v861, %v876
        %v878 = vsel %vm872, %v875, %v877
        %v879 = vsel %vm871, %v858, %v861
        %v880 = vsel %vm874, %v867, 920167782
        %v881 = vsel %vm873, %v864, %v880
        %v882 = vsel %vm872, %v879, %v881
        %v883 = vsel %vm871, %v861, %v864
        %v884 = vsel %vm874, %v870, 1326507024
        %v885 = vsel %vm873, %v867, %v884
        %v886 = vsel %vm872, %v883, %v885
        %v887 = vshll.u32 %v847, 8
        %v888 = vand.u32 %v887, 65535
        %v889 = vshrl.u32 %v887, 16
        %v890 = vand.u32 %v886, 65535
        %v891 = vshrl.u32 %v886, 16
        %v892 = vmul.u32 %v888, %v890
        %v893 = vmul.u32 %v888, %v891
        %v894 = vmul.u32 %v889, %v890
        %v895 = vmul.u32 %v889, %v891
        %v896 = vshll.u32 %v893, 16
        %v897 = vshrl.u32 %v893, 16
        %v898 = vshll.u32 %v894, 16
        %v899 = vshrl.u32 %v894, 16
        %vm900 = vc.u32 %v892, %v896
        %v901 = vsel %vm900, 1, 0
        %v902 = vadd.s32 %v892, %v896
        %v903 = vadd.s32 %v895, %v901
        %vm904 = vc.u32 %v902, %v898
        %v905 = vsel %vm904, 1, 0
        %v906 = vadd.s32 %v902, %v898
        %v907 = vadd.s32 %v903, %v905
        %v908 = vadd.s32 %v907, %v897
        %v909 = vadd.s32 %v908, %v899
        %v910 = vand.u32 %v887, 65535
        %v911 = vshrl.u32 %v887, 16
        %v912 = vand.u32 %v882, 65535
        %v913 = vshrl.u32 %v882, 16
        %v914 = vmul.u32 %v910, %v912
        %v915 = vmul.u32 %v910, %v913
        %v916 = vmul.u32 %v911, %v912
        %v917 = vmul.u32 %v911, %v913
        %v918 = vshll.u32 %v915, 16
        %v919 = vshrl.u32 %v915, 16
        %v920 = vshll.u32 %v916, 16
        %v921 = vshrl.u32 %v916, 16
        %vm922 = vc.u32 %v914, %v918
        %v923 = vsel %vm922, 1, 0
        %v924 = vadd.s32 %v914, %v918
        %v925 = vadd.s32 %v917, %v923
        %vm926 = vc.u32 %v924, %v920
        %v927 = vsel %vm926, 1, 0
        %v928 = vadd.s32 %v924, %v920
        %v929 = vadd.s32 %v925, %v927
        %v930 = vadd.s32 %v929, %v919
        %v931 = vadd.s32 %v930, %v921
        %v932 = vmul.u32 %v887, %v878
        %v933 = vadd.s32 %v909, %v928
        %vm934 = vc.u32 %v909, %v928
        %v935 = vadd.s32 %v931, 1
        %v936 = vsel %vm934, %v935, %v931
        %v937 = vadd.s32 %v932, %v936
        %v938 = vadd.s32 %v937, 536870912
        %v939 = vshrl.u32 %v938, 30
        %v940 = vshll.u32 %v939, 30
        %v941 = vsub.s32 %v937, %v940
        %vm942 = vcmp.lt.s32.totalorder %v941, 0
        %v943 = vsub.s32 0, %v941
        %v944 = vsel %vm942, %v943, %v941
        %v945 = vclz %v944
        %v946 = vsub.s32 %v945, 2
        %vm947 = vcmp.gt.s32.totalorder 0, %v946
        %v948 = vsel %vm947, 0, %v946
        %v949 = vsub.s32 32, %v948
        %v950 = vshll.u32 %v941, %v948
        %v951 = vshrl.u32 %v933, %v949
        %v952 = vor.u32 %v950, %v951
        %v953 = vsub.s32 4294967266, %v948
        %v954 = vadd.s32 %v953, 127
        %v955 = vshll.u32 %v954, 23
        %v956 = vor.u32 4788187, %v955
        %v957 = vand.u32 2147483647, %v956
        %v959 = vcvt.s32.f32 %v952
        %v960 = vmul.f32 %v959, %v957
        %v961 = vxor.u32 %v960, 2147483648
        %v962 = vsel %vm841, %v961, %v960
        %v963 = vsub.s32 4, %v939
        %v964 = vsel %vm841, %v963, %v939
        %v965 = vsel %vm840, %v653, %v962
        %v966 = vsel %vm840, 0, %v964
        %v967 = vmul.f32 %v965, %v965
        %v968 = vmul.f32 %v967, -0.001358992
        %v969 = vadd.f32 %v968, 0.041655596
        %v970 = vmul.f32 %v967, %v969
        %v971 = vadd.f32 %v970, -0.4999988
        %v972 = vmul.f32 %v967, %v971
        %v973 = vadd.f32 1.0, %v972
        %v974 = vmul.f32 %v965, %v965
        %v975 = vmul.f32 %v974, -0.00019511016
        %v976 = vadd.f32 %v975, 0.008332121
        %v977 = vmul.f32 %v974, %v976
        %v978 = vadd.f32 %v977, -0.16666654
        %v979 = vmul.f32 %v974, %v978
        %v980 = vadd.f32 %v979, 1.0
        %v981 = vmul.f32 %v980, %v965
        %vm982 = vweird.f32 %v653
        %v983 = vadd.s32 %v966, 3
        %v984 = vand.u32 %v983, 3
        %vm985 = vcmp.lt.s32.totalorder %v984, 2
        %vm986 = vcmp.eq.s32.totalorder %v984, 0
        %v987 = vxor.u32 %v981, 2147483648
        %v988 = vsel %vm986, %v973, %v987
        %vm989 = vcmp.eq.s32.totalorder %v984, 2
        %v990 = vxor.u32 %v973, 2147483648
        %v991 = vsel %vm989, %v990, %v981
        %v992 = vsel %vm985, %v988, %v991
        %v993 = vsel %vm982, nan, %v992
        %v994 = vand.u32 2147483647, %v654
        %vm995 = vcmp.le.f32.partialorder %v994, 0.7853982
        %vm996 = vcmp.lt.s32.totalorder %v654, 0
        %v997 = vand.u32 %v654, 2139095040
        %v998 = vshrl.u32 %v997, 23
        %v999 = vsub.s32 %v998, 127
        %v1000 = vand.u32 2147483647, %v654
        %v1001 = vand.u32 %v1000, 8388607
        %v1002 = vor.u32 %v1001, 8388608
        %v1003 = vsub.s32 0, %v1002
        %v1004 = vadd.s32 %v999, 1
        %vm1005 = vcmp.gt.s32.totalorder %v1004, 0
        %v1006 = vsel %vm1005, %v1004, 0
        %v1007 = vshrl.u32 %v1006, 5
        %v1008 = vand.u32 %v1006, 31
        %v1009 = vsub.s32 32, %v1008
        %v1010 = vshrl.u32 683565275, %v1009
        %v1011 = vshll.u32 683565275, %v1008
        %v1012 = vshrl.u32 2475754826, %v1009
        %v1013 = vor.u32 %v1011, %v1012
        %v1014 = vshll.u32 2475754826, %v1008
        %v1015 = vshrl.u32 2131351028, %v1009
        %v1016 = vor.u32 %v1014, %v1015
        %v1017 = vshll.u32 2131351028, %v1008
        %v1018 = vshrl.u32 2102212464, %v1009
        %v1019 = vor.u32 %v1017, %v1018
        %v1020 = vshll.u32 2102212464, %v1008
        %v1021 = vshrl.u32 920167782, %v1009
        %v1022 = vor.u32 %v1020, %v1021
        %v1023 = vshll.u32 920167782, %v1008
        %v1024 = vshrl.u32 1326507024, %v1009
        %v1025 = vor.u32 %v1023, %v1024
        %vm1026 = vcmp.lt.s32.totalorder %v1007, 1
        %vm1027 = vcmp.lt.s32.totalorder %v1007, 2
        %vm1028 = vcmp.lt.s32.totalorder %v1007, 3
        %vm1029 = vcmp.lt.s32.totalorder %v1007, 4
        %v1030 = vsel %vm1026, %v1010, %v1013
        %v1031 = vsel %vm1029, %v1019, 2102212464
        %v1032 = vsel %vm1028, %v1016, %v1031
        %v1033 = vsel %vm1027, %v1030, %v1032
        %v1034 = vsel %vm1026, %v1013, %v1016
        %v1035 = vsel %vm1029, %v1022, 920167782
        %v1036 = vsel %vm1028, %v1019, %v1035
        %v1037 = vsel %vm1027, %v1034, %v1036
        %v1038 = vsel %vm1026, %v1016, %v1019
        %v1039 = vsel %vm1029, %v1025, 1326507024
        %v1040 = vsel %vm1028, %v1022, %v1039
        %v1041 = vsel %vm1027, %v1038, %v1040
        %v1042 = vshll.u32 %v1002, 8
        %v1043 = vand.u32 %v1042, 65535
        %v1044 = vshrl.u32 %v1042, 16
        %v1045 = vand.u32 %v1041, 65535
        %v1046 = vshrl.u32 %v1041, 16
        %v1047 = vmul.u32 %v1043, %v1045
        %v1048 = vmul.u32 %v1043, %v1046
        %v1049 = vmul.u32 %v1044, %v1045
        %v1050 = vmul.u32 %v1044, %v1046
        %v1051 = vshll.u32 %v1048, 16
        %v1052 = vshrl.u32 %v1048, 16
        %v1053 = vshll.u32 %v1049, 16
        %v1054 = vshrl.u32 %v1049, 16
        %vm1055 = vc.u32 %v1047, %v1051
        %v1056 = vsel %vm1055, 1, 0
        %v1057 = vadd.s32 %v1047, %v1051
        %v1058 = vadd.s32 %v1050, %v1056
        %vm1059 = vc.u32 %v1057, %v1053
        %v1060 = vsel %vm1059, 1, 0
        %v1061 = vadd.s32 %v1057, %v1053
        %v1062 = vadd.s32 %v1058, %v1060
        %v1063 = vadd.s32 %v1062, %v1052
        %v1064 = vadd.s32 %v1063, %v1054
        %v1065 = vand.u32 %v1042, 65535
        %v1066 = vshrl.u32 %v1042, 16
        %v1067 = vand.u32 %v1037, 65535
        %v1068 = vshrl.u32 %v1037, 16
        %v1069 = vmul.u32 %v1065, %v1067
        %v1070 = vmul.u32 %v1065, %v1068
        %v1071 = vmul.u32 %v1066, %v1067
        %v1072 = vmul.u32 %v1066, %v1068
        %v1073 = vshll.u32 %v1070, 16
        %v1074 = vshrl.u32 %v1070, 16
        %v1075 = vshll.u32 %v1071, 16
        %v1076 = vshrl.u32 %v1071, 16
        %vm1077 = vc.u32 %v1069, %v1073
        %v1078 = vsel %vm1077, 1, 0
        %v1079 = vadd.s32 %v1069, %v1073
        %v1080 = vadd.s32 %v1072, %v1078
        %vm1081 = vc.u32 %v1079, %v1075
        %v1082 = vsel %vm1081, 1, 0
        %v1083 = vadd.s32 %v1079, %v1075
        %v1084 = vadd.s32 %v1080, %v1082
        %v1085 = vadd.s32 %v1084, %v1074
        %v1086 = vadd.s32 %v1085, %v1076
        %v1087 = vmul.u32 %v1042, %v1033
        %v1088 = vadd.s32 %v1064, %v1083
        %vm1089 = vc.u32 %v1064, %v1083
        %v1090 = vadd.s32 %v1086, 1
        %v1091 = vsel %vm1089, %v1090, %v1086
        %v1092 = vadd.s32 %v1087, %v1091
        %v1093 = vadd.s32 %v1092, 536870912
        %v1094 = vshrl.u32 %v1093, 30
        %v1095 = vshll.u32 %v1094, 30
        %v1096 = vsub.s32 %v1092, %v1095
        %vm1097 = vcmp.lt.s32.totalorder %v1096, 0
        %v1098 = vsub.s32 0, %v1096
        %v1099 = vsel %vm1097, %v1098, %v1096
        %v1100 = vclz %v1099
        %v1101 = vsub.s32 %v1100, 2
        %vm1102 = vcmp.gt.s32.totalorder 0, %v1101
        %v1103 = vsel %vm1102, 0, %v1101
        %v1104 = vsub.s32 32, %v1103
        %v1105 = vshll.u32 %v1096, %v1103
        %v1106 = vshrl.u32 %v1088, %v1104
        %v1107 = vor.u32 %v1105, %v1106
        %v1108 = vsub.s32 4294967266, %v1103
        %v1109 = vadd.s32 %v1108, 127
        %v1110 = vshll.u32 %v1109, 23
        %v1111 = vor.u32 4788187, %v1110
        %v1112 = vand.u32 2147483647, %v1111
        %v1114 = vcvt.s32.f32 %v1107
        %v1115 = vmul.f32 %v1114, %v1112
        %v1116 = vxor.u32 %v1115, 2147483648
        %v1117 = vsel %vm996, %v1116, %v1115
        %v1118 = vsub.s32 4, %v1094
        %v1119 = vsel %vm996, %v1118, %v1094
        %v1120 = vsel %vm995, %v654, %v1117
        %v1121 = vsel %vm995, 0, %v1119
        %v1122 = vmul.f32 %v1120, %v1120
        %v1123 = vmul.f32 %v1122, -0.001358992
        %v1124 = vadd.f32 %v1123, 0.041655596
        %v1125 = vmul.f32 %v1122, %v1124
        %v1126 = vadd.f32 %v1125, -0.4999988
        %v1127 = vmul.f32 %v1122, %v1126
        %v1128 = vadd.f32 1.0, %v1127
        %v1129 = vmul.f32 %v1120, %v1120
        %v1130 = vmul.f32 %v1129, -0.00019511016
        %v1131 = vadd.f32 %v1130, 0.008332121
        %v1132 = vmul.f32 %v1129, %v1131
        %v1133 = vadd.f32 %v1132, -0.16666654
        %v1134 = vmul.f32 %v1129, %v1133
        %v1135 = vadd.f32 %v1134, 1.0
        %v1136 = vmul.f32 %v1135, %v1120
        %vm1137 = vweird.f32 %v654
        %v1138 = vadd.s32 %v1121, 3
        %v1139 = vand.u32 %v1138, 3
        %vm1140 = vcmp.lt.s32.totalorder %v1139, 2
        %vm1141 = vcmp.eq.s32.totalorder %v1139, 0
        %v1142 = vxor.u32 %v1136, 2147483648
        %v1143 = vsel %vm1141, %v1128, %v1142
        %vm1144 = vcmp.eq.s32.totalorder %v1139, 2
        %v1145 = vxor.u32 %v1128, 2147483648
        %v1146 = vsel %vm1144, %v1145, %v1136
        %v1147 = vsel %vm1140, %v1143, %v1146
        %v1148 = vsel %vm1137, nan, %v1147
        %v1149 = vand.u32 2147483647, %v655
        %vm1150 = vcmp.le.f32.partialorder %v1149, 0.7853982
        %vm1151 = vcmp.lt.s32.totalorder %v655, 0
        %v1152 = vand.u32 %v655, 2139095040
        %v1153 = vshrl.u32 %v1152, 23
        %v1154 = vsub.s32 %v1153, 127
        %v1155 = vand.u32 2147483647, %v655
        %v1156 = vand.u32 %v1155, 8388607
        %v1157 = vor.u32 %v1156, 8388608
        %v1158 = vsub.s32 0, %v1157
        %v1159 = vadd.s32 %v1154, 1
        %vm1160 = vcmp.gt.s32.totalorder %v1159, 0
        %v1161 = vsel %vm1160, %v1159, 0
        %v1162 = vshrl.u32 %v1161, 5
        %v1163 = vand.u32 %v1161, 31
        %v1164 = vsub.s32 32, %v1163
        %v1165 = vshrl.u32 683565275, %v1164
        %v1166 = vshll.u32 683565275, %v1163
        %v1167 = vshrl.u32 2475754826, %v1164
        %v1168 = vor.u32 %v1166, %v1167
        %v1169 = vshll.u32 2475754826, %v1163
        %v1170 = vshrl.u32 2131351028, %v1164
        %v1171 = vor.u32 %v1169, %v1170
        %v1172 = vshll.u32 2131351028, %v1163
        %v1173 = vshrl.u32 2102212464, %v1164
        %v1174 = vor.u32 %v1172, %v1173
        %v1175 = vshll.u32 2102212464, %v1163
        %v1176 = vshrl.u32 920167782, %v1164
        %v1177 = vor.u32 %v1175, %v1176
        %v1178 = vshll.u32 920167782, %v1163
        %v1179 = vshrl.u32 1326507024, %v1164
        %v1180 = vor.u32 %v1178, %v1179
        %vm1181 = vcmp.lt.s32.totalorder %v1162, 1
        %vm1182 = vcmp.lt.s32.totalorder %v1162, 2
        %vm1183 = vcmp.lt.s32.totalorder %v1162, 3
        %vm1184 = vcmp.lt.s32.totalorder %v1162, 4
        %v1185 = vsel %vm1181, %v1165, %v1168
        %v1186 = vsel %vm1184, %v1174, 2102212464
        %v1187 = vsel %vm1183, %v1171, %v1186
        %v1188 = vsel %vm1182, %v1185, %v1187
        %v1189 = vsel %vm1181, %v1168, %v1171
        %v1190 = vsel %vm1184, %v1177, 920167782
        %v1191 = vsel %vm1183, %v1174, %v1190
        %v1192 = vsel %vm1182, %v1189, %v1191
        %v1193 = vsel %vm1181, %v1171, %v1174
        %v1194 = vsel %vm1184, %v1180, 1326507024
        %v1195 = vsel %vm1183, %v1177, %v1194
        %v1196 = vsel %vm1182, %v1193, %v1195
        %v1197 = vshll.u32 %v1157, 8
        %v1198 = vand.u32 %v1197, 65535
        %v1199 = vshrl.u32 %v1197, 16
        %v1200 = vand.u32 %v1196, 65535
        %v1201 = vshrl.u32 %v1196, 16
        %v1202 = vmul.u32 %v1198, %v1200
        %v1203 = vmul.u32 %v1198, %v1201
        %v1204 = vmul.u32 %v1199, %v1200
        %v1205 = vmul.u32 %v1199, %v1201
        %v1206 = vshll.u32 %v1203, 16
        %v1207 = vshrl.u32 %v1203, 16
        %v1208 = vshll.u32 %v1204, 16
        %v1209 = vshrl.u32 %v1204, 16
        %vm1210 = vc.u32 %v1202, %v1206
        %v1211 = vsel %vm1210, 1, 0
        %v1212 = vadd.s32 %v1202, %v1206
        %v1213 = vadd.s32 %v1205, %v1211
        %vm1214 = vc.u32 %v1212, %v1208
        %v1215 = vsel %vm1214, 1, 0
        %v1216 = vadd.s32 %v1212, %v1208
        %v1217 = vadd.s32 %v1213, %v1215
        %v1218 = vadd.s32 %v1217, %v1207
        %v1219 = vadd.s32 %v1218, %v1209
        %v1220 = vand.u32 %v1197, 65535
        %v1221 = vshrl.u32 %v1197, 16
        %v1222 = vand.u32 %v1192, 65535
        %v1223 = vshrl.u32 %v1192, 16
        %v1224 = vmul.u32 %v1220, %v1222
        %v1225 = vmul.u32 %v1220, %v1223
        %v1226 = vmul.u32 %v1221, %v1222
        %v1227 = vmul.u32 %v1221, %v1223
        %v1228 = vshll.u32 %v1225, 16
        %v1229 = vshrl.u32 %v1225, 16
        %v1230 = vshll.u32 %v1226, 16
        %v1231 = vshrl.u32 %v1226, 16
        %vm1232 = vc.u32 %v1224, %v1228
        %v1233 = vsel %vm1232, 1, 0
        %v1234 = vadd.s32 %v1224, %v1228
        %v1235 = vadd.s32 %v1227, %v1233
        %vm1236 = vc.u32 %v1234, %v1230
        %v1237 = vsel %vm1236, 1, 0
        %v1238 = vadd.s32 %v1234, %v1230
        %v1239 = vadd.s32 %v1235, %v1237
        %v1240 = vadd.s32 %v1239, %v1229
        %v1241 = vadd.s32 %v1240, %v1231
        %v1242 = vmul.u32 %v1197, %v1188
        %v1243 = vadd.s32 %v1219, %v1238
        %vm1244 = vc.u32 %v1219, %v1238
        %v1245 = vadd.s32 %v1241, 1
        %v1246 = vsel %vm1244, %v1245, %v1241
        %v1247 = vadd.s32 %v1242, %v1246
        %v1248 = vadd.s32 %v1247, 536870912
        %v1249 = vshrl.u32 %v1248, 30
        %v1250 = vshll.u32 %v1249, 30
        %v1251 = vsub.s32 %v1247, %v1250
        %vm1252 = vcmp.lt.s32.totalorder %v1251, 0
        %v1253 = vsub.s32 0, %v1251
        %v1254 = vsel %vm1252, %v1253, %v1251
        %v1255 = vclz %v1254
        %v1256 = vsub.s32 %v1255, 2
        %vm1257 = vcmp.gt.s32.totalorder 0, %v1256
        %v1258 = vsel %vm1257, 0, %v1256
        %v1259 = vsub.s32 32, %v1258
        %v1260 = vshll.u32 %v1251, %v1258
        %v1261 = vshrl.u32 %v1243, %v1259
        %v1262 = vor.u32 %v1260, %v1261
        %v1263 = vsub.s32 4294967266, %v1258
        %v1264 = vadd.s32 %v1263, 127
        %v1265 = vshll.u32 %v1264, 23
        %v1266 = vor.u32 4788187, %v1265
        %v1267 = vand.u32 2147483647, %v1266
        %v1269 = vcvt.s32.f32 %v1262
        %v1270 = vmul.f32 %v1269, %v1267
        %v1271 = vxor.u32 %v1270, 2147483648
        %v1272 = vsel %vm1151, %v1271, %v1270
        %v1273 = vsub.s32 4, %v1249
        %v1274 = vsel %vm1151, %v1273, %v1249
        %v1275 = vsel %vm1150, %v655, %v1272
        %v1276 = vsel %vm1150, 0, %v1274
        %v1277 = vmul.f32 %v1275, %v1275
        %v1278 = vmul.f32 %v1277, -0.001358992
        %v1279 = vadd.f32 %v1278, 0.041655596
        %v1280 = vmul.f32 %v1277, %v1279
        %v1281 = vadd.f32 %v1280, -0.4999988
        %v1282 = vmul.f32 %v1277, %v1281
        %v1283 = vadd.f32 1.0, %v1282
        %v1284 = vmul.f32 %v1275, %v1275
        %v1285 = vmul.f32 %v1284, -0.00019511016
        %v1286 = vadd.f32 %v1285, 0.008332121
        %v1287 = vmul.f32 %v1284, %v1286
        %v1288 = vadd.f32 %v1287, -0.16666654
        %v1289 = vmul.f32 %v1284, %v1288
        %v1290 = vadd.f32 %v1289, 1.0
        %v1291 = vmul.f32 %v1290, %v1275
        %vm1292 = vweird.f32 %v655
        %v1293 = vadd.s32 %v1276, 3
        %v1294 = vand.u32 %v1293, 3
        %vm1295 = vcmp.lt.s32.totalorder %v1294, 2
        %vm1296 = vcmp.eq.s32.totalorder %v1294, 0
        %v1297 = vxor.u32 %v1291, 2147483648
        %v1298 = vsel %vm1296, %v1283, %v1297
        %vm1299 = vcmp.eq.s32.totalorder %v1294, 2
        %v1300 = vxor.u32 %v1283, 2147483648
        %v1301 = vsel %vm1299, %v1300, %v1291
        %v1302 = vsel %vm1295, %v1298, %v1301
        %v1303 = vsel %vm1292, nan, %v1302
        %v1304 = vand.u32 2147483647, %v656
        %vm1305 = vcmp.le.f32.partialorder %v1304, 0.7853982
        %vm1306 = vcmp.lt.s32.totalorder %v656, 0
        %v1307 = vand.u32 %v656, 2139095040
        %v1308 = vshrl.u32 %v1307, 23
        %v1309 = vsub.s32 %v1308, 127
        %v1310 = vand.u32 2147483647, %v656
        %v1311 = vand.u32 %v1310, 8388607
        %v1312 = vor.u32 %v1311, 8388608
        %v1313 = vsub.s32 0, %v1312
        %v1314 = vadd.s32 %v1309, 1
        %vm1315 = vcmp.gt.s32.totalorder %v1314, 0
        %v1316 = vsel %vm1315, %v1314, 0
        %v1317 = vshrl.u32 %v1316, 5
        %v1318 = vand.u32 %v1316, 31
        %v1319 = vsub.s32 32, %v1318
        %v1320 = vshrl.u32 683565275, %v1319
        %v1321 = vshll.u32 683565275, %v1318
        %v1322 = vshrl.u32 2475754826, %v1319
        %v1323 = vor.u32 %v1321, %v1322
        %v1324 = vshll.u32 2475754826, %v1318
        %v1325 = vshrl.u32 2131351028, %v1319
        %v1326 = vor.u32 %v1324, %v1325
        %v1327 = vshll.u32 2131351028, %v1318
        %v1328 = vshrl.u32 2102212464, %v1319
        %v1329 = vor.u32 %v1327, %v1328
        %v1330 = vshll.u32 2102212464, %v1318
        %v1331 = vshrl.u32 920167782, %v1319
        %v1332 = vor.u32 %v1330, %v1331
        %v1333 = vshll.u32 920167782, %v1318
        %v1334 = vshrl.u32 1326507024, %v1319
        %v1335 = vor.u32 %v1333, %v1334
        %vm1336 = vcmp.lt.s32.totalorder %v1317, 1
        %vm1337 = vcmp.lt.s32.totalorder %v1317, 2
        %vm1338 = vcmp.lt.s32.totalorder %v1317, 3
        %vm1339 = vcmp.lt.s32.totalorder %v1317, 4
        %v1340 = vsel %vm1336, %v1320, %v1323
        %v1341 = vsel %vm1339, %v1329, 2102212464
        %v1342 = vsel %vm1338, %v1326, %v1341
        %v1343 = vsel %vm1337, %v1340, %v1342
        %v1344 = vsel %vm1336, %v1323, %v1326
        %v1345 = vsel %vm1339, %v1332, 920167782
        %v1346 = vsel %vm1338, %v1329, %v1345
        %v1347 = vsel %vm1337, %v1344, %v1346
        %v1348 = vsel %vm1336, %v1326, %v1329
        %v1349 = vsel %vm1339, %v1335, 1326507024
        %v1350 = vsel %vm1338, %v1332, %v1349
        %v1351 = vsel %vm1337, %v1348, %v1350
        %v1352 = vshll.u32 %v1312, 8
        %v1353 = vand.u32 %v1352, 65535
        %v1354 = vshrl.u32 %v1352, 16
        %v1355 = vand.u32 %v1351, 65535
        %v1356 = vshrl.u32 %v1351, 16
        %v1357 = vmul.u32 %v1353, %v1355
        %v1358 = vmul.u32 %v1353, %v1356
        %v1359 = vmul.u32 %v1354, %v1355
        %v1360 = vmul.u32 %v1354, %v1356
        %v1361 = vshll.u32 %v1358, 16
        %v1362 = vshrl.u32 %v1358, 16
        %v1363 = vshll.u32 %v1359, 16
        %v1364 = vshrl.u32 %v1359, 16
        %vm1365 = vc.u32 %v1357, %v1361
        %v1366 = vsel %vm1365, 1, 0
        %v1367 = vadd.s32 %v1357, %v1361
        %v1368 = vadd.s32 %v1360, %v1366
        %vm1369 = vc.u32 %v1367, %v1363
        %v1370 = vsel %vm1369, 1, 0
        %v1371 = vadd.s32 %v1367, %v1363
        %v1372 = vadd.s32 %v1368, %v1370
        %v1373 = vadd.s32 %v1372, %v1362
        %v1374 = vadd.s32 %v1373, %v1364
        %v1375 = vand.u32 %v1352, 65535
        %v1376 = vshrl.u32 %v1352, 16
        %v1377 = vand.u32 %v1347, 65535
        %v1378 = vshrl.u32 %v1347, 16
        %v1379 = vmul.u32 %v1375, %v1377
        %v1380 = vmul.u32 %v1375, %v1378
        %v1381 = vmul.u32 %v1376, %v1377
        %v1382 = vmul.u32 %v1376, %v1378
        %v1383 = vshll.u32 %v1380, 16
        %v1384 = vshrl.u32 %v1380, 16
        %v1385 = vshll.u32 %v1381, 16
        %v1386 = vshrl.u32 %v1381, 16
        %vm1387 = vc.u32 %v1379, %v1383
        %v1388 = vsel %vm1387, 1, 0
        %v1389 = vadd.s32 %v1379, %v1383
        %v1390 = vadd.s32 %v1382, %v1388
        %vm1391 = vc.u32 %v1389, %v1385
        %v1392 = vsel %vm1391, 1, 0
        %v1393 = vadd.s32 %v1389, %v1385
        %v1394 = vadd.s32 %v1390, %v1392
        %v1395 = vadd.s32 %v1394, %v1384
        %v1396 = vadd.s32 %v1395, %v1386
        %v1397 = vmul.u32 %v1352, %v1343
        %v1398 = vadd.s32 %v1374, %v1393
        %vm1399 = vc.u32 %v1374, %v1393
        %v1400 = vadd.s32 %v1396, 1
        %v1401 = vsel %vm1399, %v1400, %v1396
        %v1402 = vadd.s32 %v1397, %v1401
        %v1403 = vadd.s32 %v1402, 536870912
        %v1404 = vshrl.u32 %v1403, 30
        %v1405 = vshll.u32 %v1404, 30
        %v1406 = vsub.s32 %v1402, %v1405
        %vm1407 = vcmp.lt.s32.totalorder %v1406, 0
        %v1408 = vsub.s32 0, %v1406
        %v1409 = vsel %vm1407, %v1408, %v1406
        %v1410 = vclz %v1409
        %v1411 = vsub.s32 %v1410, 2
        %vm1412 = vcmp.gt.s32.totalorder 0, %v1411
        %v1413 = vsel %vm1412, 0, %v1411
        %v1414 = vsub.s32 32, %v1413
        %v1415 = vshll.u32 %v1406, %v1413
        %v1416 = vshrl.u32 %v1398, %v1414
        %v1417 = vor.u32 %v1415, %v1416
        %v1418 = vsub.s32 4294967266, %v1413
        %v1419 = vadd.s32 %v1418, 127
        %v1420 = vshll.u32 %v1419, 23
        %v1421 = vor.u32 4788187, %v1420
        %v1422 = vand.u32 2147483647, %v1421
        %v1424 = vcvt.s32.f32 %v1417
        %v1425 = vmul.f32 %v1424, %v1422
        %v1426 = vxor.u32 %v1425, 2147483648
        %v1427 = vsel %vm1306, %v1426, %v1425
        %v1428 = vsub.s32 4, %v1404
        %v1429 = vsel %vm1306, %v1428, %v1404
        %v1430 = vsel %vm1305, %v656, %v1427
        %v1431 = vsel %vm1305, 0, %v1429
        %v1432 = vmul.f32 %v1430, %v1430
        %v1433 = vmul.f32 %v1432, -0.001358992
        %v1434 = vadd.f32 %v1433, 0.041655596
        %v1435 = vmul.f32 %v1432, %v1434
        %v1436 = vadd.f32 %v1435, -0.4999988
        %v1437 = vmul.f32 %v1432, %v1436
        %v1438 = vadd.f32 1.0, %v1437
        %v1439 = vmul.f32 %v1430, %v1430
        %v1440 = vmul.f32 %v1439, -0.00019511016
        %v1441 = vadd.f32 %v1440, 0.008332121
        %v1442 = vmul.f32 %v1439, %v1441
        %v1443 = vadd.f32 %v1442, -0.16666654
        %v1444 = vmul.f32 %v1439, %v1443
        %v1445 = vadd.f32 %v1444, 1.0
        %v1446 = vmul.f32 %v1445, %v1430
        %vm1447 = vweird.f32 %v656
        %v1448 = vadd.s32 %v1431, 3
        %v1449 = vand.u32 %v1448, 3
        %vm1450 = vcmp.lt.s32.totalorder %v1449, 2
        %vm1451 = vcmp.eq.s32.totalorder %v1449, 0
        %v1452 = vxor.u32 %v1446, 2147483648
        %v1453 = vsel %vm1451, %v1438, %v1452
        %vm1454 = vcmp.eq.s32.totalorder %v1449, 2
        %v1455 = vxor.u32 %v1438, 2147483648
        %v1456 = vsel %vm1454, %v1455, %v1446
        %v1457 = vsel %vm1450, %v1453, %v1456
        %v1458 = vsel %vm1447, nan, %v1457
        %v1459 = vand.u32 2147483647, %v657
        %vm1460 = vcmp.le.f32.partialorder %v1459, 0.7853982
        %vm1461 = vcmp.lt.s32.totalorder %v657, 0
        %v1462 = vand.u32 %v657, 2139095040
        %v1463 = vshrl.u32 %v1462, 23
        %v1464 = vsub.s32 %v1463, 127
        %v1465 = vand.u32 2147483647, %v657
        %v1466 = vand.u32 %v1465, 8388607
        %v1467 = vor.u32 %v1466, 8388608
        %v1468 = vsub.s32 0, %v1467
        %v1469 = vadd.s32 %v1464, 1
        %vm1470 = vcmp.gt.s32.totalorder %v1469, 0
        %v1471 = vsel %vm1470, %v1469, 0
        %v1472 = vshrl.u32 %v1471, 5
        %v1473 = vand.u32 %v1471, 31
        %v1474 = vsub.s32 32, %v1473
        %v1475 = vshrl.u32 683565275, %v1474
        %v1476 = vshll.u32 683565275, %v1473
        %v1477 = vshrl.u32 2475754826, %v1474
        %v1478 = vor.u32 %v1476, %v1477
        %v1479 = vshll.u32 2475754826, %v1473
        %v1480 = vshrl.u32 2131351028, %v1474
        %v1481 = vor.u32 %v1479, %v1480
        %v1482 = vshll.u32 2131351028, %v1473
        %v1483 = vshrl.u32 2102212464, %v1474
        %v1484 = vor.u32 %v1482, %v1483
        %v1485 = vshll.u32 2102212464, %v1473
        %v1486 = vshrl.u32 920167782, %v1474
        %v1487 = vor.u32 %v1485, %v1486
        %v1488 = vshll.u32 920167782, %v1473
        %v1489 = vshrl.u32 1326507024, %v1474
        %v1490 = vor.u32 %v1488, %v1489
        %vm1491 = vcmp.lt.s32.totalorder %v1472, 1
        %vm1492 = vcmp.lt.s32.totalorder %v1472, 2
        %vm1493 = vcmp.lt.s32.totalorder %v1472, 3
        %vm1494 = vcmp.lt.s32.totalorder %v1472, 4
        %v1495 = vsel %vm1491, %v1475, %v1478
        %v1496 = vsel %vm1494, %v1484, 2102212464
        %v1497 = vsel %vm1493, %v1481, %v1496
        %v1498 = vsel %vm1492, %v1495, %v1497
        %v1499 = vsel %vm1491, %v1478, %v1481
        %v1500 = vsel %vm1494, %v1487, 920167782
        %v1501 = vsel %vm1493, %v1484, %v1500
        %v1502 = vsel %vm1492, %v1499, %v1501
        %v1503 = vsel %vm1491, %v1481, %v1484
        %v1504 = vsel %vm1494, %v1490, 1326507024
        %v1505 = vsel %vm1493, %v1487, %v1504
        %v1506 = vsel %vm1492, %v1503, %v1505
        %v1507 = vshll.u32 %v1467, 8
        %v1508 = vand.u32 %v1507, 65535
        %v1509 = vshrl.u32 %v1507, 16
        %v1510 = vand.u32 %v1506, 65535
        %v1511 = vshrl.u32 %v1506, 16
        %v1512 = vmul.u32 %v1508, %v1510
        %v1513 = vmul.u32 %v1508, %v1511
        %v1514 = vmul.u32 %v1509, %v1510
        %v1515 = vmul.u32 %v1509, %v1511
        %v1516 = vshll.u32 %v1513, 16
        %v1517 = vshrl.u32 %v1513, 16
        %v1518 = vshll.u32 %v1514, 16
        %v1519 = vshrl.u32 %v1514, 16
        %vm1520 = vc.u32 %v1512, %v1516
        %v1521 = vsel %vm1520, 1, 0
        %v1522 = vadd.s32 %v1512, %v1516
        %v1523 = vadd.s32 %v1515, %v1521
        %vm1524 = vc.u32 %v1522, %v1518
        %v1525 = vsel %vm1524, 1, 0
        %v1526 = vadd.s32 %v1522, %v1518
        %v1527 = vadd.s32 %v1523, %v1525
        %v1528 = vadd.s32 %v1527, %v1517
        %v1529 = vadd.s32 %v1528, %v1519
        %v1530 = vand.u32 %v1507, 65535
        %v1531 = vshrl.u32 %v1507, 16
        %v1532 = vand.u32 %v1502, 65535
        %v1533 = vshrl.u32 %v1502, 16
        %v1534 = vmul.u32 %v1530, %v1532
        %v1535 = vmul.u32 %v1530, %v1533
        %v1536 = vmul.u32 %v1531, %v1532
        %v1537 = vmul.u32 %v1531, %v1533
        %v1538 = vshll.u32 %v1535, 16
        %v1539 = vshrl.u32 %v1535, 16
        %v1540 = vshll.u32 %v1536, 16
        %v1541 = vshrl.u32 %v1536, 16
        %vm1542 = vc.u32 %v1534, %v1538
        %v1543 = vsel %vm1542, 1, 0
        %v1544 = vadd.s32 %v1534, %v1538
        %v1545 = vadd.s32 %v1537, %v1543
        %vm1546 = vc.u32 %v1544, %v1540
        %v1547 = vsel %vm1546, 1, 0
        %v1548 = vadd.s32 %v1544, %v1540
        %v1549 = vadd.s32 %v1545, %v1547
        %v1550 = vadd.s32 %v1549, %v1539
        %v1551 = vadd.s32 %v1550, %v1541
        %v1552 = vmul.u32 %v1507, %v1498
        %v1553 = vadd.s32 %v1529, %v1548
        %vm1554 = vc.u32 %v1529, %v1548
        %v1555 = vadd.s32 %v1551, 1
        %v1556 = vsel %vm1554, %v1555, %v1551
        %v1557 = vadd.s32 %v1552, %v1556
        %v1558 = vadd.s32 %v1557, 536870912
        %v1559 = vshrl.u32 %v1558, 30
        %v1560 = vshll.u32 %v1559, 30
        %v1561 = vsub.s32 %v1557, %v1560
        %vm1562 = vcmp.lt.s32.totalorder %v1561, 0
        %v1563 = vsub.s32 0, %v1561
        %v1564 = vsel %vm1562, %v1563, %v1561
        %v1565 = vclz %v1564
        %v1566 = vsub.s32 %v1565, 2
        %vm1567 = vcmp.gt.s32.totalorder 0, %v1566
        %v1568 = vsel %vm1567, 0, %v1566
        %v1569 = vsub.s32 32, %v1568
        %v1570 = vshll.u32 %v1561, %v1568
        %v1571 = vshrl.u32 %v1553, %v1569
        %v1572 = vor.u32 %v1570, %v1571
        %v1573 = vsub.s32 4294967266, %v1568
        %v1574 = vadd.s32 %v1573, 127
        %v1575 = vshll.u32 %v1574, 23
        %v1576 = vor.u32 4788187, %v1575
        %v1577 = vand.u32 2147483647, %v1576
        %v1579 = vcvt.s32.f32 %v1572
        %v1580 = vmul.f32 %v1579, %v1577
        %v1581 = vxor.u32 %v1580, 2147483648
        %v1582 = vsel %vm1461, %v1581, %v1580
        %v1583 = vsub.s32 4, %v1559
        %v1584 = vsel %vm1461, %v1583, %v1559
        %v1585 = vsel %vm1460, %v657, %v1582
        %v1586 = vsel %vm1460, 0, %v1584
        %v1587 = vmul.f32 %v1585, %v1585
        %v1588 = vmul.f32 %v1587, -0.001358992
        %v1589 = vadd.f32 %v1588, 0.041655596
        %v1590 = vmul.f32 %v1587, %v1589
        %v1591 = vadd.f32 %v1590, -0.4999988
        %v1592 = vmul.f32 %v1587, %v1591
        %v1593 = vadd.f32 1.0, %v1592
        %v1594 = vmul.f32 %v1585, %v1585
        %v1595 = vmul.f32 %v1594, -0.00019511016
        %v1596 = vadd.f32 %v1595, 0.008332121
        %v1597 = vmul.f32 %v1594, %v1596
        %v1598 = vadd.f32 %v1597, -0.16666654
        %v1599 = vmul.f32 %v1594, %v1598
        %v1600 = vadd.f32 %v1599, 1.0
        %v1601 = vmul.f32 %v1600, %v1585
        %vm1602 = vweird.f32 %v657
        %v1603 = vadd.s32 %v1586, 3
        %v1604 = vand.u32 %v1603, 3
        %vm1605 = vcmp.lt.s32.totalorder %v1604, 2
        %vm1606 = vcmp.eq.s32.totalorder %v1604, 0
        %v1607 = vxor.u32 %v1601, 2147483648
        %v1608 = vsel %vm1606, %v1593, %v1607
        %vm1609 = vcmp.eq.s32.totalorder %v1604, 2
        %v1610 = vxor.u32 %v1593, 2147483648
        %v1611 = vsel %vm1609, %v1610, %v1601
        %v1612 = vsel %vm1605, %v1608, %v1611
        %v1613 = vsel %vm1602, nan, %v1612
        %v1614 = vand.u32 2147483647, %v658
        %vm1615 = vcmp.le.f32.partialorder %v1614, 0.7853982
        %vm1616 = vcmp.lt.s32.totalorder %v658, 0
        %v1617 = vand.u32 %v658, 2139095040
        %v1618 = vshrl.u32 %v1617, 23
        %v1619 = vsub.s32 %v1618, 127
        %v1620 = vand.u32 2147483647, %v658
        %v1621 = vand.u32 %v1620, 8388607
        %v1622 = vor.u32 %v1621, 8388608
        %v1623 = vsub.s32 0, %v1622
        %v1624 = vadd.s32 %v1619, 1
        %vm1625 = vcmp.gt.s32.totalorder %v1624, 0
        %v1626 = vsel %vm1625, %v1624, 0
        %v1627 = vshrl.u32 %v1626, 5
        %v1628 = vand.u32 %v1626, 31
        %v1629 = vsub.s32 32, %v1628
        %v1630 = vshrl.u32 683565275, %v1629
        %v1631 = vshll.u32 683565275, %v1628
        %v1632 = vshrl.u32 2475754826, %v1629
        %v1633 = vor.u32 %v1631, %v1632
        %v1634 = vshll.u32 2475754826, %v1628
        %v1635 = vshrl.u32 2131351028, %v1629
        %v1636 = vor.u32 %v1634, %v1635
        %v1637 = vshll.u32 2131351028, %v1628
        %v1638 = vshrl.u32 2102212464, %v1629
        %v1639 = vor.u32 %v1637, %v1638
        %v1640 = vshll.u32 2102212464, %v1628
        %v1641 = vshrl.u32 920167782, %v1629
        %v1642 = vor.u32 %v1640, %v1641
        %v1643 = vshll.u32 920167782, %v1628
        %v1644 = vshrl.u32 1326507024, %v1629
        %v1645 = vor.u32 %v1643, %v1644
        %vm1646 = vcmp.lt.s32.totalorder %v1627, 1
        %vm1647 = vcmp.lt.s32.totalorder %v1627, 2
        %vm1648 = vcmp.lt.s32.totalorder %v1627, 3
        %vm1649 = vcmp.lt.s32.totalorder %v1627, 4
        %v1650 = vsel %vm1646, %v1630, %v1633
        %v1651 = vsel %vm1649, %v1639, 2102212464
        %v1652 = vsel %vm1648, %v1636, %v1651
        %v1653 = vsel %vm1647, %v1650, %v1652
        %v1654 = vsel %vm1646, %v1633, %v1636
        %v1655 = vsel %vm1649, %v1642, 920167782
        %v1656 = vsel %vm1648, %v1639, %v1655
        %v1657 = vsel %vm1647, %v1654, %v1656
        %v1658 = vsel %vm1646, %v1636, %v1639
        %v1659 = vsel %vm1649, %v1645, 1326507024
        %v1660 = vsel %vm1648, %v1642, %v1659
        %v1661 = vsel %vm1647, %v1658, %v1660
        %v1662 = vshll.u32 %v1622, 8
        %v1663 = vand.u32 %v1662, 65535
        %v1664 = vshrl.u32 %v1662, 16
        %v1665 = vand.u32 %v1661, 65535
        %v1666 = vshrl.u32 %v1661, 16
        %v1667 = vmul.u32 %v1663, %v1665
        %v1668 = vmul.u32 %v1663, %v1666
        %v1669 = vmul.u32 %v1664, %v1665
        %v1670 = vmul.u32 %v1664, %v1666
        %v1671 = vshll.u32 %v1668, 16
        %v1672 = vshrl.u32 %v1668, 16
        %v1673 = vshll.u32 %v1669, 16
        %v1674 = vshrl.u32 %v1669, 16
        %vm1675 = vc.u32 %v1667, %v1671
        %v1676 = vsel %vm1675, 1, 0
        %v1677 = vadd.s32 %v1667, %v1671
        %v1678 = vadd.s32 %v1670, %v1676
        %vm1679 = vc.u32 %v1677, %v1673
        %v1680 = vsel %vm1679, 1, 0
        %v1681 = vadd.s32 %v1677, %v1673
        %v1682 = vadd.s32 %v1678, %v1680
        %v1683 = vadd.s32 %v1682, %v1672
        %v1684 = vadd.s32 %v1683, %v1674
        %v1685 = vand.u32 %v1662, 65535
        %v1686 = vshrl.u32 %v1662, 16
        %v1687 = vand.u32 %v1657, 65535
        %v1688 = vshrl.u32 %v1657, 16
        %v1689 = vmul.u32 %v1685, %v1687
        %v1690 = vmul.u32 %v1685, %v1688
        %v1691 = vmul.u32 %v1686, %v1687
        %v1692 = vmul.u32 %v1686, %v1688
        %v1693 = vshll.u32 %v1690, 16
        %v1694 = vshrl.u32 %v1690, 16
        %v1695 = vshll.u32 %v1691, 16
        %v1696 = vshrl.u32 %v1691, 16
        %vm1697 = vc.u32 %v1689, %v1693
        %v1698 = vsel %vm1697, 1, 0
        %v1699 = vadd.s32 %v1689, %v1693
        %v1700 = vadd.s32 %v1692, %v1698
        %vm1701 = vc.u32 %v1699, %v1695
        %v1702 = vsel %vm1701, 1, 0
        %v1703 = vadd.s32 %v1699, %v1695
        %v1704 = vadd.s32 %v1700, %v1702
        %v1705 = vadd.s32 %v1704, %v1694
        %v1706 = vadd.s32 %v1705, %v1696
        %v1707 = vmul.u32 %v1662, %v1653
        %v1708 = vadd.s32 %v1684, %v1703
        %vm1709 = vc.u32 %v1684, %v1703
        %v1710 = vadd.s32 %v1706, 1
        %v1711 = vsel %vm1709, %v1710, %v1706
        %v1712 = vadd.s32 %v1707, %v1711
        %v1713 = vadd.s32 %v1712, 536870912
        %v1714 = vshrl.u32 %v1713, 30
        %v1715 = vshll.u32 %v1714, 30
        %v1716 = vsub.s32 %v1712, %v1715
        %vm1717 = vcmp.lt.s32.totalorder %v1716, 0
        %v1718 = vsub.s32 0, %v1716
        %v1719 = vsel %vm1717, %v1718, %v1716
        %v1720 = vclz %v1719
        %v1721 = vsub.s32 %v1720, 2
        %vm1722 = vcmp.gt.s32.totalorder 0, %v1721
        %v1723 = vsel %vm1722, 0, %v1721
        %v1724 = vsub.s32 32, %v1723
        %v1725 = vshll.u32 %v1716, %v1723
        %v1726 = vshrl.u32 %v1708, %v1724
        %v1727 = vor.u32 %v1725, %v1726
        %v1728 = vsub.s32 4294967266, %v1723
        %v1729 = vadd.s32 %v1728, 127
        %v1730 = vshll.u32 %v1729, 23
        %v1731 = vor.u32 4788187, %v1730
        %v1732 = vand.u32 2147483647, %v1731
        %v1734 = vcvt.s32.f32 %v1727
        %v1735 = vmul.f32 %v1734, %v1732
        %v1736 = vxor.u32 %v1735, 2147483648
        %v1737 = vsel %vm1616, %v1736, %v1735
        %v1738 = vsub.s32 4, %v1714
        %v1739 = vsel %vm1616, %v1738, %v1714
        %v1740 = vsel %vm1615, %v658, %v1737
        %v1741 = vsel %vm1615, 0, %v1739
        %v1742 = vmul.f32 %v1740, %v1740
        %v1743 = vmul.f32 %v1742, -0.001358992
        %v1744 = vadd.f32 %v1743, 0.041655596
        %v1745 = vmul.f32 %v1742, %v1744
        %v1746 = vadd.f32 %v1745, -0.4999988
        %v1747 = vmul.f32 %v1742, %v1746
        %v1748 = vadd.f32 1.0, %v1747
        %v1749 = vmul.f32 %v1740, %v1740
        %v1750 = vmul.f32 %v1749, -0.00019511016
        %v1751 = vadd.f32 %v1750, 0.008332121
        %v1752 = vmul.f32 %v1749, %v1751
        %v1753 = vadd.f32 %v1752, -0.16666654
        %v1754 = vmul.f32 %v1749, %v1753
        %v1755 = vadd.f32 %v1754, 1.0
        %v1756 = vmul.f32 %v1755, %v1740
        %vm1757 = vweird.f32 %v658
        %v1758 = vadd.s32 %v1741, 3
        %v1759 = vand.u32 %v1758, 3
        %vm1760 = vcmp.lt.s32.totalorder %v1759, 2
        %vm1761 = vcmp.eq.s32.totalorder %v1759, 0
        %v1762 = vxor.u32 %v1756, 2147483648
        %v1763 = vsel %vm1761, %v1748, %v1762
        %vm1764 = vcmp.eq.s32.totalorder %v1759, 2
        %v1765 = vxor.u32 %v1748, 2147483648
        %v1766 = vsel %vm1764, %v1765, %v1756
        %v1767 = vsel %vm1760, %v1763, %v1766
        %v1768 = vsel %vm1757, nan, %v1767
        %v1769 = vand.u32 2147483647, %v659
        %vm1770 = vcmp.le.f32.partialorder %v1769, 0.7853982
        %vm1771 = vcmp.lt.s32.totalorder %v659, 0
        %v1772 = vand.u32 %v659, 2139095040
        %v1773 = vshrl.u32 %v1772, 23
        %v1774 = vsub.s32 %v1773, 127
        %v1775 = vand.u32 2147483647, %v659
        %v1776 = vand.u32 %v1775, 8388607
        %v1777 = vor.u32 %v1776, 8388608
        %v1778 = vsub.s32 0, %v1777
        %v1779 = vadd.s32 %v1774, 1
        %vm1780 = vcmp.gt.s32.totalorder %v1779, 0
        %v1781 = vsel %vm1780, %v1779, 0
        %v1782 = vshrl.u32 %v1781, 5
        %v1783 = vand.u32 %v1781, 31
        %v1784 = vsub.s32 32, %v1783
        %v1785 = vshrl.u32 683565275, %v1784
        %v1786 = vshll.u32 683565275, %v1783
        %v1787 = vshrl.u32 2475754826, %v1784
        %v1788 = vor.u32 %v1786, %v1787
        %v1789 = vshll.u32 2475754826, %v1783
        %v1790 = vshrl.u32 2131351028, %v1784
        %v1791 = vor.u32 %v1789, %v1790
        %v1792 = vshll.u32 2131351028, %v1783
        %v1793 = vshrl.u32 2102212464, %v1784
        %v1794 = vor.u32 %v1792, %v1793
        %v1795 = vshll.u32 2102212464, %v1783
        %v1796 = vshrl.u32 920167782, %v1784
        %v1797 = vor.u32 %v1795, %v1796
        %v1798 = vshll.u32 920167782, %v1783
        %v1799 = vshrl.u32 1326507024, %v1784
        %v1800 = vor.u32 %v1798, %v1799
        %vm1801 = vcmp.lt.s32.totalorder %v1782, 1
        %vm1802 = vcmp.lt.s32.totalorder %v1782, 2
        %vm1803 = vcmp.lt.s32.totalorder %v1782, 3
        %vm1804 = vcmp.lt.s32.totalorder %v1782, 4
        %v1805 = vsel %vm1801, %v1785, %v1788
        %v1806 = vsel %vm1804, %v1794, 2102212464
        %v1807 = vsel %vm1803, %v1791, %v1806
        %v1808 = vsel %vm1802, %v1805, %v1807
        %v1809 = vsel %vm1801, %v1788, %v1791
        %v1810 = vsel %vm1804, %v1797, 920167782
        %v1811 = vsel %vm1803, %v1794, %v1810
        %v1812 = vsel %vm1802, %v1809, %v1811
        %v1813 = vsel %vm1801, %v1791, %v1794
        %v1814 = vsel %vm1804, %v1800, 1326507024
        %v1815 = vsel %vm1803, %v1797, %v1814
        %v1816 = vsel %vm1802, %v1813, %v1815
        %v1817 = vshll.u32 %v1777, 8
        %v1818 = vand.u32 %v1817, 65535
        %v1819 = vshrl.u32 %v1817, 16
        %v1820 = vand.u32 %v1816, 65535
        %v1821 = vshrl.u32 %v1816, 16
        %v1822 = vmul.u32 %v1818, %v1820
        %v1823 = vmul.u32 %v1818, %v1821
        %v1824 = vmul.u32 %v1819, %v1820
        %v1825 = vmul.u32 %v1819, %v1821
        %v1826 = vshll.u32 %v1823, 16
        %v1827 = vshrl.u32 %v1823, 16
        %v1828 = vshll.u32 %v1824, 16
        %v1829 = vshrl.u32 %v1824, 16
        %vm1830 = vc.u32 %v1822, %v1826
        %v1831 = vsel %vm1830, 1, 0
        %v1832 = vadd.s32 %v1822, %v1826
        %v1833 = vadd.s32 %v1825, %v1831
        %vm1834 = vc.u32 %v1832, %v1828
        %v1835 = vsel %vm1834, 1, 0
        %v1836 = vadd.s32 %v1832, %v1828
        %v1837 = vadd.s32 %v1833, %v1835
        %v1838 = vadd.s32 %v1837, %v1827
        %v1839 = vadd.s32 %v1838, %v1829
        %v1840 = vand.u32 %v1817, 65535
        %v1841 = vshrl.u32 %v1817, 16
        %v1842 = vand.u32 %v1812, 65535
        %v1843 = vshrl.u32 %v1812, 16
        %v1844 = vmul.u32 %v1840, %v1842
        %v1845 = vmul.u32 %v1840, %v1843
        %v1846 = vmul.u32 %v1841, %v1842
        %v1847 = vmul.u32 %v1841, %v1843
        %v1848 = vshll.u32 %v1845, 16
        %v1849 = vshrl.u32 %v1845, 16
        %v1850 = vshll.u32 %v1846, 16
        %v1851 = vshrl.u32 %v1846, 16
        %vm1852 = vc.u32 %v1844, %v1848
        %v1853 = vsel %vm1852, 1, 0
        %v1854 = vadd.s32 %v1844, %v1848
        %v1855 = vadd.s32 %v1847, %v1853
        %vm1856 = vc.u32 %v1854, %v1850
        %v1857 = vsel %vm1856, 1, 0
        %v1858 = vadd.s32 %v1854, %v1850
        %v1859 = vadd.s32 %v1855, %v1857
        %v1860 = vadd.s32 %v1859, %v1849
        %v1861 = vadd.s32 %v1860, %v1851
        %v1862 = vmul.u32 %v1817, %v1808
        %v1863 = vadd.s32 %v1839, %v1858
        %vm1864 = vc.u32 %v1839, %v1858
        %v1865 = vadd.s32 %v1861, 1
        %v1866 = vsel %vm1864, %v1865, %v1861
        %v1867 = vadd.s32 %v1862, %v1866
        %v1868 = vadd.s32 %v1867, 536870912
        %v1869 = vshrl.u32 %v1868, 30
        %v1870 = vshll.u32 %v1869, 30
        %v1871 = vsub.s32 %v1867, %v1870
        %vm1872 = vcmp.lt.s32.totalorder %v1871, 0
        %v1873 = vsub.s32 0, %v1871
        %v1874 = vsel %vm1872, %v1873, %v1871
        %v1875 = vclz %v1874
        %v1876 = vsub.s32 %v1875, 2
        %vm1877 = vcmp.gt.s32.totalorder 0, %v1876
        %v1878 = vsel %vm1877, 0, %v1876
        %v1879 = vsub.s32 32, %v1878
        %v1880 = vshll.u32 %v1871, %v1878
        %v1881 = vshrl.u32 %v1863, %v1879
        %v1882 = vor.u32 %v1880, %v1881
        %v1883 = vsub.s32 4294967266, %v1878
        %v1884 = vadd.s32 %v1883, 127
        %v1885 = vshll.u32 %v1884, 23
        %v1886 = vor.u32 4788187, %v1885
        %v1887 = vand.u32 2147483647, %v1886
        %v1889 = vcvt.s32.f32 %v1882
        %v1890 = vmul.f32 %v1889, %v1887
        %v1891 = vxor.u32 %v1890, 2147483648
        %v1892 = vsel %vm1771, %v1891, %v1890
        %v1893 = vsub.s32 4, %v1869
        %v1894 = vsel %vm1771, %v1893, %v1869
        %v1895 = vsel %vm1770, %v659, %v1892
        %v1896 = vsel %vm1770, 0, %v1894
        %v1897 = vmul.f32 %v1895, %v1895
        %v1898 = vmul.f32 %v1897, -0.001358992
        %v1899 = vadd.f32 %v1898, 0.041655596
        %v1900 = vmul.f32 %v1897, %v1899
        %v1901 = vadd.f32 %v1900, -0.4999988
        %v1902 = vmul.f32 %v1897, %v1901
        %v1903 = vadd.f32 1.0, %v1902
        %v1904 = vmul.f32 %v1895, %v1895
        %v1905 = vmul.f32 %v1904, -0.00019511016
        %v1906 = vadd.f32 %v1905, 0.008332121
        %v1907 = vmul.f32 %v1904, %v1906
        %v1908 = vadd.f32 %v1907, -0.16666654
        %v1909 = vmul.f32 %v1904, %v1908
        %v1910 = vadd.f32 %v1909, 1.0
        %v1911 = vmul.f32 %v1910, %v1895
        %vm1912 = vweird.f32 %v659
        %v1913 = vadd.s32 %v1896, 3
        %v1914 = vand.u32 %v1913, 3
        %vm1915 = vcmp.lt.s32.totalorder %v1914, 2
        %vm1916 = vcmp.eq.s32.totalorder %v1914, 0
        %v1917 = vxor.u32 %v1911, 2147483648
        %v1918 = vsel %vm1916, %v1903, %v1917
        %vm1919 = vcmp.eq.s32.totalorder %v1914, 2
        %v1920 = vxor.u32 %v1903, 2147483648
        %v1921 = vsel %vm1919, %v1920, %v1911
        %v1922 = vsel %vm1915, %v1918, %v1921
        %v1923 = vsel %vm1912, nan, %v1922
        %v1924 = vand.u32 2147483647, %v660
        %vm1925 = vcmp.le.f32.partialorder %v1924, 0.7853982
        %vm1926 = vcmp.lt.s32.totalorder %v660, 0
        %v1927 = vand.u32 %v660, 2139095040
        %v1928 = vshrl.u32 %v1927, 23
        %v1929 = vsub.s32 %v1928, 127
        %v1930 = vand.u32 2147483647, %v660
        %v1931 = vand.u32 %v1930, 8388607
        %v1932 = vor.u32 %v1931, 8388608
        %v1933 = vsub.s32 0, %v1932
        %v1934 = vadd.s32 %v1929, 1
        %vm1935 = vcmp.gt.s32.totalorder %v1934, 0
        %v1936 = vsel %vm1935, %v1934, 0
        %v1937 = vshrl.u32 %v1936, 5
        %v1938 = vand.u32 %v1936, 31
        %v1939 = vsub.s32 32, %v1938
        %v1940 = vshrl.u32 683565275, %v1939
        %v1941 = vshll.u32 683565275, %v1938
        %v1942 = vshrl.u32 2475754826, %v1939
        %v1943 = vor.u32 %v1941, %v1942
        %v1944 = vshll.u32 2475754826, %v1938
        %v1945 = vshrl.u32 2131351028, %v1939
        %v1946 = vor.u32 %v1944, %v1945
        %v1947 = vshll.u32 2131351028, %v1938
        %v1948 = vshrl.u32 2102212464, %v1939
        %v1949 = vor.u32 %v1947, %v1948
        %v1950 = vshll.u32 2102212464, %v1938
        %v1951 = vshrl.u32 920167782, %v1939
        %v1952 = vor.u32 %v1950, %v1951
        %v1953 = vshll.u32 920167782, %v1938
        %v1954 = vshrl.u32 1326507024, %v1939
        %v1955 = vor.u32 %v1953, %v1954
        %vm1956 = vcmp.lt.s32.totalorder %v1937, 1
        %vm1957 = vcmp.lt.s32.totalorder %v1937, 2
        %vm1958 = vcmp.lt.s32.totalorder %v1937, 3
        %vm1959 = vcmp.lt.s32.totalorder %v1937, 4
        %v1960 = vsel %vm1956, %v1940, %v1943
        %v1961 = vsel %vm1959, %v1949, 2102212464
        %v1962 = vsel %vm1958, %v1946, %v1961
        %v1963 = vsel %vm1957, %v1960, %v1962
        %v1964 = vsel %vm1956, %v1943, %v1946
        %v1965 = vsel %vm1959, %v1952, 920167782
        %v1966 = vsel %vm1958, %v1949, %v1965
        %v1967 = vsel %vm1957, %v1964, %v1966
        %v1968 = vsel %vm1956, %v1946, %v1949
        %v1969 = vsel %vm1959, %v1955, 1326507024
        %v1970 = vsel %vm1958, %v1952, %v1969
        %v1971 = vsel %vm1957, %v1968, %v1970
        %v1972 = vshll.u32 %v1932, 8
        %v1973 = vand.u32 %v1972, 65535
        %v1974 = vshrl.u32 %v1972, 16
        %v1975 = vand.u32 %v1971, 65535
        %v1976 = vshrl.u32 %v1971, 16
        %v1977 = vmul.u32 %v1973, %v1975
        %v1978 = vmul.u32 %v1973, %v1976
        %v1979 = vmul.u32 %v1974, %v1975
        %v1980 = vmul.u32 %v1974, %v1976
        %v1981 = vshll.u32 %v1978, 16
        %v1982 = vshrl.u32 %v1978, 16
        %v1983 = vshll.u32 %v1979, 16
        %v1984 = vshrl.u32 %v1979, 16
        %vm1985 = vc.u32 %v1977, %v1981
        %v1986 = vsel %vm1985, 1, 0
        %v1987 = vadd.s32 %v1977, %v1981
        %v1988 = vadd.s32 %v1980, %v1986
        %vm1989 = vc.u32 %v1987, %v1983
        %v1990 = vsel %vm1989, 1, 0
        %v1991 = vadd.s32 %v1987, %v1983
        %v1992 = vadd.s32 %v1988, %v1990
        %v1993 = vadd.s32 %v1992, %v1982
        %v1994 = vadd.s32 %v1993, %v1984
        %v1995 = vand.u32 %v1972, 65535
        %v1996 = vshrl.u32 %v1972, 16
        %v1997 = vand.u32 %v1967, 65535
        %v1998 = vshrl.u32 %v1967, 16
        %v1999 = vmul.u32 %v1995, %v1997
        %v2000 = vmul.u32 %v1995, %v1998
        %v2001 = vmul.u32 %v1996, %v1997
        %v2002 = vmul.u32 %v1996, %v1998
        %v2003 = vshll.u32 %v2000, 16
        %v2004 = vshrl.u32 %v2000, 16
        %v2005 = vshll.u32 %v2001, 16
        %v2006 = vshrl.u32 %v2001, 16
        %vm2007 = vc.u32 %v1999, %v2003
        %v2008 = vsel %vm2007, 1, 0
        %v2009 = vadd.s32 %v1999, %v2003
        %v2010 = vadd.s32 %v2002, %v2008
        %vm2011 = vc.u32 %v2009, %v2005
        %v2012 = vsel %vm2011, 1, 0
        %v2013 = vadd.s32 %v2009, %v2005
        %v2014 = vadd.s32 %v2010, %v2012
        %v2015 = vadd.s32 %v2014, %v2004
        %v2016 = vadd.s32 %v2015, %v2006
        %v2017 = vmul.u32 %v1972, %v1963
        %v2018 = vadd.s32 %v1994, %v2013
        %vm2019 = vc.u32 %v1994, %v2013
        %v2020 = vadd.s32 %v2016, 1
        %v2021 = vsel %vm2019, %v2020, %v2016
        %v2022 = vadd.s32 %v2017, %v2021
        %v2023 = vadd.s32 %v2022, 536870912
        %v2024 = vshrl.u32 %v2023, 30
        %v2025 = vshll.u32 %v2024, 30
        %v2026 = vsub.s32 %v2022, %v2025
        %vm2027 = vcmp.lt.s32.totalorder %v2026, 0
        %v2028 = vsub.s32 0, %v2026
        %v2029 = vsel %vm2027, %v2028, %v2026
        %v2030 = vclz %v2029
        %v2031 = vsub.s32 %v2030, 2
        %vm2032 = vcmp.gt.s32.totalorder 0, %v2031
        %v2033 = vsel %vm2032, 0, %v2031
        %v2034 = vsub.s32 32, %v2033
        %v2035 = vshll.u32 %v2026, %v2033
        %v2036 = vshrl.u32 %v2018, %v2034
        %v2037 = vor.u32 %v2035, %v2036
        %v2038 = vsub.s32 4294967266, %v2033
        %v2039 = vadd.s32 %v2038, 127
        %v2040 = vshll.u32 %v2039, 23
        %v2041 = vor.u32 4788187, %v2040
        %v2042 = vand.u32 2147483647, %v2041
        %v2044 = vcvt.s32.f32 %v2037
        %v2045 = vmul.f32 %v2044, %v2042
        %v2046 = vxor.u32 %v2045, 2147483648
        %v2047 = vsel %vm1926, %v2046, %v2045
        %v2048 = vsub.s32 4, %v2024
        %v2049 = vsel %vm1926, %v2048, %v2024
        %v2050 = vsel %vm1925, %v660, %v2047
        %v2051 = vsel %vm1925, 0, %v2049
        %v2052 = vmul.f32 %v2050, %v2050
        %v2053 = vmul.f32 %v2052, -0.001358992
        %v2054 = vadd.f32 %v2053, 0.041655596
        %v2055 = vmul.f32 %v2052, %v2054
        %v2056 = vadd.f32 %v2055, -0.4999988
        %v2057 = vmul.f32 %v2052, %v2056
        %v2058 = vadd.f32 1.0, %v2057
        %v2059 = vmul.f32 %v2050, %v2050
        %v2060 = vmul.f32 %v2059, -0.00019511016
        %v2061 = vadd.f32 %v2060, 0.008332121
        %v2062 = vmul.f32 %v2059, %v2061
        %v2063 = vadd.f32 %v2062, -0.16666654
        %v2064 = vmul.f32 %v2059, %v2063
        %v2065 = vadd.f32 %v2064, 1.0
        %v2066 = vmul.f32 %v2065, %v2050
        %vm2067 = vweird.f32 %v660
        %v2068 = vadd.s32 %v2051, 3
        %v2069 = vand.u32 %v2068, 3
        %vm2070 = vcmp.lt.s32.totalorder %v2069, 2
        %vm2071 = vcmp.eq.s32.totalorder %v2069, 0
        %v2072 = vxor.u32 %v2066, 2147483648
        %v2073 = vsel %vm2071, %v2058, %v2072
        %vm2074 = vcmp.eq.s32.totalorder %v2069, 2
        %v2075 = vxor.u32 %v2058, 2147483648
        %v2076 = vsel %vm2074, %v2075, %v2066
        %v2077 = vsel %vm2070, %v2073, %v2076
        %v2078 = vsel %vm2067, nan, %v2077
        %v2079 = vand.u32 2147483647, %v661
        %vm2080 = vcmp.le.f32.partialorder %v2079, 0.7853982
        %vm2081 = vcmp.lt.s32.totalorder %v661, 0
        %v2082 = vand.u32 %v661, 2139095040
        %v2083 = vshrl.u32 %v2082, 23
        %v2084 = vsub.s32 %v2083, 127
        %v2085 = vand.u32 2147483647, %v661
        %v2086 = vand.u32 %v2085, 8388607
        %v2087 = vor.u32 %v2086, 8388608
        %v2088 = vsub.s32 0, %v2087
        %v2089 = vadd.s32 %v2084, 1
        %vm2090 = vcmp.gt.s32.totalorder %v2089, 0
        %v2091 = vsel %vm2090, %v2089, 0
        %v2092 = vshrl.u32 %v2091, 5
        %v2093 = vand.u32 %v2091, 31
        %v2094 = vsub.s32 32, %v2093
        %v2095 = vshrl.u32 683565275, %v2094
        %v2096 = vshll.u32 683565275, %v2093
        %v2097 = vshrl.u32 2475754826, %v2094
        %v2098 = vor.u32 %v2096, %v2097
        %v2099 = vshll.u32 2475754826, %v2093
        %v2100 = vshrl.u32 2131351028, %v2094
        %v2101 = vor.u32 %v2099, %v2100
        %v2102 = vshll.u32 2131351028, %v2093
        %v2103 = vshrl.u32 2102212464, %v2094
        %v2104 = vor.u32 %v2102, %v2103
        %v2105 = vshll.u32 2102212464, %v2093
        %v2106 = vshrl.u32 920167782, %v2094
        %v2107 = vor.u32 %v2105, %v2106
        %v2108 = vshll.u32 920167782, %v2093
        %v2109 = vshrl.u32 1326507024, %v2094
        %v2110 = vor.u32 %v2108, %v2109
        %vm2111 = vcmp.lt.s32.totalorder %v2092, 1
        %vm2112 = vcmp.lt.s32.totalorder %v2092, 2
        %vm2113 = vcmp.lt.s32.totalorder %v2092, 3
        %vm2114 = vcmp.lt.s32.totalorder %v2092, 4
        %v2115 = vsel %vm2111, %v2095, %v2098
        %v2116 = vsel %vm2114, %v2104, 2102212464
        %v2117 = vsel %vm2113, %v2101, %v2116
        %v2118 = vsel %vm2112, %v2115, %v2117
        %v2119 = vsel %vm2111, %v2098, %v2101
        %v2120 = vsel %vm2114, %v2107, 920167782
        %v2121 = vsel %vm2113, %v2104, %v2120
        %v2122 = vsel %vm2112, %v2119, %v2121
        %v2123 = vsel %vm2111, %v2101, %v2104
        %v2124 = vsel %vm2114, %v2110, 1326507024
        %v2125 = vsel %vm2113, %v2107, %v2124
        %v2126 = vsel %vm2112, %v2123, %v2125
        %v2127 = vshll.u32 %v2087, 8
        %v2128 = vand.u32 %v2127, 65535
        %v2129 = vshrl.u32 %v2127, 16
        %v2130 = vand.u32 %v2126, 65535
        %v2131 = vshrl.u32 %v2126, 16
        %v2132 = vmul.u32 %v2128, %v2130
        %v2133 = vmul.u32 %v2128, %v2131
        %v2134 = vmul.u32 %v2129, %v2130
        %v2135 = vmul.u32 %v2129, %v2131
        %v2136 = vshll.u32 %v2133, 16
        %v2137 = vshrl.u32 %v2133, 16
        %v2138 = vshll.u32 %v2134, 16
        %v2139 = vshrl.u32 %v2134, 16
        %vm2140 = vc.u32 %v2132, %v2136
        %v2141 = vsel %vm2140, 1, 0
        %v2142 = vadd.s32 %v2132, %v2136
        %v2143 = vadd.s32 %v2135, %v2141
        %vm2144 = vc.u32 %v2142, %v2138
        %v2145 = vsel %vm2144, 1, 0
        %v2146 = vadd.s32 %v2142, %v2138
        %v2147 = vadd.s32 %v2143, %v2145
        %v2148 = vadd.s32 %v2147, %v2137
        %v2149 = vadd.s32 %v2148, %v2139
        %v2150 = vand.u32 %v2127, 65535
        %v2151 = vshrl.u32 %v2127, 16
        %v2152 = vand.u32 %v2122, 65535
        %v2153 = vshrl.u32 %v2122, 16
        %v2154 = vmul.u32 %v2150, %v2152
        %v2155 = vmul.u32 %v2150, %v2153
        %v2156 = vmul.u32 %v2151, %v2152
        %v2157 = vmul.u32 %v2151, %v2153
        %v2158 = vshll.u32 %v2155, 16
        %v2159 = vshrl.u32 %v2155, 16
        %v2160 = vshll.u32 %v2156, 16
        %v2161 = vshrl.u32 %v2156, 16
        %vm2162 = vc.u32 %v2154, %v2158
        %v2163 = vsel %vm2162, 1, 0
        %v2164 = vadd.s32 %v2154, %v2158
        %v2165 = vadd.s32 %v2157, %v2163
        %vm2166 = vc.u32 %v2164, %v2160
        %v2167 = vsel %vm2166, 1, 0
        %v2168 = vadd.s32 %v2164, %v2160
        %v2169 = vadd.s32 %v2165, %v2167
        %v2170 = vadd.s32 %v2169, %v2159
        %v2171 = vadd.s32 %v2170, %v2161
        %v2172 = vmul.u32 %v2127, %v2118
        %v2173 = vadd.s32 %v2149, %v2168
        %vm2174 = vc.u32 %v2149, %v2168
        %v2175 = vadd.s32 %v2171, 1
        %v2176 = vsel %vm2174, %v2175, %v2171
        %v2177 = vadd.s32 %v2172, %v2176
        %v2178 = vadd.s32 %v2177, 536870912
        %v2179 = vshrl.u32 %v2178, 30
        %v2180 = vshll.u32 %v2179, 30
        %v2181 = vsub.s32 %v2177, %v2180
        %vm2182 = vcmp.lt.s32.totalorder %v2181, 0
        %v2183 = vsub.s32 0, %v2181
        %v2184 = vsel %vm2182, %v2183, %v2181
        %v2185 = vclz %v2184
        %v2186 = vsub.s32 %v2185, 2
        %vm2187 = vcmp.gt.s32.totalorder 0, %v2186
        %v2188 = vsel %vm2187, 0, %v2186
        %v2189 = vsub.s32 32, %v2188
        %v2190 = vshll.u32 %v2181, %v2188
        %v2191 = vshrl.u32 %v2173, %v2189
        %v2192 = vor.u32 %v2190, %v2191
        %v2193 = vsub.s32 4294967266, %v2188
        %v2194 = vadd.s32 %v2193, 127
        %v2195 = vshll.u32 %v2194, 23
        %v2196 = vor.u32 4788187, %v2195
        %v2197 = vand.u32 2147483647, %v2196
        %v2199 = vcvt.s32.f32 %v2192
        %v2200 = vmul.f32 %v2199, %v2197
        %v2201 = vxor.u32 %v2200, 2147483648
        %v2202 = vsel %vm2081, %v2201, %v2200
        %v2203 = vsub.s32 4, %v2179
        %v2204 = vsel %vm2081, %v2203, %v2179
        %v2205 = vsel %vm2080, %v661, %v2202
        %v2206 = vsel %vm2080, 0, %v2204
        %v2207 = vmul.f32 %v2205, %v2205
        %v2208 = vmul.f32 %v2207, -0.001358992
        %v2209 = vadd.f32 %v2208, 0.041655596
        %v2210 = vmul.f32 %v2207, %v2209
        %v2211 = vadd.f32 %v2210, -0.4999988
        %v2212 = vmul.f32 %v2207, %v2211
        %v2213 = vadd.f32 1.0, %v2212
        %v2214 = vmul.f32 %v2205, %v2205
        %v2215 = vmul.f32 %v2214, -0.00019511016
        %v2216 = vadd.f32 %v2215, 0.008332121
        %v2217 = vmul.f32 %v2214, %v2216
        %v2218 = vadd.f32 %v2217, -0.16666654
        %v2219 = vmul.f32 %v2214, %v2218
        %v2220 = vadd.f32 %v2219, 1.0
        %v2221 = vmul.f32 %v2220, %v2205
        %vm2222 = vweird.f32 %v661
        %v2223 = vadd.s32 %v2206, 3
        %v2224 = vand.u32 %v2223, 3
        %vm2225 = vcmp.lt.s32.totalorder %v2224, 2
        %vm2226 = vcmp.eq.s32.totalorder %v2224, 0
        %v2227 = vxor.u32 %v2221, 2147483648
        %v2228 = vsel %vm2226, %v2213, %v2227
        %vm2229 = vcmp.eq.s32.totalorder %v2224, 2
        %v2230 = vxor.u32 %v2213, 2147483648
        %v2231 = vsel %vm2229, %v2230, %v2221
        %v2232 = vsel %vm2225, %v2228, %v2231
        %v2233 = vsel %vm2222, nan, %v2232
        %v2234 = vand.u32 2147483647, %v662
        %vm2235 = vcmp.le.f32.partialorder %v2234, 0.7853982
        %vm2236 = vcmp.lt.s32.totalorder %v662, 0
        %v2237 = vand.u32 %v662, 2139095040
        %v2238 = vshrl.u32 %v2237, 23
        %v2239 = vsub.s32 %v2238, 127
        %v2240 = vand.u32 2147483647, %v662
        %v2241 = vand.u32 %v2240, 8388607
        %v2242 = vor.u32 %v2241, 8388608
        %v2243 = vsub.s32 0, %v2242
        %v2244 = vadd.s32 %v2239, 1
        %vm2245 = vcmp.gt.s32.totalorder %v2244, 0
        %v2246 = vsel %vm2245, %v2244, 0
        %v2247 = vshrl.u32 %v2246, 5
        %v2248 = vand.u32 %v2246, 31
        %v2249 = vsub.s32 32, %v2248
        %v2250 = vshrl.u32 683565275, %v2249
        %v2251 = vshll.u32 683565275, %v2248
        %v2252 = vshrl.u32 2475754826, %v2249
        %v2253 = vor.u32 %v2251, %v2252
        %v2254 = vshll.u32 2475754826, %v2248
        %v2255 = vshrl.u32 2131351028, %v2249
        %v2256 = vor.u32 %v2254, %v2255
        %v2257 = vshll.u32 2131351028, %v2248
        %v2258 = vshrl.u32 2102212464, %v2249
        %v2259 = vor.u32 %v2257, %v2258
        %v2260 = vshll.u32 2102212464, %v2248
        %v2261 = vshrl.u32 920167782, %v2249
        %v2262 = vor.u32 %v2260, %v2261
        %v2263 = vshll.u32 920167782, %v2248
        %v2264 = vshrl.u32 1326507024, %v2249
        %v2265 = vor.u32 %v2263, %v2264
        %vm2266 = vcmp.lt.s32.totalorder %v2247, 1
        %vm2267 = vcmp.lt.s32.totalorder %v2247, 2
        %vm2268 = vcmp.lt.s32.totalorder %v2247, 3
        %vm2269 = vcmp.lt.s32.totalorder %v2247, 4
        %v2270 = vsel %vm2266, %v2250, %v2253
        %v2271 = vsel %vm2269, %v2259, 2102212464
        %v2272 = vsel %vm2268, %v2256, %v2271
        %v2273 = vsel %vm2267, %v2270, %v2272
        %v2274 = vsel %vm2266, %v2253, %v2256
        %v2275 = vsel %vm2269, %v2262, 920167782
        %v2276 = vsel %vm2268, %v2259, %v2275
        %v2277 = vsel %vm2267, %v2274, %v2276
        %v2278 = vsel %vm2266, %v2256, %v2259
        %v2279 = vsel %vm2269, %v2265, 1326507024
        %v2280 = vsel %vm2268, %v2262, %v2279
        %v2281 = vsel %vm2267, %v2278, %v2280
        %v2282 = vshll.u32 %v2242, 8
        %v2283 = vand.u32 %v2282, 65535
        %v2284 = vshrl.u32 %v2282, 16
        %v2285 = vand.u32 %v2281, 65535
        %v2286 = vshrl.u32 %v2281, 16
        %v2287 = vmul.u32 %v2283, %v2285
        %v2288 = vmul.u32 %v2283, %v2286
        %v2289 = vmul.u32 %v2284, %v2285
        %v2290 = vmul.u32 %v2284, %v2286
        %v2291 = vshll.u32 %v2288, 16
        %v2292 = vshrl.u32 %v2288, 16
        %v2293 = vshll.u32 %v2289, 16
        %v2294 = vshrl.u32 %v2289, 16
        %vm2295 = vc.u32 %v2287, %v2291
        %v2296 = vsel %vm2295, 1, 0
        %v2297 = vadd.s32 %v2287, %v2291
        %v2298 = vadd.s32 %v2290, %v2296
        %vm2299 = vc.u32 %v2297, %v2293
        %v2300 = vsel %vm2299, 1, 0
        %v2301 = vadd.s32 %v2297, %v2293
        %v2302 = vadd.s32 %v2298, %v2300
        %v2303 = vadd.s32 %v2302, %v2292
        %v2304 = vadd.s32 %v2303, %v2294
        %v2305 = vand.u32 %v2282, 65535
        %v2306 = vshrl.u32 %v2282, 16
        %v2307 = vand.u32 %v2277, 65535
        %v2308 = vshrl.u32 %v2277, 16
        %v2309 = vmul.u32 %v2305, %v2307
        %v2310 = vmul.u32 %v2305, %v2308
        %v2311 = vmul.u32 %v2306, %v2307
        %v2312 = vmul.u32 %v2306, %v2308
        %v2313 = vshll.u32 %v2310, 16
        %v2314 = vshrl.u32 %v2310, 16
        %v2315 = vshll.u32 %v2311, 16
        %v2316 = vshrl.u32 %v2311, 16
        %vm2317 = vc.u32 %v2309, %v2313
        %v2318 = vsel %vm2317, 1, 0
        %v2319 = vadd.s32 %v2309, %v2313
        %v2320 = vadd.s32 %v2312, %v2318
        %vm2321 = vc.u32 %v2319, %v2315
        %v2322 = vsel %vm2321, 1, 0
        %v2323 = vadd.s32 %v2319, %v2315
        %v2324 = vadd.s32 %v2320, %v2322
        %v2325 = vadd.s32 %v2324, %v2314
        %v2326 = vadd.s32 %v2325, %v2316
        %v2327 = vmul.u32 %v2282, %v2273
        %v2328 = vadd.s32 %v2304, %v2323
        %vm2329 = vc.u32 %v2304, %v2323
        %v2330 = vadd.s32 %v2326, 1
        %v2331 = vsel %vm2329, %v2330, %v2326
        %v2332 = vadd.s32 %v2327, %v2331
        %v2333 = vadd.s32 %v2332, 536870912
        %v2334 = vshrl.u32 %v2333, 30
        %v2335 = vshll.u32 %v2334, 30
        %v2336 = vsub.s32 %v2332, %v2335
        %vm2337 = vcmp.lt.s32.totalorder %v2336, 0
        %v2338 = vsub.s32 0, %v2336
        %v2339 = vsel %vm2337, %v2338, %v2336
        %v2340 = vclz %v2339
        %v2341 = vsub.s32 %v2340, 2
        %vm2342 = vcmp.gt.s32.totalorder 0, %v2341
        %v2343 = vsel %vm2342, 0, %v2341
        %v2344 = vsub.s32 32, %v2343
        %v2345 = vshll.u32 %v2336, %v2343
        %v2346 = vshrl.u32 %v2328, %v2344
        %v2347 = vor.u32 %v2345, %v2346
        %v2348 = vsub.s32 4294967266, %v2343
        %v2349 = vadd.s32 %v2348, 127
        %v2350 = vshll.u32 %v2349, 23
        %v2351 = vor.u32 4788187, %v2350
        %v2352 = vand.u32 2147483647, %v2351
        %v2354 = vcvt.s32.f32 %v2347
        %v2355 = vmul.f32 %v2354, %v2352
        %v2356 = vxor.u32 %v2355, 2147483648
        %v2357 = vsel %vm2236, %v2356, %v2355
        %v2358 = vsub.s32 4, %v2334
        %v2359 = vsel %vm2236, %v2358, %v2334
        %v2360 = vsel %vm2235, %v662, %v2357
        %v2361 = vsel %vm2235, 0, %v2359
        %v2362 = vmul.f32 %v2360, %v2360
        %v2363 = vmul.f32 %v2362, -0.001358992
        %v2364 = vadd.f32 %v2363, 0.041655596
        %v2365 = vmul.f32 %v2362, %v2364
        %v2366 = vadd.f32 %v2365, -0.4999988
        %v2367 = vmul.f32 %v2362, %v2366
        %v2368 = vadd.f32 1.0, %v2367
        %v2369 = vmul.f32 %v2360, %v2360
        %v2370 = vmul.f32 %v2369, -0.00019511016
        %v2371 = vadd.f32 %v2370, 0.008332121
        %v2372 = vmul.f32 %v2369, %v2371
        %v2373 = vadd.f32 %v2372, -0.16666654
        %v2374 = vmul.f32 %v2369, %v2373
        %v2375 = vadd.f32 %v2374, 1.0
        %v2376 = vmul.f32 %v2375, %v2360
        %vm2377 = vweird.f32 %v662
        %v2378 = vadd.s32 %v2361, 3
        %v2379 = vand.u32 %v2378, 3
        %vm2380 = vcmp.lt.s32.totalorder %v2379, 2
        %vm2381 = vcmp.eq.s32.totalorder %v2379, 0
        %v2382 = vxor.u32 %v2376, 2147483648
        %v2383 = vsel %vm2381, %v2368, %v2382
        %vm2384 = vcmp.eq.s32.totalorder %v2379, 2
        %v2385 = vxor.u32 %v2368, 2147483648
        %v2386 = vsel %vm2384, %v2385, %v2376
        %v2387 = vsel %vm2380, %v2383, %v2386
        %v2388 = vsel %vm2377, nan, %v2387
        %v2389 = vand.u32 2147483647, %v663
        %vm2390 = vcmp.le.f32.partialorder %v2389, 0.7853982
        %vm2391 = vcmp.lt.s32.totalorder %v663, 0
        %v2392 = vand.u32 %v663, 2139095040
        %v2393 = vshrl.u32 %v2392, 23
        %v2394 = vsub.s32 %v2393, 127
        %v2395 = vand.u32 2147483647, %v663
        %v2396 = vand.u32 %v2395, 8388607
        %v2397 = vor.u32 %v2396, 8388608
        %v2398 = vsub.s32 0, %v2397
        %v2399 = vadd.s32 %v2394, 1
        %vm2400 = vcmp.gt.s32.totalorder %v2399, 0
        %v2401 = vsel %vm2400, %v2399, 0
        %v2402 = vshrl.u32 %v2401, 5
        %v2403 = vand.u32 %v2401, 31
        %v2404 = vsub.s32 32, %v2403
        %v2405 = vshrl.u32 683565275, %v2404
        %v2406 = vshll.u32 683565275, %v2403
        %v2407 = vshrl.u32 2475754826, %v2404
        %v2408 = vor.u32 %v2406, %v2407
        %v2409 = vshll.u32 2475754826, %v2403
        %v2410 = vshrl.u32 2131351028, %v2404
        %v2411 = vor.u32 %v2409, %v2410
        %v2412 = vshll.u32 2131351028, %v2403
        %v2413 = vshrl.u32 2102212464, %v2404
        %v2414 = vor.u32 %v2412, %v2413
        %v2415 = vshll.u32 2102212464, %v2403
        %v2416 = vshrl.u32 920167782, %v2404
        %v2417 = vor.u32 %v2415, %v2416
        %v2418 = vshll.u32 920167782, %v2403
        %v2419 = vshrl.u32 1326507024, %v2404
        %v2420 = vor.u32 %v2418, %v2419
        %vm2421 = vcmp.lt.s32.totalorder %v2402, 1
        %vm2422 = vcmp.lt.s32.totalorder %v2402, 2
        %vm2423 = vcmp.lt.s32.totalorder %v2402, 3
        %vm2424 = vcmp.lt.s32.totalorder %v2402, 4
        %v2425 = vsel %vm2421, %v2405, %v2408
        %v2426 = vsel %vm2424, %v2414, 2102212464
        %v2427 = vsel %vm2423, %v2411, %v2426
        %v2428 = vsel %vm2422, %v2425, %v2427
        %v2429 = vsel %vm2421, %v2408, %v2411
        %v2430 = vsel %vm2424, %v2417, 920167782
        %v2431 = vsel %vm2423, %v2414, %v2430
        %v2432 = vsel %vm2422, %v2429, %v2431
        %v2433 = vsel %vm2421, %v2411, %v2414
        %v2434 = vsel %vm2424, %v2420, 1326507024
        %v2435 = vsel %vm2423, %v2417, %v2434
        %v2436 = vsel %vm2422, %v2433, %v2435
        %v2437 = vshll.u32 %v2397, 8
        %v2438 = vand.u32 %v2437, 65535
        %v2439 = vshrl.u32 %v2437, 16
        %v2440 = vand.u32 %v2436, 65535
        %v2441 = vshrl.u32 %v2436, 16
        %v2442 = vmul.u32 %v2438, %v2440
        %v2443 = vmul.u32 %v2438, %v2441
        %v2444 = vmul.u32 %v2439, %v2440
        %v2445 = vmul.u32 %v2439, %v2441
        %v2446 = vshll.u32 %v2443, 16
        %v2447 = vshrl.u32 %v2443, 16
        %v2448 = vshll.u32 %v2444, 16
        %v2449 = vshrl.u32 %v2444, 16
        %vm2450 = vc.u32 %v2442, %v2446
        %v2451 = vsel %vm2450, 1, 0
        %v2452 = vadd.s32 %v2442, %v2446
        %v2453 = vadd.s32 %v2445, %v2451
        %vm2454 = vc.u32 %v2452, %v2448
        %v2455 = vsel %vm2454, 1, 0
        %v2456 = vadd.s32 %v2452, %v2448
        %v2457 = vadd.s32 %v2453, %v2455
        %v2458 = vadd.s32 %v2457, %v2447
        %v2459 = vadd.s32 %v2458, %v2449
        %v2460 = vand.u32 %v2437, 65535
        %v2461 = vshrl.u32 %v2437, 16
        %v2462 = vand.u32 %v2432, 65535
        %v2463 = vshrl.u32 %v2432, 16
        %v2464 = vmul.u32 %v2460, %v2462
        %v2465 = vmul.u32 %v2460, %v2463
        %v2466 = vmul.u32 %v2461, %v2462
        %v2467 = vmul.u32 %v2461, %v2463
        %v2468 = vshll.u32 %v2465, 16
        %v2469 = vshrl.u32 %v2465, 16
        %v2470 = vshll.u32 %v2466, 16
        %v2471 = vshrl.u32 %v2466, 16
        %vm2472 = vc.u32 %v2464, %v2468
        %v2473 = vsel %vm2472, 1, 0
        %v2474 = vadd.s32 %v2464, %v2468
        %v2475 = vadd.s32 %v2467, %v2473
        %vm2476 = vc.u32 %v2474, %v2470
        %v2477 = vsel %vm2476, 1, 0
        %v2478 = vadd.s32 %v2474, %v2470
        %v2479 = vadd.s32 %v2475, %v2477
        %v2480 = vadd.s32 %v2479, %v2469
        %v2481 = vadd.s32 %v2480, %v2471
        %v2482 = vmul.u32 %v2437, %v2428
        %v2483 = vadd.s32 %v2459, %v2478
        %vm2484 = vc.u32 %v2459, %v2478
        %v2485 = vadd.s32 %v2481, 1
        %v2486 = vsel %vm2484, %v2485, %v2481
        %v2487 = vadd.s32 %v2482, %v2486
        %v2488 = vadd.s32 %v2487, 536870912
        %v2489 = vshrl.u32 %v2488, 30
        %v2490 = vshll.u32 %v2489, 30
        %v2491 = vsub.s32 %v2487, %v2490
        %vm2492 = vcmp.lt.s32.totalorder %v2491, 0
        %v2493 = vsub.s32 0, %v2491
        %v2494 = vsel %vm2492, %v2493, %v2491
        %v2495 = vclz %v2494
        %v2496 = vsub.s32 %v2495, 2
        %vm2497 = vcmp.gt.s32.totalorder 0, %v2496
        %v2498 = vsel %vm2497, 0, %v2496
        %v2499 = vsub.s32 32, %v2498
        %v2500 = vshll.u32 %v2491, %v2498
        %v2501 = vshrl.u32 %v2483, %v2499
        %v2502 = vor.u32 %v2500, %v2501
        %v2503 = vsub.s32 4294967266, %v2498
        %v2504 = vadd.s32 %v2503, 127
        %v2505 = vshll.u32 %v2504, 23
        %v2506 = vor.u32 4788187, %v2505
        %v2507 = vand.u32 2147483647, %v2506
        %v2509 = vcvt.s32.f32 %v2502
        %v2510 = vmul.f32 %v2509, %v2507
        %v2511 = vxor.u32 %v2510, 2147483648
        %v2512 = vsel %vm2391, %v2511, %v2510
        %v2513 = vsub.s32 4, %v2489
        %v2514 = vsel %vm2391, %v2513, %v2489
        %v2515 = vsel %vm2390, %v663, %v2512
        %v2516 = vsel %vm2390, 0, %v2514
        %v2517 = vmul.f32 %v2515, %v2515
        %v2518 = vmul.f32 %v2517, -0.001358992
        %v2519 = vadd.f32 %v2518, 0.041655596
        %v2520 = vmul.f32 %v2517, %v2519
        %v2521 = vadd.f32 %v2520, -0.4999988
        %v2522 = vmul.f32 %v2517, %v2521
        %v2523 = vadd.f32 1.0, %v2522
        %v2524 = vmul.f32 %v2515, %v2515
        %v2525 = vmul.f32 %v2524, -0.00019511016
        %v2526 = vadd.f32 %v2525, 0.008332121
        %v2527 = vmul.f32 %v2524, %v2526
        %v2528 = vadd.f32 %v2527, -0.16666654
        %v2529 = vmul.f32 %v2524, %v2528
        %v2530 = vadd.f32 %v2529, 1.0
        %v2531 = vmul.f32 %v2530, %v2515
        %vm2532 = vweird.f32 %v663
        %v2533 = vadd.s32 %v2516, 3
        %v2534 = vand.u32 %v2533, 3
        %vm2535 = vcmp.lt.s32.totalorder %v2534, 2
        %vm2536 = vcmp.eq.s32.totalorder %v2534, 0
        %v2537 = vxor.u32 %v2531, 2147483648
        %v2538 = vsel %vm2536, %v2523, %v2537
        %vm2539 = vcmp.eq.s32.totalorder %v2534, 2
        %v2540 = vxor.u32 %v2523, 2147483648
        %v2541 = vsel %vm2539, %v2540, %v2531
        %v2542 = vsel %vm2535, %v2538, %v2541
        %v2543 = vsel %vm2532, nan, %v2542
        %v2544 = vand.u32 2147483647, %v664
        %vm2545 = vcmp.le.f32.partialorder %v2544, 0.7853982
        %vm2546 = vcmp.lt.s32.totalorder %v664, 0
        %v2547 = vand.u32 %v664, 2139095040
        %v2548 = vshrl.u32 %v2547, 23
        %v2549 = vsub.s32 %v2548, 127
        %v2550 = vand.u32 2147483647, %v664
        %v2551 = vand.u32 %v2550, 8388607
        %v2552 = vor.u32 %v2551, 8388608
        %v2553 = vsub.s32 0, %v2552
        %v2554 = vadd.s32 %v2549, 1
        %vm2555 = vcmp.gt.s32.totalorder %v2554, 0
        %v2556 = vsel %vm2555, %v2554, 0
        %v2557 = vshrl.u32 %v2556, 5
        %v2558 = vand.u32 %v2556, 31
        %v2559 = vsub.s32 32, %v2558
        %v2560 = vshrl.u32 683565275, %v2559
        %v2561 = vshll.u32 683565275, %v2558
        %v2562 = vshrl.u32 2475754826, %v2559
        %v2563 = vor.u32 %v2561, %v2562
        %v2564 = vshll.u32 2475754826, %v2558
        %v2565 = vshrl.u32 2131351028, %v2559
        %v2566 = vor.u32 %v2564, %v2565
        %v2567 = vshll.u32 2131351028, %v2558
        %v2568 = vshrl.u32 2102212464, %v2559
        %v2569 = vor.u32 %v2567, %v2568
        %v2570 = vshll.u32 2102212464, %v2558
        %v2571 = vshrl.u32 920167782, %v2559
        %v2572 = vor.u32 %v2570, %v2571
        %v2573 = vshll.u32 920167782, %v2558
        %v2574 = vshrl.u32 1326507024, %v2559
        %v2575 = vor.u32 %v2573, %v2574
        %vm2576 = vcmp.lt.s32.totalorder %v2557, 1
        %vm2577 = vcmp.lt.s32.totalorder %v2557, 2
        %vm2578 = vcmp.lt.s32.totalorder %v2557, 3
        %vm2579 = vcmp.lt.s32.totalorder %v2557, 4
        %v2580 = vsel %vm2576, %v2560, %v2563
        %v2581 = vsel %vm2579, %v2569, 2102212464
        %v2582 = vsel %vm2578, %v2566, %v2581
        %v2583 = vsel %vm2577, %v2580, %v2582
        %v2584 = vsel %vm2576, %v2563, %v2566
        %v2585 = vsel %vm2579, %v2572, 920167782
        %v2586 = vsel %vm2578, %v2569, %v2585
        %v2587 = vsel %vm2577, %v2584, %v2586
        %v2588 = vsel %vm2576, %v2566, %v2569
        %v2589 = vsel %vm2579, %v2575, 1326507024
        %v2590 = vsel %vm2578, %v2572, %v2589
        %v2591 = vsel %vm2577, %v2588, %v2590
        %v2592 = vshll.u32 %v2552, 8
        %v2593 = vand.u32 %v2592, 65535
        %v2594 = vshrl.u32 %v2592, 16
        %v2595 = vand.u32 %v2591, 65535
        %v2596 = vshrl.u32 %v2591, 16
        %v2597 = vmul.u32 %v2593, %v2595
        %v2598 = vmul.u32 %v2593, %v2596
        %v2599 = vmul.u32 %v2594, %v2595
        %v2600 = vmul.u32 %v2594, %v2596
        %v2601 = vshll.u32 %v2598, 16
        %v2602 = vshrl.u32 %v2598, 16
        %v2603 = vshll.u32 %v2599, 16
        %v2604 = vshrl.u32 %v2599, 16
        %vm2605 = vc.u32 %v2597, %v2601
        %v2606 = vsel %vm2605, 1, 0
        %v2607 = vadd.s32 %v2597, %v2601
        %v2608 = vadd.s32 %v2600, %v2606
        %vm2609 = vc.u32 %v2607, %v2603
        %v2610 = vsel %vm2609, 1, 0
        %v2611 = vadd.s32 %v2607, %v2603
        %v2612 = vadd.s32 %v2608, %v2610
        %v2613 = vadd.s32 %v2612, %v2602
        %v2614 = vadd.s32 %v2613, %v2604
        %v2615 = vand.u32 %v2592, 65535
        %v2616 = vshrl.u32 %v2592, 16
        %v2617 = vand.u32 %v2587, 65535
        %v2618 = vshrl.u32 %v2587, 16
        %v2619 = vmul.u32 %v2615, %v2617
        %v2620 = vmul.u32 %v2615, %v2618
        %v2621 = vmul.u32 %v2616, %v2617
        %v2622 = vmul.u32 %v2616, %v2618
        %v2623 = vshll.u32 %v2620, 16
        %v2624 = vshrl.u32 %v2620, 16
        %v2625 = vshll.u32 %v2621, 16
        %v2626 = vshrl.u32 %v2621, 16
        %vm2627 = vc.u32 %v2619, %v2623
        %v2628 = vsel %vm2627, 1, 0
        %v2629 = vadd.s32 %v2619, %v2623
        %v2630 = vadd.s32 %v2622, %v2628
        %vm2631 = vc.u32 %v2629, %v2625
        %v2632 = vsel %vm2631, 1, 0
        %v2633 = vadd.s32 %v2629, %v2625
        %v2634 = vadd.s32 %v2630, %v2632
        %v2635 = vadd.s32 %v2634, %v2624
        %v2636 = vadd.s32 %v2635, %v2626
        %v2637 = vmul.u32 %v2592, %v2583
        %v2638 = vadd.s32 %v2614, %v2633
        %vm2639 = vc.u32 %v2614, %v2633
        %v2640 = vadd.s32 %v2636, 1
        %v2641 = vsel %vm2639, %v2640, %v2636
        %v2642 = vadd.s32 %v2637, %v2641
        %v2643 = vadd.s32 %v2642, 536870912
        %v2644 = vshrl.u32 %v2643, 30
        %v2645 = vshll.u32 %v2644, 30
        %v2646 = vsub.s32 %v2642, %v2645
        %vm2647 = vcmp.lt.s32.totalorder %v2646, 0
        %v2648 = vsub.s32 0, %v2646
        %v2649 = vsel %vm2647, %v2648, %v2646
        %v2650 = vclz %v2649
        %v2651 = vsub.s32 %v2650, 2
        %vm2652 = vcmp.gt.s32.totalorder 0, %v2651
        %v2653 = vsel %vm2652, 0, %v2651
        %v2654 = vsub.s32 32, %v2653
        %v2655 = vshll.u32 %v2646, %v2653
        %v2656 = vshrl.u32 %v2638, %v2654
        %v2657 = vor.u32 %v2655, %v2656
        %v2658 = vsub.s32 4294967266, %v2653
        %v2659 = vadd.s32 %v2658, 127
        %v2660 = vshll.u32 %v2659, 23
        %v2661 = vor.u32 4788187, %v2660
        %v2662 = vand.u32 2147483647, %v2661
        %v2664 = vcvt.s32.f32 %v2657
        %v2665 = vmul.f32 %v2664, %v2662
        %v2666 = vxor.u32 %v2665, 2147483648
        %v2667 = vsel %vm2546, %v2666, %v2665
        %v2668 = vsub.s32 4, %v2644
        %v2669 = vsel %vm2546, %v2668, %v2644
        %v2670 = vsel %vm2545, %v664, %v2667
        %v2671 = vsel %vm2545, 0, %v2669
        %v2672 = vmul.f32 %v2670, %v2670
        %v2673 = vmul.f32 %v2672, -0.001358992
        %v2674 = vadd.f32 %v2673, 0.041655596
        %v2675 = vmul.f32 %v2672, %v2674
        %v2676 = vadd.f32 %v2675, -0.4999988
        %v2677 = vmul.f32 %v2672, %v2676
        %v2678 = vadd.f32 1.0, %v2677
        %v2679 = vmul.f32 %v2670, %v2670
        %v2680 = vmul.f32 %v2679, -0.00019511016
        %v2681 = vadd.f32 %v2680, 0.008332121
        %v2682 = vmul.f32 %v2679, %v2681
        %v2683 = vadd.f32 %v2682, -0.16666654
        %v2684 = vmul.f32 %v2679, %v2683
        %v2685 = vadd.f32 %v2684, 1.0
        %v2686 = vmul.f32 %v2685, %v2670
        %vm2687 = vweird.f32 %v664
        %v2688 = vadd.s32 %v2671, 3
        %v2689 = vand.u32 %v2688, 3
        %vm2690 = vcmp.lt.s32.totalorder %v2689, 2
        %vm2691 = vcmp.eq.s32.totalorder %v2689, 0
        %v2692 = vxor.u32 %v2686, 2147483648
        %v2693 = vsel %vm2691, %v2678, %v2692
        %vm2694 = vcmp.eq.s32.totalorder %v2689, 2
        %v2695 = vxor.u32 %v2678, 2147483648
        %v2696 = vsel %vm2694, %v2695, %v2686
        %v2697 = vsel %vm2690, %v2693, %v2696
        %v2698 = vsel %vm2687, nan, %v2697
        %v2699 = vand.u32 2147483647, %v665
        %vm2700 = vcmp.le.f32.partialorder %v2699, 0.7853982
        %vm2701 = vcmp.lt.s32.totalorder %v665, 0
        %v2702 = vand.u32 %v665, 2139095040
        %v2703 = vshrl.u32 %v2702, 23
        %v2704 = vsub.s32 %v2703, 127
        %v2705 = vand.u32 2147483647, %v665
        %v2706 = vand.u32 %v2705, 8388607
        %v2707 = vor.u32 %v2706, 8388608
        %v2708 = vsub.s32 0, %v2707
        %v2709 = vadd.s32 %v2704, 1
        %vm2710 = vcmp.gt.s32.totalorder %v2709, 0
        %v2711 = vsel %vm2710, %v2709, 0
        %v2712 = vshrl.u32 %v2711, 5
        %v2713 = vand.u32 %v2711, 31
        %v2714 = vsub.s32 32, %v2713
        %v2715 = vshrl.u32 683565275, %v2714
        %v2716 = vshll.u32 683565275, %v2713
        %v2717 = vshrl.u32 2475754826, %v2714
        %v2718 = vor.u32 %v2716, %v2717
        %v2719 = vshll.u32 2475754826, %v2713
        %v2720 = vshrl.u32 2131351028, %v2714
        %v2721 = vor.u32 %v2719, %v2720
        %v2722 = vshll.u32 2131351028, %v2713
        %v2723 = vshrl.u32 2102212464, %v2714
        %v2724 = vor.u32 %v2722, %v2723
        %v2725 = vshll.u32 2102212464, %v2713
        %v2726 = vshrl.u32 920167782, %v2714
        %v2727 = vor.u32 %v2725, %v2726
        %v2728 = vshll.u32 920167782, %v2713
        %v2729 = vshrl.u32 1326507024, %v2714
        %v2730 = vor.u32 %v2728, %v2729
        %vm2731 = vcmp.lt.s32.totalorder %v2712, 1
        %vm2732 = vcmp.lt.s32.totalorder %v2712, 2
        %vm2733 = vcmp.lt.s32.totalorder %v2712, 3
        %vm2734 = vcmp.lt.s32.totalorder %v2712, 4
        %v2735 = vsel %vm2731, %v2715, %v2718
        %v2736 = vsel %vm2734, %v2724, 2102212464
        %v2737 = vsel %vm2733, %v2721, %v2736
        %v2738 = vsel %vm2732, %v2735, %v2737
        %v2739 = vsel %vm2731, %v2718, %v2721
        %v2740 = vsel %vm2734, %v2727, 920167782
        %v2741 = vsel %vm2733, %v2724, %v2740
        %v2742 = vsel %vm2732, %v2739, %v2741
        %v2743 = vsel %vm2731, %v2721, %v2724
        %v2744 = vsel %vm2734, %v2730, 1326507024
        %v2745 = vsel %vm2733, %v2727, %v2744
        %v2746 = vsel %vm2732, %v2743, %v2745
        %v2747 = vshll.u32 %v2707, 8
        %v2748 = vand.u32 %v2747, 65535
        %v2749 = vshrl.u32 %v2747, 16
        %v2750 = vand.u32 %v2746, 65535
        %v2751 = vshrl.u32 %v2746, 16
        %v2752 = vmul.u32 %v2748, %v2750
        %v2753 = vmul.u32 %v2748, %v2751
        %v2754 = vmul.u32 %v2749, %v2750
        %v2755 = vmul.u32 %v2749, %v2751
        %v2756 = vshll.u32 %v2753, 16
        %v2757 = vshrl.u32 %v2753, 16
        %v2758 = vshll.u32 %v2754, 16
        %v2759 = vshrl.u32 %v2754, 16
        %vm2760 = vc.u32 %v2752, %v2756
        %v2761 = vsel %vm2760, 1, 0
        %v2762 = vadd.s32 %v2752, %v2756
        %v2763 = vadd.s32 %v2755, %v2761
        %vm2764 = vc.u32 %v2762, %v2758
        %v2765 = vsel %vm2764, 1, 0
        %v2766 = vadd.s32 %v2762, %v2758
        %v2767 = vadd.s32 %v2763, %v2765
        %v2768 = vadd.s32 %v2767, %v2757
        %v2769 = vadd.s32 %v2768, %v2759
        %v2770 = vand.u32 %v2747, 65535
        %v2771 = vshrl.u32 %v2747, 16
        %v2772 = vand.u32 %v2742, 65535
        %v2773 = vshrl.u32 %v2742, 16
        %v2774 = vmul.u32 %v2770, %v2772
        %v2775 = vmul.u32 %v2770, %v2773
        %v2776 = vmul.u32 %v2771, %v2772
        %v2777 = vmul.u32 %v2771, %v2773
        %v2778 = vshll.u32 %v2775, 16
        %v2779 = vshrl.u32 %v2775, 16
        %v2780 = vshll.u32 %v2776, 16
        %v2781 = vshrl.u32 %v2776, 16
        %vm2782 = vc.u32 %v2774, %v2778
        %v2783 = vsel %vm2782, 1, 0
        %v2784 = vadd.s32 %v2774, %v2778
        %v2785 = vadd.s32 %v2777, %v2783
        %vm2786 = vc.u32 %v2784, %v2780
        %v2787 = vsel %vm2786, 1, 0
        %v2788 = vadd.s32 %v2784, %v2780
        %v2789 = vadd.s32 %v2785, %v2787
        %v2790 = vadd.s32 %v2789, %v2779
        %v2791 = vadd.s32 %v2790, %v2781
        %v2792 = vmul.u32 %v2747, %v2738
        %v2793 = vadd.s32 %v2769, %v2788
        %vm2794 = vc.u32 %v2769, %v2788
        %v2795 = vadd.s32 %v2791, 1
        %v2796 = vsel %vm2794, %v2795, %v2791
        %v2797 = vadd.s32 %v2792, %v2796
        %v2798 = vadd.s32 %v2797, 536870912
        %v2799 = vshrl.u32 %v2798, 30
        %v2800 = vshll.u32 %v2799, 30
        %v2801 = vsub.s32 %v2797, %v2800
        %vm2802 = vcmp.lt.s32.totalorder %v2801, 0
        %v2803 = vsub.s32 0, %v2801
        %v2804 = vsel %vm2802, %v2803, %v2801
        %v2805 = vclz %v2804
        %v2806 = vsub.s32 %v2805, 2
        %vm2807 = vcmp.gt.s32.totalorder 0, %v2806
        %v2808 = vsel %vm2807, 0, %v2806
        %v2809 = vsub.s32 32, %v2808
        %v2810 = vshll.u32 %v2801, %v2808
        %v2811 = vshrl.u32 %v2793, %v2809
        %v2812 = vor.u32 %v2810, %v2811
        %v2813 = vsub.s32 4294967266, %v2808
        %v2814 = vadd.s32 %v2813, 127
        %v2815 = vshll.u32 %v2814, 23
        %v2816 = vor.u32 4788187, %v2815
        %v2817 = vand.u32 2147483647, %v2816
        %v2819 = vcvt.s32.f32 %v2812
        %v2820 = vmul.f32 %v2819, %v2817
        %v2821 = vxor.u32 %v2820, 2147483648
        %v2822 = vsel %vm2701, %v2821, %v2820
        %v2823 = vsub.s32 4, %v2799
        %v2824 = vsel %vm2701, %v2823, %v2799
        %v2825 = vsel %vm2700, %v665, %v2822
        %v2826 = vsel %vm2700, 0, %v2824
        %v2827 = vmul.f32 %v2825, %v2825
        %v2828 = vmul.f32 %v2827, -0.001358992
        %v2829 = vadd.f32 %v2828, 0.041655596
        %v2830 = vmul.f32 %v2827, %v2829
        %v2831 = vadd.f32 %v2830, -0.4999988
        %v2832 = vmul.f32 %v2827, %v2831
        %v2833 = vadd.f32 1.0, %v2832
        %v2834 = vmul.f32 %v2825, %v2825
        %v2835 = vmul.f32 %v2834, -0.00019511016
        %v2836 = vadd.f32 %v2835, 0.008332121
        %v2837 = vmul.f32 %v2834, %v2836
        %v2838 = vadd.f32 %v2837, -0.16666654
        %v2839 = vmul.f32 %v2834, %v2838
        %v2840 = vadd.f32 %v2839, 1.0
        %v2841 = vmul.f32 %v2840, %v2825
        %vm2842 = vweird.f32 %v665
        %v2843 = vadd.s32 %v2826, 3
        %v2844 = vand.u32 %v2843, 3
        %vm2845 = vcmp.lt.s32.totalorder %v2844, 2
        %vm2846 = vcmp.eq.s32.totalorder %v2844, 0
        %v2847 = vxor.u32 %v2841, 2147483648
        %v2848 = vsel %vm2846, %v2833, %v2847
        %vm2849 = vcmp.eq.s32.totalorder %v2844, 2
        %v2850 = vxor.u32 %v2833, 2147483648
        %v2851 = vsel %vm2849, %v2850, %v2841
        %v2852 = vsel %vm2845, %v2848, %v2851
        %v2853 = vsel %vm2842, nan, %v2852
        %v2854 = vand.u32 2147483647, %v666
        %vm2855 = vcmp.le.f32.partialorder %v2854, 0.7853982
        %vm2856 = vcmp.lt.s32.totalorder %v666, 0
        %v2857 = vand.u32 %v666, 2139095040
        %v2858 = vshrl.u32 %v2857, 23
        %v2859 = vsub.s32 %v2858, 127
        %v2860 = vand.u32 2147483647, %v666
        %v2861 = vand.u32 %v2860, 8388607
        %v2862 = vor.u32 %v2861, 8388608
        %v2863 = vsub.s32 0, %v2862
        %v2864 = vadd.s32 %v2859, 1
        %vm2865 = vcmp.gt.s32.totalorder %v2864, 0
        %v2866 = vsel %vm2865, %v2864, 0
        %v2867 = vshrl.u32 %v2866, 5
        %v2868 = vand.u32 %v2866, 31
        %v2869 = vsub.s32 32, %v2868
        %v2870 = vshrl.u32 683565275, %v2869
        %v2871 = vshll.u32 683565275, %v2868
        %v2872 = vshrl.u32 2475754826, %v2869
        %v2873 = vor.u32 %v2871, %v2872
        %v2874 = vshll.u32 2475754826, %v2868
        %v2875 = vshrl.u32 2131351028, %v2869
        %v2876 = vor.u32 %v2874, %v2875
        %v2877 = vshll.u32 2131351028, %v2868
        %v2878 = vshrl.u32 2102212464, %v2869
        %v2879 = vor.u32 %v2877, %v2878
        %v2880 = vshll.u32 2102212464, %v2868
        %v2881 = vshrl.u32 920167782, %v2869
        %v2882 = vor.u32 %v2880, %v2881
        %v2883 = vshll.u32 920167782, %v2868
        %v2884 = vshrl.u32 1326507024, %v2869
        %v2885 = vor.u32 %v2883, %v2884
        %vm2886 = vcmp.lt.s32.totalorder %v2867, 1
        %vm2887 = vcmp.lt.s32.totalorder %v2867, 2
        %vm2888 = vcmp.lt.s32.totalorder %v2867, 3
        %vm2889 = vcmp.lt.s32.totalorder %v2867, 4
        %v2890 = vsel %vm2886, %v2870, %v2873
        %v2891 = vsel %vm2889, %v2879, 2102212464
        %v2892 = vsel %vm2888, %v2876, %v2891
        %v2893 = vsel %vm2887, %v2890, %v2892
        %v2894 = vsel %vm2886, %v2873, %v2876
        %v2895 = vsel %vm2889, %v2882, 920167782
        %v2896 = vsel %vm2888, %v2879, %v2895
        %v2897 = vsel %vm2887, %v2894, %v2896
        %v2898 = vsel %vm2886, %v2876, %v2879
        %v2899 = vsel %vm2889, %v2885, 1326507024
        %v2900 = vsel %vm2888, %v2882, %v2899
        %v2901 = vsel %vm2887, %v2898, %v2900
        %v2902 = vshll.u32 %v2862, 8
        %v2903 = vand.u32 %v2902, 65535
        %v2904 = vshrl.u32 %v2902, 16
        %v2905 = vand.u32 %v2901, 65535
        %v2906 = vshrl.u32 %v2901, 16
        %v2907 = vmul.u32 %v2903, %v2905
        %v2908 = vmul.u32 %v2903, %v2906
        %v2909 = vmul.u32 %v2904, %v2905
        %v2910 = vmul.u32 %v2904, %v2906
        %v2911 = vshll.u32 %v2908, 16
        %v2912 = vshrl.u32 %v2908, 16
        %v2913 = vshll.u32 %v2909, 16
        %v2914 = vshrl.u32 %v2909, 16
        %vm2915 = vc.u32 %v2907, %v2911
        %v2916 = vsel %vm2915, 1, 0
        %v2917 = vadd.s32 %v2907, %v2911
        %v2918 = vadd.s32 %v2910, %v2916
        %vm2919 = vc.u32 %v2917, %v2913
        %v2920 = vsel %vm2919, 1, 0
        %v2921 = vadd.s32 %v2917, %v2913
        %v2922 = vadd.s32 %v2918, %v2920
        %v2923 = vadd.s32 %v2922, %v2912
        %v2924 = vadd.s32 %v2923, %v2914
        %v2925 = vand.u32 %v2902, 65535
        %v2926 = vshrl.u32 %v2902, 16
        %v2927 = vand.u32 %v2897, 65535
        %v2928 = vshrl.u32 %v2897, 16
        %v2929 = vmul.u32 %v2925, %v2927
        %v2930 = vmul.u32 %v2925, %v2928
        %v2931 = vmul.u32 %v2926, %v2927
        %v2932 = vmul.u32 %v2926, %v2928
        %v2933 = vshll.u32 %v2930, 16
        %v2934 = vshrl.u32 %v2930, 16
        %v2935 = vshll.u32 %v2931, 16
        %v2936 = vshrl.u32 %v2931, 16
        %vm2937 = vc.u32 %v2929, %v2933
        %v2938 = vsel %vm2937, 1, 0
        %v2939 = vadd.s32 %v2929, %v2933
        %v2940 = vadd.s32 %v2932, %v2938
        %vm2941 = vc.u32 %v2939, %v2935
        %v2942 = vsel %vm2941, 1, 0
        %v2943 = vadd.s32 %v2939, %v2935
        %v2944 = vadd.s32 %v2940, %v2942
        %v2945 = vadd.s32 %v2944, %v2934
        %v2946 = vadd.s32 %v2945, %v2936
        %v2947 = vmul.u32 %v2902, %v2893
        %v2948 = vadd.s32 %v2924, %v2943
        %vm2949 = vc.u32 %v2924, %v2943
        %v2950 = vadd.s32 %v2946, 1
        %v2951 = vsel %vm2949, %v2950, %v2946
        %v2952 = vadd.s32 %v2947, %v2951
        %v2953 = vadd.s32 %v2952, 536870912
        %v2954 = vshrl.u32 %v2953, 30
        %v2955 = vshll.u32 %v2954, 30
        %v2956 = vsub.s32 %v2952, %v2955
        %vm2957 = vcmp.lt.s32.totalorder %v2956, 0
        %v2958 = vsub.s32 0, %v2956
        %v2959 = vsel %vm2957, %v2958, %v2956
        %v2960 = vclz %v2959
        %v2961 = vsub.s32 %v2960, 2
        %vm2962 = vcmp.gt.s32.totalorder 0, %v2961
        %v2963 = vsel %vm2962, 0, %v2961
        %v2964 = vsub.s32 32, %v2963
        %v2965 = vshll.u32 %v2956, %v2963
        %v2966 = vshrl.u32 %v2948, %v2964
        %v2967 = vor.u32 %v2965, %v2966
        %v2968 = vsub.s32 4294967266, %v2963
        %v2969 = vadd.s32 %v2968, 127
        %v2970 = vshll.u32 %v2969, 23
        %v2971 = vor.u32 4788187, %v2970
        %v2972 = vand.u32 2147483647, %v2971
        %v2974 = vcvt.s32.f32 %v2967
        %v2975 = vmul.f32 %v2974, %v2972
        %v2976 = vxor.u32 %v2975, 2147483648
        %v2977 = vsel %vm2856, %v2976, %v2975
        %v2978 = vsub.s32 4, %v2954
        %v2979 = vsel %vm2856, %v2978, %v2954
        %v2980 = vsel %vm2855, %v666, %v2977
        %v2981 = vsel %vm2855, 0, %v2979
        %v2982 = vmul.f32 %v2980, %v2980
        %v2983 = vmul.f32 %v2982, -0.001358992
        %v2984 = vadd.f32 %v2983, 0.041655596
        %v2985 = vmul.f32 %v2982, %v2984
        %v2986 = vadd.f32 %v2985, -0.4999988
        %v2987 = vmul.f32 %v2982, %v2986
        %v2988 = vadd.f32 1.0, %v2987
        %v2989 = vmul.f32 %v2980, %v2980
        %v2990 = vmul.f32 %v2989, -0.00019511016
        %v2991 = vadd.f32 %v2990, 0.008332121
        %v2992 = vmul.f32 %v2989, %v2991
        %v2993 = vadd.f32 %v2992, -0.16666654
        %v2994 = vmul.f32 %v2989, %v2993
        %v2995 = vadd.f32 %v2994, 1.0
        %v2996 = vmul.f32 %v2995, %v2980
        %vm2997 = vweird.f32 %v666
        %v2998 = vadd.s32 %v2981, 3
        %v2999 = vand.u32 %v2998, 3
        %vm3000 = vcmp.lt.s32.totalorder %v2999, 2
        %vm3001 = vcmp.eq.s32.totalorder %v2999, 0
        %v3002 = vxor.u32 %v2996, 2147483648
        %v3003 = vsel %vm3001, %v2988, %v3002
        %vm3004 = vcmp.eq.s32.totalorder %v2999, 2
        %v3005 = vxor.u32 %v2988, 2147483648
        %v3006 = vsel %vm3004, %v3005, %v2996
        %v3007 = vsel %vm3000, %v3003, %v3006
        %v3008 = vsel %vm2997, nan, %v3007
        %v3009 = vand.u32 2147483647, %v667
        %vm3010 = vcmp.le.f32.partialorder %v3009, 0.7853982
        %vm3011 = vcmp.lt.s32.totalorder %v667, 0
        %v3012 = vand.u32 %v667, 2139095040
        %v3013 = vshrl.u32 %v3012, 23
        %v3014 = vsub.s32 %v3013, 127
        %v3015 = vand.u32 2147483647, %v667
        %v3016 = vand.u32 %v3015, 8388607
        %v3017 = vor.u32 %v3016, 8388608
        %v3018 = vsub.s32 0, %v3017
        %v3019 = vadd.s32 %v3014, 1
        %vm3020 = vcmp.gt.s32.totalorder %v3019, 0
        %v3021 = vsel %vm3020, %v3019, 0
        %v3022 = vshrl.u32 %v3021, 5
        %v3023 = vand.u32 %v3021, 31
        %v3024 = vsub.s32 32, %v3023
        %v3025 = vshrl.u32 683565275, %v3024
        %v3026 = vshll.u32 683565275, %v3023
        %v3027 = vshrl.u32 2475754826, %v3024
        %v3028 = vor.u32 %v3026, %v3027
        %v3029 = vshll.u32 2475754826, %v3023
        %v3030 = vshrl.u32 2131351028, %v3024
        %v3031 = vor.u32 %v3029, %v3030
        %v3032 = vshll.u32 2131351028, %v3023
        %v3033 = vshrl.u32 2102212464, %v3024
        %v3034 = vor.u32 %v3032, %v3033
        %v3035 = vshll.u32 2102212464, %v3023
        %v3036 = vshrl.u32 920167782, %v3024
        %v3037 = vor.u32 %v3035, %v3036
        %v3038 = vshll.u32 920167782, %v3023
        %v3039 = vshrl.u32 1326507024, %v3024
        %v3040 = vor.u32 %v3038, %v3039
        %vm3041 = vcmp.lt.s32.totalorder %v3022, 1
        %vm3042 = vcmp.lt.s32.totalorder %v3022, 2
        %vm3043 = vcmp.lt.s32.totalorder %v3022, 3
        %vm3044 = vcmp.lt.s32.totalorder %v3022, 4
        %v3045 = vsel %vm3041, %v3025, %v3028
        %v3046 = vsel %vm3044, %v3034, 2102212464
        %v3047 = vsel %vm3043, %v3031, %v3046
        %v3048 = vsel %vm3042, %v3045, %v3047
        %v3049 = vsel %vm3041, %v3028, %v3031
        %v3050 = vsel %vm3044, %v3037, 920167782
        %v3051 = vsel %vm3043, %v3034, %v3050
        %v3052 = vsel %vm3042, %v3049, %v3051
        %v3053 = vsel %vm3041, %v3031, %v3034
        %v3054 = vsel %vm3044, %v3040, 1326507024
        %v3055 = vsel %vm3043, %v3037, %v3054
        %v3056 = vsel %vm3042, %v3053, %v3055
        %v3057 = vshll.u32 %v3017, 8
        %v3058 = vand.u32 %v3057, 65535
        %v3059 = vshrl.u32 %v3057, 16
        %v3060 = vand.u32 %v3056, 65535
        %v3061 = vshrl.u32 %v3056, 16
        %v3062 = vmul.u32 %v3058, %v3060
        %v3063 = vmul.u32 %v3058, %v3061
        %v3064 = vmul.u32 %v3059, %v3060
        %v3065 = vmul.u32 %v3059, %v3061
        %v3066 = vshll.u32 %v3063, 16
        %v3067 = vshrl.u32 %v3063, 16
        %v3068 = vshll.u32 %v3064, 16
        %v3069 = vshrl.u32 %v3064, 16
        %vm3070 = vc.u32 %v3062, %v3066
        %v3071 = vsel %vm3070, 1, 0
        %v3072 = vadd.s32 %v3062, %v3066
        %v3073 = vadd.s32 %v3065, %v3071
        %vm3074 = vc.u32 %v3072, %v3068
        %v3075 = vsel %vm3074, 1, 0
        %v3076 = vadd.s32 %v3072, %v3068
        %v3077 = vadd.s32 %v3073, %v3075
        %v3078 = vadd.s32 %v3077, %v3067
        %v3079 = vadd.s32 %v3078, %v3069
        %v3080 = vand.u32 %v3057, 65535
        %v3081 = vshrl.u32 %v3057, 16
        %v3082 = vand.u32 %v3052, 65535
        %v3083 = vshrl.u32 %v3052, 16
        %v3084 = vmul.u32 %v3080, %v3082
        %v3085 = vmul.u32 %v3080, %v3083
        %v3086 = vmul.u32 %v3081, %v3082
        %v3087 = vmul.u32 %v3081, %v3083
        %v3088 = vshll.u32 %v3085, 16
        %v3089 = vshrl.u32 %v3085, 16
        %v3090 = vshll.u32 %v3086, 16
        %v3091 = vshrl.u32 %v3086, 16
        %vm3092 = vc.u32 %v3084, %v3088
        %v3093 = vsel %vm3092, 1, 0
        %v3094 = vadd.s32 %v3084, %v3088
        %v3095 = vadd.s32 %v3087, %v3093
        %vm3096 = vc.u32 %v3094, %v3090
        %v3097 = vsel %vm3096, 1, 0
        %v3098 = vadd.s32 %v3094, %v3090
        %v3099 = vadd.s32 %v3095, %v3097
        %v3100 = vadd.s32 %v3099, %v3089
        %v3101 = vadd.s32 %v3100, %v3091
        %v3102 = vmul.u32 %v3057, %v3048
        %v3103 = vadd.s32 %v3079, %v3098
        %vm3104 = vc.u32 %v3079, %v3098
        %v3105 = vadd.s32 %v3101, 1
        %v3106 = vsel %vm3104, %v3105, %v3101
        %v3107 = vadd.s32 %v3102, %v3106
        %v3108 = vadd.s32 %v3107, 536870912
        %v3109 = vshrl.u32 %v3108, 30
        %v3110 = vshll.u32 %v3109, 30
        %v3111 = vsub.s32 %v3107, %v3110
        %vm3112 = vcmp.lt.s32.totalorder %v3111, 0
        %v3113 = vsub.s32 0, %v3111
        %v3114 = vsel %vm3112, %v3113, %v3111
        %v3115 = vclz %v3114
        %v3116 = vsub.s32 %v3115, 2
        %vm3117 = vcmp.gt.s32.totalorder 0, %v3116
        %v3118 = vsel %vm3117, 0, %v3116
        %v3119 = vsub.s32 32, %v3118
        %v3120 = vshll.u32 %v3111, %v3118
        %v3121 = vshrl.u32 %v3103, %v3119
        %v3122 = vor.u32 %v3120, %v3121
        %v3123 = vsub.s32 4294967266, %v3118
        %v3124 = vadd.s32 %v3123, 127
        %v3125 = vshll.u32 %v3124, 23
        %v3126 = vor.u32 4788187, %v3125
        %v3127 = vand.u32 2147483647, %v3126
        %v3129 = vcvt.s32.f32 %v3122
        %v3130 = vmul.f32 %v3129, %v3127
        %v3131 = vxor.u32 %v3130, 2147483648
        %v3132 = vsel %vm3011, %v3131, %v3130
        %v3133 = vsub.s32 4, %v3109
        %v3134 = vsel %vm3011, %v3133, %v3109
        %v3135 = vsel %vm3010, %v667, %v3132
        %v3136 = vsel %vm3010, 0, %v3134
        %v3137 = vmul.f32 %v3135, %v3135
        %v3138 = vmul.f32 %v3137, -0.001358992
        %v3139 = vadd.f32 %v3138, 0.041655596
        %v3140 = vmul.f32 %v3137, %v3139
        %v3141 = vadd.f32 %v3140, -0.4999988
        %v3142 = vmul.f32 %v3137, %v3141
        %v3143 = vadd.f32 1.0, %v3142
        %v3144 = vmul.f32 %v3135, %v3135
        %v3145 = vmul.f32 %v3144, -0.00019511016
        %v3146 = vadd.f32 %v3145, 0.008332121
        %v3147 = vmul.f32 %v3144, %v3146
        %v3148 = vadd.f32 %v3147, -0.16666654
        %v3149 = vmul.f32 %v3144, %v3148
        %v3150 = vadd.f32 %v3149, 1.0
        %v3151 = vmul.f32 %v3150, %v3135
        %vm3152 = vweird.f32 %v667
        %v3153 = vadd.s32 %v3136, 3
        %v3154 = vand.u32 %v3153, 3
        %vm3155 = vcmp.lt.s32.totalorder %v3154, 2
        %vm3156 = vcmp.eq.s32.totalorder %v3154, 0
        %v3157 = vxor.u32 %v3151, 2147483648
        %v3158 = vsel %vm3156, %v3143, %v3157
        %vm3159 = vcmp.eq.s32.totalorder %v3154, 2
        %v3160 = vxor.u32 %v3143, 2147483648
        %v3161 = vsel %vm3159, %v3160, %v3151
        %v3162 = vsel %vm3155, %v3158, %v3161
        %v3163 = vsel %vm3152, nan, %v3162
        %v3164 = vand.u32 2147483647, %v668
        %vm3165 = vcmp.le.f32.partialorder %v3164, 0.7853982
        %vm3166 = vcmp.lt.s32.totalorder %v668, 0
        %v3167 = vand.u32 %v668, 2139095040
        %v3168 = vshrl.u32 %v3167, 23
        %v3169 = vsub.s32 %v3168, 127
        %v3170 = vand.u32 2147483647, %v668
        %v3171 = vand.u32 %v3170, 8388607
        %v3172 = vor.u32 %v3171, 8388608
        %v3173 = vsub.s32 0, %v3172
        %v3174 = vadd.s32 %v3169, 1
        %vm3175 = vcmp.gt.s32.totalorder %v3174, 0
        %v3176 = vsel %vm3175, %v3174, 0
        %v3177 = vshrl.u32 %v3176, 5
        %v3178 = vand.u32 %v3176, 31
        %v3179 = vsub.s32 32, %v3178
        %v3180 = vshrl.u32 683565275, %v3179
        %v3181 = vshll.u32 683565275, %v3178
        %v3182 = vshrl.u32 2475754826, %v3179
        %v3183 = vor.u32 %v3181, %v3182
        %v3184 = vshll.u32 2475754826, %v3178
        %v3185 = vshrl.u32 2131351028, %v3179
        %v3186 = vor.u32 %v3184, %v3185
        %v3187 = vshll.u32 2131351028, %v3178
        %v3188 = vshrl.u32 2102212464, %v3179
        %v3189 = vor.u32 %v3187, %v3188
        %v3190 = vshll.u32 2102212464, %v3178
        %v3191 = vshrl.u32 920167782, %v3179
        %v3192 = vor.u32 %v3190, %v3191
        %v3193 = vshll.u32 920167782, %v3178
        %v3194 = vshrl.u32 1326507024, %v3179
        %v3195 = vor.u32 %v3193, %v3194
        %vm3196 = vcmp.lt.s32.totalorder %v3177, 1
        %vm3197 = vcmp.lt.s32.totalorder %v3177, 2
        %vm3198 = vcmp.lt.s32.totalorder %v3177, 3
        %vm3199 = vcmp.lt.s32.totalorder %v3177, 4
        %v3200 = vsel %vm3196, %v3180, %v3183
        %v3201 = vsel %vm3199, %v3189, 2102212464
        %v3202 = vsel %vm3198, %v3186, %v3201
        %v3203 = vsel %vm3197, %v3200, %v3202
        %v3204 = vsel %vm3196, %v3183, %v3186
        %v3205 = vsel %vm3199, %v3192, 920167782
        %v3206 = vsel %vm3198, %v3189, %v3205
        %v3207 = vsel %vm3197, %v3204, %v3206
        %v3208 = vsel %vm3196, %v3186, %v3189
        %v3209 = vsel %vm3199, %v3195, 1326507024
        %v3210 = vsel %vm3198, %v3192, %v3209
        %v3211 = vsel %vm3197, %v3208, %v3210
        %v3212 = vshll.u32 %v3172, 8
        %v3213 = vand.u32 %v3212, 65535
        %v3214 = vshrl.u32 %v3212, 16
        %v3215 = vand.u32 %v3211, 65535
        %v3216 = vshrl.u32 %v3211, 16
        %v3217 = vmul.u32 %v3213, %v3215
        %v3218 = vmul.u32 %v3213, %v3216
        %v3219 = vmul.u32 %v3214, %v3215
        %v3220 = vmul.u32 %v3214, %v3216
        %v3221 = vshll.u32 %v3218, 16
        %v3222 = vshrl.u32 %v3218, 16
        %v3223 = vshll.u32 %v3219, 16
        %v3224 = vshrl.u32 %v3219, 16
        %vm3225 = vc.u32 %v3217, %v3221
        %v3226 = vsel %vm3225, 1, 0
        %v3227 = vadd.s32 %v3217, %v3221
        %v3228 = vadd.s32 %v3220, %v3226
        %vm3229 = vc.u32 %v3227, %v3223
        %v3230 = vsel %vm3229, 1, 0
        %v3231 = vadd.s32 %v3227, %v3223
        %v3232 = vadd.s32 %v3228, %v3230
        %v3233 = vadd.s32 %v3232, %v3222
        %v3234 = vadd.s32 %v3233, %v3224
        %v3235 = vand.u32 %v3212, 65535
        %v3236 = vshrl.u32 %v3212, 16
        %v3237 = vand.u32 %v3207, 65535
        %v3238 = vshrl.u32 %v3207, 16
        %v3239 = vmul.u32 %v3235, %v3237
        %v3240 = vmul.u32 %v3235, %v3238
        %v3241 = vmul.u32 %v3236, %v3237
        %v3242 = vmul.u32 %v3236, %v3238
        %v3243 = vshll.u32 %v3240, 16
        %v3244 = vshrl.u32 %v3240, 16
        %v3245 = vshll.u32 %v3241, 16
        %v3246 = vshrl.u32 %v3241, 16
        %vm3247 = vc.u32 %v3239, %v3243
        %v3248 = vsel %vm3247, 1, 0
        %v3249 = vadd.s32 %v3239, %v3243
        %v3250 = vadd.s32 %v3242, %v3248
        %vm3251 = vc.u32 %v3249, %v3245
        %v3252 = vsel %vm3251, 1, 0
        %v3253 = vadd.s32 %v3249, %v3245
        %v3254 = vadd.s32 %v3250, %v3252
        %v3255 = vadd.s32 %v3254, %v3244
        %v3256 = vadd.s32 %v3255, %v3246
        %v3257 = vmul.u32 %v3212, %v3203
        %v3258 = vadd.s32 %v3234, %v3253
        %vm3259 = vc.u32 %v3234, %v3253
        %v3260 = vadd.s32 %v3256, 1
        %v3261 = vsel %vm3259, %v3260, %v3256
        %v3262 = vadd.s32 %v3257, %v3261
        %v3263 = vadd.s32 %v3262, 536870912
        %v3264 = vshrl.u32 %v3263, 30
        %v3265 = vshll.u32 %v3264, 30
        %v3266 = vsub.s32 %v3262, %v3265
        %vm3267 = vcmp.lt.s32.totalorder %v3266, 0
        %v3268 = vsub.s32 0, %v3266
        %v3269 = vsel %vm3267, %v3268, %v3266
        %v3270 = vclz %v3269
        %v3271 = vsub.s32 %v3270, 2
        %vm3272 = vcmp.gt.s32.totalorder 0, %v3271
        %v3273 = vsel %vm3272, 0, %v3271
        %v3274 = vsub.s32 32, %v3273
        %v3275 = vshll.u32 %v3266, %v3273
        %v3276 = vshrl.u32 %v3258, %v3274
        %v3277 = vor.u32 %v3275, %v3276
        %v3278 = vsub.s32 4294967266, %v3273
        %v3279 = vadd.s32 %v3278, 127
        %v3280 = vshll.u32 %v3279, 23
        %v3281 = vor.u32 4788187, %v3280
        %v3282 = vand.u32 2147483647, %v3281
        %v3284 = vcvt.s32.f32 %v3277
        %v3285 = vmul.f32 %v3284, %v3282
        %v3286 = vxor.u32 %v3285, 2147483648
        %v3287 = vsel %vm3166, %v3286, %v3285
        %v3288 = vsub.s32 4, %v3264
        %v3289 = vsel %vm3166, %v3288, %v3264
        %v3290 = vsel %vm3165, %v668, %v3287
        %v3291 = vsel %vm3165, 0, %v3289
        %v3292 = vmul.f32 %v3290, %v3290
        %v3293 = vmul.f32 %v3292, -0.001358992
        %v3294 = vadd.f32 %v3293, 0.041655596
        %v3295 = vmul.f32 %v3292, %v3294
        %v3296 = vadd.f32 %v3295, -0.4999988
        %v3297 = vmul.f32 %v3292, %v3296
        %v3298 = vadd.f32 1.0, %v3297
        %v3299 = vmul.f32 %v3290, %v3290
        %v3300 = vmul.f32 %v3299, -0.00019511016
        %v3301 = vadd.f32 %v3300, 0.008332121
        %v3302 = vmul.f32 %v3299, %v3301
        %v3303 = vadd.f32 %v3302, -0.16666654
        %v3304 = vmul.f32 %v3299, %v3303
        %v3305 = vadd.f32 %v3304, 1.0
        %v3306 = vmul.f32 %v3305, %v3290
        %vm3307 = vweird.f32 %v668
        %v3308 = vadd.s32 %v3291, 3
        %v3309 = vand.u32 %v3308, 3
        %vm3310 = vcmp.lt.s32.totalorder %v3309, 2
        %vm3311 = vcmp.eq.s32.totalorder %v3309, 0
        %v3312 = vxor.u32 %v3306, 2147483648
        %v3313 = vsel %vm3311, %v3298, %v3312
        %vm3314 = vcmp.eq.s32.totalorder %v3309, 2
        %v3315 = vxor.u32 %v3298, 2147483648
        %v3316 = vsel %vm3314, %v3315, %v3306
        %v3317 = vsel %vm3310, %v3313, %v3316
        %v3318 = vsel %vm3307, nan, %v3317
        %v3319 = vand.u32 2147483647, %v669
        %vm3320 = vcmp.le.f32.partialorder %v3319, 0.7853982
        %vm3321 = vcmp.lt.s32.totalorder %v669, 0
        %v3322 = vand.u32 %v669, 2139095040
        %v3323 = vshrl.u32 %v3322, 23
        %v3324 = vsub.s32 %v3323, 127
        %v3325 = vand.u32 2147483647, %v669
        %v3326 = vand.u32 %v3325, 8388607
        %v3327 = vor.u32 %v3326, 8388608
        %v3328 = vsub.s32 0, %v3327
        %v3329 = vadd.s32 %v3324, 1
        %vm3330 = vcmp.gt.s32.totalorder %v3329, 0
        %v3331 = vsel %vm3330, %v3329, 0
        %v3332 = vshrl.u32 %v3331, 5
        %v3333 = vand.u32 %v3331, 31
        %v3334 = vsub.s32 32, %v3333
        %v3335 = vshrl.u32 683565275, %v3334
        %v3336 = vshll.u32 683565275, %v3333
        %v3337 = vshrl.u32 2475754826, %v3334
        %v3338 = vor.u32 %v3336, %v3337
        %v3339 = vshll.u32 2475754826, %v3333
        %v3340 = vshrl.u32 2131351028, %v3334
        %v3341 = vor.u32 %v3339, %v3340
        %v3342 = vshll.u32 2131351028, %v3333
        %v3343 = vshrl.u32 2102212464, %v3334
        %v3344 = vor.u32 %v3342, %v3343
        %v3345 = vshll.u32 2102212464, %v3333
        %v3346 = vshrl.u32 920167782, %v3334
        %v3347 = vor.u32 %v3345, %v3346
        %v3348 = vshll.u32 920167782, %v3333
        %v3349 = vshrl.u32 1326507024, %v3334
        %v3350 = vor.u32 %v3348, %v3349
        %vm3351 = vcmp.lt.s32.totalorder %v3332, 1
        %vm3352 = vcmp.lt.s32.totalorder %v3332, 2
        %vm3353 = vcmp.lt.s32.totalorder %v3332, 3
        %vm3354 = vcmp.lt.s32.totalorder %v3332, 4
        %v3355 = vsel %vm3351, %v3335, %v3338
        %v3356 = vsel %vm3354, %v3344, 2102212464
        %v3357 = vsel %vm3353, %v3341, %v3356
        %v3358 = vsel %vm3352, %v3355, %v3357
        %v3359 = vsel %vm3351, %v3338, %v3341
        %v3360 = vsel %vm3354, %v3347, 920167782
        %v3361 = vsel %vm3353, %v3344, %v3360
        %v3362 = vsel %vm3352, %v3359, %v3361
        %v3363 = vsel %vm3351, %v3341, %v3344
        %v3364 = vsel %vm3354, %v3350, 1326507024
        %v3365 = vsel %vm3353, %v3347, %v3364
        %v3366 = vsel %vm3352, %v3363, %v3365
        %v3367 = vshll.u32 %v3327, 8
        %v3368 = vand.u32 %v3367, 65535
        %v3369 = vshrl.u32 %v3367, 16
        %v3370 = vand.u32 %v3366, 65535
        %v3371 = vshrl.u32 %v3366, 16
        %v3372 = vmul.u32 %v3368, %v3370
        %v3373 = vmul.u32 %v3368, %v3371
        %v3374 = vmul.u32 %v3369, %v3370
        %v3375 = vmul.u32 %v3369, %v3371
        %v3376 = vshll.u32 %v3373, 16
        %v3377 = vshrl.u32 %v3373, 16
        %v3378 = vshll.u32 %v3374, 16
        %v3379 = vshrl.u32 %v3374, 16
        %vm3380 = vc.u32 %v3372, %v3376
        %v3381 = vsel %vm3380, 1, 0
        %v3382 = vadd.s32 %v3372, %v3376
        %v3383 = vadd.s32 %v3375, %v3381
        %vm3384 = vc.u32 %v3382, %v3378
        %v3385 = vsel %vm3384, 1, 0
        %v3386 = vadd.s32 %v3382, %v3378
        %v3387 = vadd.s32 %v3383, %v3385
        %v3388 = vadd.s32 %v3387, %v3377
        %v3389 = vadd.s32 %v3388, %v3379
        %v3390 = vand.u32 %v3367, 65535
        %v3391 = vshrl.u32 %v3367, 16
        %v3392 = vand.u32 %v3362, 65535
        %v3393 = vshrl.u32 %v3362, 16
        %v3394 = vmul.u32 %v3390, %v3392
        %v3395 = vmul.u32 %v3390, %v3393
        %v3396 = vmul.u32 %v3391, %v3392
        %v3397 = vmul.u32 %v3391, %v3393
        %v3398 = vshll.u32 %v3395, 16
        %v3399 = vshrl.u32 %v3395, 16
        %v3400 = vshll.u32 %v3396, 16
        %v3401 = vshrl.u32 %v3396, 16
        %vm3402 = vc.u32 %v3394, %v3398
        %v3403 = vsel %vm3402, 1, 0
        %v3404 = vadd.s32 %v3394, %v3398
        %v3405 = vadd.s32 %v3397, %v3403
        %vm3406 = vc.u32 %v3404, %v3400
        %v3407 = vsel %vm3406, 1, 0
        %v3408 = vadd.s32 %v3404, %v3400
        %v3409 = vadd.s32 %v3405, %v3407
        %v3410 = vadd.s32 %v3409, %v3399
        %v3411 = vadd.s32 %v3410, %v3401
        %v3412 = vmul.u32 %v3367, %v3358
        %v3413 = vadd.s32 %v3389, %v3408
        %vm3414 = vc.u32 %v3389, %v3408
        %v3415 = vadd.s32 %v3411, 1
        %v3416 = vsel %vm3414, %v3415, %v3411
        %v3417 = vadd.s32 %v3412, %v3416
        %v3418 = vadd.s32 %v3417, 536870912
        %v3419 = vshrl.u32 %v3418, 30
        %v3420 = vshll.u32 %v3419, 30
        %v3421 = vsub.s32 %v3417, %v3420
        %vm3422 = vcmp.lt.s32.totalorder %v3421, 0
        %v3423 = vsub.s32 0, %v3421
        %v3424 = vsel %vm3422, %v3423, %v3421
        %v3425 = vclz %v3424
        %v3426 = vsub.s32 %v3425, 2
        %vm3427 = vcmp.gt.s32.totalorder 0, %v3426
        %v3428 = vsel %vm3427, 0, %v3426
        %v3429 = vsub.s32 32, %v3428
        %v3430 = vshll.u32 %v3421, %v3428
        %v3431 = vshrl.u32 %v3413, %v3429
        %v3432 = vor.u32 %v3430, %v3431
        %v3433 = vsub.s32 4294967266, %v3428
        %v3434 = vadd.s32 %v3433, 127
        %v3435 = vshll.u32 %v3434, 23
        %v3436 = vor.u32 4788187, %v3435
        %v3437 = vand.u32 2147483647, %v3436
        %v3439 = vcvt.s32.f32 %v3432
        %v3440 = vmul.f32 %v3439, %v3437
        %v3441 = vxor.u32 %v3440, 2147483648
        %v3442 = vsel %vm3321, %v3441, %v3440
        %v3443 = vsub.s32 4, %v3419
        %v3444 = vsel %vm3321, %v3443, %v3419
        %v3445 = vsel %vm3320, %v669, %v3442
        %v3446 = vsel %vm3320, 0, %v3444
        %v3447 = vmul.f32 %v3445, %v3445
        %v3448 = vmul.f32 %v3447, -0.001358992
        %v3449 = vadd.f32 %v3448, 0.041655596
        %v3450 = vmul.f32 %v3447, %v3449
        %v3451 = vadd.f32 %v3450, -0.4999988
        %v3452 = vmul.f32 %v3447, %v3451
        %v3453 = vadd.f32 1.0, %v3452
        %v3454 = vmul.f32 %v3445, %v3445
        %v3455 = vmul.f32 %v3454, -0.00019511016
        %v3456 = vadd.f32 %v3455, 0.008332121
        %v3457 = vmul.f32 %v3454, %v3456
        %v3458 = vadd.f32 %v3457, -0.16666654
        %v3459 = vmul.f32 %v3454, %v3458
        %v3460 = vadd.f32 %v3459, 1.0
        %v3461 = vmul.f32 %v3460, %v3445
        %vm3462 = vweird.f32 %v669
        %v3463 = vadd.s32 %v3446, 3
        %v3464 = vand.u32 %v3463, 3
        %vm3465 = vcmp.lt.s32.totalorder %v3464, 2
        %vm3466 = vcmp.eq.s32.totalorder %v3464, 0
        %v3467 = vxor.u32 %v3461, 2147483648
        %v3468 = vsel %vm3466, %v3453, %v3467
        %vm3469 = vcmp.eq.s32.totalorder %v3464, 2
        %v3470 = vxor.u32 %v3453, 2147483648
        %v3471 = vsel %vm3469, %v3470, %v3461
        %v3472 = vsel %vm3465, %v3468, %v3471
        %v3473 = vsel %vm3462, nan, %v3472
        %v3474 = vand.u32 2147483647, %v670
        %vm3475 = vcmp.le.f32.partialorder %v3474, 0.7853982
        %vm3476 = vcmp.lt.s32.totalorder %v670, 0
        %v3477 = vand.u32 %v670, 2139095040
        %v3478 = vshrl.u32 %v3477, 23
        %v3479 = vsub.s32 %v3478, 127
        %v3480 = vand.u32 2147483647, %v670
        %v3481 = vand.u32 %v3480, 8388607
        %v3482 = vor.u32 %v3481, 8388608
        %v3483 = vsub.s32 0, %v3482
        %v3484 = vadd.s32 %v3479, 1
        %vm3485 = vcmp.gt.s32.totalorder %v3484, 0
        %v3486 = vsel %vm3485, %v3484, 0
        %v3487 = vshrl.u32 %v3486, 5
        %v3488 = vand.u32 %v3486, 31
        %v3489 = vsub.s32 32, %v3488
        %v3490 = vshrl.u32 683565275, %v3489
        %v3491 = vshll.u32 683565275, %v3488
        %v3492 = vshrl.u32 2475754826, %v3489
        %v3493 = vor.u32 %v3491, %v3492
        %v3494 = vshll.u32 2475754826, %v3488
        %v3495 = vshrl.u32 2131351028, %v3489
        %v3496 = vor.u32 %v3494, %v3495
        %v3497 = vshll.u32 2131351028, %v3488
        %v3498 = vshrl.u32 2102212464, %v3489
        %v3499 = vor.u32 %v3497, %v3498
        %v3500 = vshll.u32 2102212464, %v3488
        %v3501 = vshrl.u32 920167782, %v3489
        %v3502 = vor.u32 %v3500, %v3501
        %v3503 = vshll.u32 920167782, %v3488
        %v3504 = vshrl.u32 1326507024, %v3489
        %v3505 = vor.u32 %v3503, %v3504
        %vm3506 = vcmp.lt.s32.totalorder %v3487, 1
        %vm3507 = vcmp.lt.s32.totalorder %v3487, 2
        %vm3508 = vcmp.lt.s32.totalorder %v3487, 3
        %vm3509 = vcmp.lt.s32.totalorder %v3487, 4
        %v3510 = vsel %vm3506, %v3490, %v3493
        %v3511 = vsel %vm3509, %v3499, 2102212464
        %v3512 = vsel %vm3508, %v3496, %v3511
        %v3513 = vsel %vm3507, %v3510, %v3512
        %v3514 = vsel %vm3506, %v3493, %v3496
        %v3515 = vsel %vm3509, %v3502, 920167782
        %v3516 = vsel %vm3508, %v3499, %v3515
        %v3517 = vsel %vm3507, %v3514, %v3516
        %v3518 = vsel %vm3506, %v3496, %v3499
        %v3519 = vsel %vm3509, %v3505, 1326507024
        %v3520 = vsel %vm3508, %v3502, %v3519
        %v3521 = vsel %vm3507, %v3518, %v3520
        %v3522 = vshll.u32 %v3482, 8
        %v3523 = vand.u32 %v3522, 65535
        %v3524 = vshrl.u32 %v3522, 16
        %v3525 = vand.u32 %v3521, 65535
        %v3526 = vshrl.u32 %v3521, 16
        %v3527 = vmul.u32 %v3523, %v3525
        %v3528 = vmul.u32 %v3523, %v3526
        %v3529 = vmul.u32 %v3524, %v3525
        %v3530 = vmul.u32 %v3524, %v3526
        %v3531 = vshll.u32 %v3528, 16
        %v3532 = vshrl.u32 %v3528, 16
        %v3533 = vshll.u32 %v3529, 16
        %v3534 = vshrl.u32 %v3529, 16
        %vm3535 = vc.u32 %v3527, %v3531
        %v3536 = vsel %vm3535, 1, 0
        %v3537 = vadd.s32 %v3527, %v3531
        %v3538 = vadd.s32 %v3530, %v3536
        %vm3539 = vc.u32 %v3537, %v3533
        %v3540 = vsel %vm3539, 1, 0
        %v3541 = vadd.s32 %v3537, %v3533
        %v3542 = vadd.s32 %v3538, %v3540
        %v3543 = vadd.s32 %v3542, %v3532
        %v3544 = vadd.s32 %v3543, %v3534
        %v3545 = vand.u32 %v3522, 65535
        %v3546 = vshrl.u32 %v3522, 16
        %v3547 = vand.u32 %v3517, 65535
        %v3548 = vshrl.u32 %v3517, 16
        %v3549 = vmul.u32 %v3545, %v3547
        %v3550 = vmul.u32 %v3545, %v3548
        %v3551 = vmul.u32 %v3546, %v3547
        %v3552 = vmul.u32 %v3546, %v3548
        %v3553 = vshll.u32 %v3550, 16
        %v3554 = vshrl.u32 %v3550, 16
        %v3555 = vshll.u32 %v3551, 16
        %v3556 = vshrl.u32 %v3551, 16
        %vm3557 = vc.u32 %v3549, %v3553
        %v3558 = vsel %vm3557, 1, 0
        %v3559 = vadd.s32 %v3549, %v3553
        %v3560 = vadd.s32 %v3552, %v3558
        %vm3561 = vc.u32 %v3559, %v3555
        %v3562 = vsel %vm3561, 1, 0
        %v3563 = vadd.s32 %v3559, %v3555
        %v3564 = vadd.s32 %v3560, %v3562
        %v3565 = vadd.s32 %v3564, %v3554
        %v3566 = vadd.s32 %v3565, %v3556
        %v3567 = vmul.u32 %v3522, %v3513
        %v3568 = vadd.s32 %v3544, %v3563
        %vm3569 = vc.u32 %v3544, %v3563
        %v3570 = vadd.s32 %v3566, 1
        %v3571 = vsel %vm3569, %v3570, %v3566
        %v3572 = vadd.s32 %v3567, %v3571
        %v3573 = vadd.s32 %v3572, 536870912
        %v3574 = vshrl.u32 %v3573, 30
        %v3575 = vshll.u32 %v3574, 30
        %v3576 = vsub.s32 %v3572, %v3575
        %vm3577 = vcmp.lt.s32.totalorder %v3576, 0
        %v3578 = vsub.s32 0, %v3576
        %v3579 = vsel %vm3577, %v3578, %v3576
        %v3580 = vclz %v3579
        %v3581 = vsub.s32 %v3580, 2
        %vm3582 = vcmp.gt.s32.totalorder 0, %v3581
        %v3583 = vsel %vm3582, 0, %v3581
        %v3584 = vsub.s32 32, %v3583
        %v3585 = vshll.u32 %v3576, %v3583
        %v3586 = vshrl.u32 %v3568, %v3584
        %v3587 = vor.u32 %v3585, %v3586
        %v3588 = vsub.s32 4294967266, %v3583
        %v3589 = vadd.s32 %v3588, 127
        %v3590 = vshll.u32 %v3589, 23
        %v3591 = vor.u32 4788187, %v3590
        %v3592 = vand.u32 2147483647, %v3591
        %v3594 = vcvt.s32.f32 %v3587
        %v3595 = vmul.f32 %v3594, %v3592
        %v3596 = vxor.u32 %v3595, 2147483648
        %v3597 = vsel %vm3476, %v3596, %v3595
        %v3598 = vsub.s32 4, %v3574
        %v3599 = vsel %vm3476, %v3598, %v3574
        %v3600 = vsel %vm3475, %v670, %v3597
        %v3601 = vsel %vm3475, 0, %v3599
        %v3602 = vmul.f32 %v3600, %v3600
        %v3603 = vmul.f32 %v3602, -0.001358992
        %v3604 = vadd.f32 %v3603, 0.041655596
        %v3605 = vmul.f32 %v3602, %v3604
        %v3606 = vadd.f32 %v3605, -0.4999988
        %v3607 = vmul.f32 %v3602, %v3606
        %v3608 = vadd.f32 1.0, %v3607
        %v3609 = vmul.f32 %v3600, %v3600
        %v3610 = vmul.f32 %v3609, -0.00019511016
        %v3611 = vadd.f32 %v3610, 0.008332121
        %v3612 = vmul.f32 %v3609, %v3611
        %v3613 = vadd.f32 %v3612, -0.16666654
        %v3614 = vmul.f32 %v3609, %v3613
        %v3615 = vadd.f32 %v3614, 1.0
        %v3616 = vmul.f32 %v3615, %v3600
        %vm3617 = vweird.f32 %v670
        %v3618 = vadd.s32 %v3601, 3
        %v3619 = vand.u32 %v3618, 3
        %vm3620 = vcmp.lt.s32.totalorder %v3619, 2
        %vm3621 = vcmp.eq.s32.totalorder %v3619, 0
        %v3622 = vxor.u32 %v3616, 2147483648
        %v3623 = vsel %vm3621, %v3608, %v3622
        %vm3624 = vcmp.eq.s32.totalorder %v3619, 2
        %v3625 = vxor.u32 %v3608, 2147483648
        %v3626 = vsel %vm3624, %v3625, %v3616
        %v3627 = vsel %vm3620, %v3623, %v3626
        %v3628 = vsel %vm3617, nan, %v3627
        %v3629 = vand.u32 2147483647, %v671
        %vm3630 = vcmp.le.f32.partialorder %v3629, 0.7853982
        %vm3631 = vcmp.lt.s32.totalorder %v671, 0
        %v3632 = vand.u32 %v671, 2139095040
        %v3633 = vshrl.u32 %v3632, 23
        %v3634 = vsub.s32 %v3633, 127
        %v3635 = vand.u32 2147483647, %v671
        %v3636 = vand.u32 %v3635, 8388607
        %v3637 = vor.u32 %v3636, 8388608
        %v3638 = vsub.s32 0, %v3637
        %v3639 = vadd.s32 %v3634, 1
        %vm3640 = vcmp.gt.s32.totalorder %v3639, 0
        %v3641 = vsel %vm3640, %v3639, 0
        %v3642 = vshrl.u32 %v3641, 5
        %v3643 = vand.u32 %v3641, 31
        %v3644 = vsub.s32 32, %v3643
        %v3645 = vshrl.u32 683565275, %v3644
        %v3646 = vshll.u32 683565275, %v3643
        %v3647 = vshrl.u32 2475754826, %v3644
        %v3648 = vor.u32 %v3646, %v3647
        %v3649 = vshll.u32 2475754826, %v3643
        %v3650 = vshrl.u32 2131351028, %v3644
        %v3651 = vor.u32 %v3649, %v3650
        %v3652 = vshll.u32 2131351028, %v3643
        %v3653 = vshrl.u32 2102212464, %v3644
        %v3654 = vor.u32 %v3652, %v3653
        %v3655 = vshll.u32 2102212464, %v3643
        %v3656 = vshrl.u32 920167782, %v3644
        %v3657 = vor.u32 %v3655, %v3656
        %v3658 = vshll.u32 920167782, %v3643
        %v3659 = vshrl.u32 1326507024, %v3644
        %v3660 = vor.u32 %v3658, %v3659
        %vm3661 = vcmp.lt.s32.totalorder %v3642, 1
        %vm3662 = vcmp.lt.s32.totalorder %v3642, 2
        %vm3663 = vcmp.lt.s32.totalorder %v3642, 3
        %vm3664 = vcmp.lt.s32.totalorder %v3642, 4
        %v3665 = vsel %vm3661, %v3645, %v3648
        %v3666 = vsel %vm3664, %v3654, 2102212464
        %v3667 = vsel %vm3663, %v3651, %v3666
        %v3668 = vsel %vm3662, %v3665, %v3667
        %v3669 = vsel %vm3661, %v3648, %v3651
        %v3670 = vsel %vm3664, %v3657, 920167782
        %v3671 = vsel %vm3663, %v3654, %v3670
        %v3672 = vsel %vm3662, %v3669, %v3671
        %v3673 = vsel %vm3661, %v3651, %v3654
        %v3674 = vsel %vm3664, %v3660, 1326507024
        %v3675 = vsel %vm3663, %v3657, %v3674
        %v3676 = vsel %vm3662, %v3673, %v3675
        %v3677 = vshll.u32 %v3637, 8
        %v3678 = vand.u32 %v3677, 65535
        %v3679 = vshrl.u32 %v3677, 16
        %v3680 = vand.u32 %v3676, 65535
        %v3681 = vshrl.u32 %v3676, 16
        %v3682 = vmul.u32 %v3678, %v3680
        %v3683 = vmul.u32 %v3678, %v3681
        %v3684 = vmul.u32 %v3679, %v3680
        %v3685 = vmul.u32 %v3679, %v3681
        %v3686 = vshll.u32 %v3683, 16
        %v3687 = vshrl.u32 %v3683, 16
        %v3688 = vshll.u32 %v3684, 16
        %v3689 = vshrl.u32 %v3684, 16
        %vm3690 = vc.u32 %v3682, %v3686
        %v3691 = vsel %vm3690, 1, 0
        %v3692 = vadd.s32 %v3682, %v3686
        %v3693 = vadd.s32 %v3685, %v3691
        %vm3694 = vc.u32 %v3692, %v3688
        %v3695 = vsel %vm3694, 1, 0
        %v3696 = vadd.s32 %v3692, %v3688
        %v3697 = vadd.s32 %v3693, %v3695
        %v3698 = vadd.s32 %v3697, %v3687
        %v3699 = vadd.s32 %v3698, %v3689
        %v3700 = vand.u32 %v3677, 65535
        %v3701 = vshrl.u32 %v3677, 16
        %v3702 = vand.u32 %v3672, 65535
        %v3703 = vshrl.u32 %v3672, 16
        %v3704 = vmul.u32 %v3700, %v3702
        %v3705 = vmul.u32 %v3700, %v3703
        %v3706 = vmul.u32 %v3701, %v3702
        %v3707 = vmul.u32 %v3701, %v3703
        %v3708 = vshll.u32 %v3705, 16
        %v3709 = vshrl.u32 %v3705, 16
        %v3710 = vshll.u32 %v3706, 16
        %v3711 = vshrl.u32 %v3706, 16
        %vm3712 = vc.u32 %v3704, %v3708
        %v3713 = vsel %vm3712, 1, 0
        %v3714 = vadd.s32 %v3704, %v3708
        %v3715 = vadd.s32 %v3707, %v3713
        %vm3716 = vc.u32 %v3714, %v3710
        %v3717 = vsel %vm3716, 1, 0
        %v3718 = vadd.s32 %v3714, %v3710
        %v3719 = vadd.s32 %v3715, %v3717
        %v3720 = vadd.s32 %v3719, %v3709
        %v3721 = vadd.s32 %v3720, %v3711
        %v3722 = vmul.u32 %v3677, %v3668
        %v3723 = vadd.s32 %v3699, %v3718
        %vm3724 = vc.u32 %v3699, %v3718
        %v3725 = vadd.s32 %v3721, 1
        %v3726 = vsel %vm3724, %v3725, %v3721
        %v3727 = vadd.s32 %v3722, %v3726
        %v3728 = vadd.s32 %v3727, 536870912
        %v3729 = vshrl.u32 %v3728, 30
        %v3730 = vshll.u32 %v3729, 30
        %v3731 = vsub.s32 %v3727, %v3730
        %vm3732 = vcmp.lt.s32.totalorder %v3731, 0
        %v3733 = vsub.s32 0, %v3731
        %v3734 = vsel %vm3732, %v3733, %v3731
        %v3735 = vclz %v3734
        %v3736 = vsub.s32 %v3735, 2
        %vm3737 = vcmp.gt.s32.totalorder 0, %v3736
        %v3738 = vsel %vm3737, 0, %v3736
        %v3739 = vsub.s32 32, %v3738
        %v3740 = vshll.u32 %v3731, %v3738
        %v3741 = vshrl.u32 %v3723, %v3739
        %v3742 = vor.u32 %v3740, %v3741
        %v3743 = vsub.s32 4294967266, %v3738
        %v3744 = vadd.s32 %v3743, 127
        %v3745 = vshll.u32 %v3744, 23
        %v3746 = vor.u32 4788187, %v3745
        %v3747 = vand.u32 2147483647, %v3746
        %v3749 = vcvt.s32.f32 %v3742
        %v3750 = vmul.f32 %v3749, %v3747
        %v3751 = vxor.u32 %v3750, 2147483648
        %v3752 = vsel %vm3631, %v3751, %v3750
        %v3753 = vsub.s32 4, %v3729
        %v3754 = vsel %vm3631, %v3753, %v3729
        %v3755 = vsel %vm3630, %v671, %v3752
        %v3756 = vsel %vm3630, 0, %v3754
        %v3757 = vmul.f32 %v3755, %v3755
        %v3758 = vmul.f32 %v3757, -0.001358992
        %v3759 = vadd.f32 %v3758, 0.041655596
        %v3760 = vmul.f32 %v3757, %v3759
        %v3761 = vadd.f32 %v3760, -0.4999988
        %v3762 = vmul.f32 %v3757, %v3761
        %v3763 = vadd.f32 1.0, %v3762
        %v3764 = vmul.f32 %v3755, %v3755
        %v3765 = vmul.f32 %v3764, -0.00019511016
        %v3766 = vadd.f32 %v3765, 0.008332121
        %v3767 = vmul.f32 %v3764, %v3766
        %v3768 = vadd.f32 %v3767, -0.16666654
        %v3769 = vmul.f32 %v3764, %v3768
        %v3770 = vadd.f32 %v3769, 1.0
        %v3771 = vmul.f32 %v3770, %v3755
        %vm3772 = vweird.f32 %v671
        %v3773 = vadd.s32 %v3756, 3
        %v3774 = vand.u32 %v3773, 3
        %vm3775 = vcmp.lt.s32.totalorder %v3774, 2
        %vm3776 = vcmp.eq.s32.totalorder %v3774, 0
        %v3777 = vxor.u32 %v3771, 2147483648
        %v3778 = vsel %vm3776, %v3763, %v3777
        %vm3779 = vcmp.eq.s32.totalorder %v3774, 2
        %v3780 = vxor.u32 %v3763, 2147483648
        %v3781 = vsel %vm3779, %v3780, %v3771
        %v3782 = vsel %vm3775, %v3778, %v3781
        %v3783 = vsel %vm3772, nan, %v3782
        %v3784 = vand.u32 2147483647, %v672
        %vm3785 = vcmp.le.f32.partialorder %v3784, 0.7853982
        %vm3786 = vcmp.lt.s32.totalorder %v672, 0
        %v3787 = vand.u32 %v672, 2139095040
        %v3788 = vshrl.u32 %v3787, 23
        %v3789 = vsub.s32 %v3788, 127
        %v3790 = vand.u32 2147483647, %v672
        %v3791 = vand.u32 %v3790, 8388607
        %v3792 = vor.u32 %v3791, 8388608
        %v3793 = vsub.s32 0, %v3792
        %v3794 = vadd.s32 %v3789, 1
        %vm3795 = vcmp.gt.s32.totalorder %v3794, 0
        %v3796 = vsel %vm3795, %v3794, 0
        %v3797 = vshrl.u32 %v3796, 5
        %v3798 = vand.u32 %v3796, 31
        %v3799 = vsub.s32 32, %v3798
        %v3800 = vshrl.u32 683565275, %v3799
        %v3801 = vshll.u32 683565275, %v3798
        %v3802 = vshrl.u32 2475754826, %v3799
        %v3803 = vor.u32 %v3801, %v3802
        %v3804 = vshll.u32 2475754826, %v3798
        %v3805 = vshrl.u32 2131351028, %v3799
        %v3806 = vor.u32 %v3804, %v3805
        %v3807 = vshll.u32 2131351028, %v3798
        %v3808 = vshrl.u32 2102212464, %v3799
        %v3809 = vor.u32 %v3807, %v3808
        %v3810 = vshll.u32 2102212464, %v3798
        %v3811 = vshrl.u32 920167782, %v3799
        %v3812 = vor.u32 %v3810, %v3811
        %v3813 = vshll.u32 920167782, %v3798
        %v3814 = vshrl.u32 1326507024, %v3799
        %v3815 = vor.u32 %v3813, %v3814
        %vm3816 = vcmp.lt.s32.totalorder %v3797, 1
        %vm3817 = vcmp.lt.s32.totalorder %v3797, 2
        %vm3818 = vcmp.lt.s32.totalorder %v3797, 3
        %vm3819 = vcmp.lt.s32.totalorder %v3797, 4
        %v3820 = vsel %vm3816, %v3800, %v3803
        %v3821 = vsel %vm3819, %v3809, 2102212464
        %v3822 = vsel %vm3818, %v3806, %v3821
        %v3823 = vsel %vm3817, %v3820, %v3822
        %v3824 = vsel %vm3816, %v3803, %v3806
        %v3825 = vsel %vm3819, %v3812, 920167782
        %v3826 = vsel %vm3818, %v3809, %v3825
        %v3827 = vsel %vm3817, %v3824, %v3826
        %v3828 = vsel %vm3816, %v3806, %v3809
        %v3829 = vsel %vm3819, %v3815, 1326507024
        %v3830 = vsel %vm3818, %v3812, %v3829
        %v3831 = vsel %vm3817, %v3828, %v3830
        %v3832 = vshll.u32 %v3792, 8
        %v3833 = vand.u32 %v3832, 65535
        %v3834 = vshrl.u32 %v3832, 16
        %v3835 = vand.u32 %v3831, 65535
        %v3836 = vshrl.u32 %v3831, 16
        %v3837 = vmul.u32 %v3833, %v3835
        %v3838 = vmul.u32 %v3833, %v3836
        %v3839 = vmul.u32 %v3834, %v3835
        %v3840 = vmul.u32 %v3834, %v3836
        %v3841 = vshll.u32 %v3838, 16
        %v3842 = vshrl.u32 %v3838, 16
        %v3843 = vshll.u32 %v3839, 16
        %v3844 = vshrl.u32 %v3839, 16
        %vm3845 = vc.u32 %v3837, %v3841
        %v3846 = vsel %vm3845, 1, 0
        %v3847 = vadd.s32 %v3837, %v3841
        %v3848 = vadd.s32 %v3840, %v3846
        %vm3849 = vc.u32 %v3847, %v3843
        %v3850 = vsel %vm3849, 1, 0
        %v3851 = vadd.s32 %v3847, %v3843
        %v3852 = vadd.s32 %v3848, %v3850
        %v3853 = vadd.s32 %v3852, %v3842
        %v3854 = vadd.s32 %v3853, %v3844
        %v3855 = vand.u32 %v3832, 65535
        %v3856 = vshrl.u32 %v3832, 16
        %v3857 = vand.u32 %v3827, 65535
        %v3858 = vshrl.u32 %v3827, 16
        %v3859 = vmul.u32 %v3855, %v3857
        %v3860 = vmul.u32 %v3855, %v3858
        %v3861 = vmul.u32 %v3856, %v3857
        %v3862 = vmul.u32 %v3856, %v3858
        %v3863 = vshll.u32 %v3860, 16
        %v3864 = vshrl.u32 %v3860, 16
        %v3865 = vshll.u32 %v3861, 16
        %v3866 = vshrl.u32 %v3861, 16
        %vm3867 = vc.u32 %v3859, %v3863
        %v3868 = vsel %vm3867, 1, 0
        %v3869 = vadd.s32 %v3859, %v3863
        %v3870 = vadd.s32 %v3862, %v3868
        %vm3871 = vc.u32 %v3869, %v3865
        %v3872 = vsel %vm3871, 1, 0
        %v3873 = vadd.s32 %v3869, %v3865
        %v3874 = vadd.s32 %v3870, %v3872
        %v3875 = vadd.s32 %v3874, %v3864
        %v3876 = vadd.s32 %v3875, %v3866
        %v3877 = vmul.u32 %v3832, %v3823
        %v3878 = vadd.s32 %v3854, %v3873
        %vm3879 = vc.u32 %v3854, %v3873
        %v3880 = vadd.s32 %v3876, 1
        %v3881 = vsel %vm3879, %v3880, %v3876
        %v3882 = vadd.s32 %v3877, %v3881
        %v3883 = vadd.s32 %v3882, 536870912
        %v3884 = vshrl.u32 %v3883, 30
        %v3885 = vshll.u32 %v3884, 30
        %v3886 = vsub.s32 %v3882, %v3885
        %vm3887 = vcmp.lt.s32.totalorder %v3886, 0
        %v3888 = vsub.s32 0, %v3886
        %v3889 = vsel %vm3887, %v3888, %v3886
        %v3890 = vclz %v3889
        %v3891 = vsub.s32 %v3890, 2
        %vm3892 = vcmp.gt.s32.totalorder 0, %v3891
        %v3893 = vsel %vm3892, 0, %v3891
        %v3894 = vsub.s32 32, %v3893
        %v3895 = vshll.u32 %v3886, %v3893
        %v3896 = vshrl.u32 %v3878, %v3894
        %v3897 = vor.u32 %v3895, %v3896
        %v3898 = vsub.s32 4294967266, %v3893
        %v3899 = vadd.s32 %v3898, 127
        %v3900 = vshll.u32 %v3899, 23
        %v3901 = vor.u32 4788187, %v3900
        %v3902 = vand.u32 2147483647, %v3901
        %v3904 = vcvt.s32.f32 %v3897
        %v3905 = vmul.f32 %v3904, %v3902
        %v3906 = vxor.u32 %v3905, 2147483648
        %v3907 = vsel %vm3786, %v3906, %v3905
        %v3908 = vsub.s32 4, %v3884
        %v3909 = vsel %vm3786, %v3908, %v3884
        %v3910 = vsel %vm3785, %v672, %v3907
        %v3911 = vsel %vm3785, 0, %v3909
        %v3912 = vmul.f32 %v3910, %v3910
        %v3913 = vmul.f32 %v3912, -0.001358992
        %v3914 = vadd.f32 %v3913, 0.041655596
        %v3915 = vmul.f32 %v3912, %v3914
        %v3916 = vadd.f32 %v3915, -0.4999988
        %v3917 = vmul.f32 %v3912, %v3916
        %v3918 = vadd.f32 1.0, %v3917
        %v3919 = vmul.f32 %v3910, %v3910
        %v3920 = vmul.f32 %v3919, -0.00019511016
        %v3921 = vadd.f32 %v3920, 0.008332121
        %v3922 = vmul.f32 %v3919, %v3921
        %v3923 = vadd.f32 %v3922, -0.16666654
        %v3924 = vmul.f32 %v3919, %v3923
        %v3925 = vadd.f32 %v3924, 1.0
        %v3926 = vmul.f32 %v3925, %v3910
        %vm3927 = vweird.f32 %v672
        %v3928 = vadd.s32 %v3911, 3
        %v3929 = vand.u32 %v3928, 3
        %vm3930 = vcmp.lt.s32.totalorder %v3929, 2
        %vm3931 = vcmp.eq.s32.totalorder %v3929, 0
        %v3932 = vxor.u32 %v3926, 2147483648
        %v3933 = vsel %vm3931, %v3918, %v3932
        %vm3934 = vcmp.eq.s32.totalorder %v3929, 2
        %v3935 = vxor.u32 %v3918, 2147483648
        %v3936 = vsel %vm3934, %v3935, %v3926
        %v3937 = vsel %vm3930, %v3933, %v3936
        %v3938 = vsel %vm3927, nan, %v3937
        %v3939 = vand.u32 2147483647, %v673
        %vm3940 = vcmp.le.f32.partialorder %v3939, 0.7853982
        %vm3941 = vcmp.lt.s32.totalorder %v673, 0
        %v3942 = vand.u32 %v673, 2139095040
        %v3943 = vshrl.u32 %v3942, 23
        %v3944 = vsub.s32 %v3943, 127
        %v3945 = vand.u32 2147483647, %v673
        %v3946 = vand.u32 %v3945, 8388607
        %v3947 = vor.u32 %v3946, 8388608
        %v3948 = vsub.s32 0, %v3947
        %v3949 = vadd.s32 %v3944, 1
        %vm3950 = vcmp.gt.s32.totalorder %v3949, 0
        %v3951 = vsel %vm3950, %v3949, 0
        %v3952 = vshrl.u32 %v3951, 5
        %v3953 = vand.u32 %v3951, 31
        %v3954 = vsub.s32 32, %v3953
        %v3955 = vshrl.u32 683565275, %v3954
        %v3956 = vshll.u32 683565275, %v3953
        %v3957 = vshrl.u32 2475754826, %v3954
        %v3958 = vor.u32 %v3956, %v3957
        %v3959 = vshll.u32 2475754826, %v3953
        %v3960 = vshrl.u32 2131351028, %v3954
        %v3961 = vor.u32 %v3959, %v3960
        %v3962 = vshll.u32 2131351028, %v3953
        %v3963 = vshrl.u32 2102212464, %v3954
        %v3964 = vor.u32 %v3962, %v3963
        %v3965 = vshll.u32 2102212464, %v3953
        %v3966 = vshrl.u32 920167782, %v3954
        %v3967 = vor.u32 %v3965, %v3966
        %v3968 = vshll.u32 920167782, %v3953
        %v3969 = vshrl.u32 1326507024, %v3954
        %v3970 = vor.u32 %v3968, %v3969
        %vm3971 = vcmp.lt.s32.totalorder %v3952, 1
        %vm3972 = vcmp.lt.s32.totalorder %v3952, 2
        %vm3973 = vcmp.lt.s32.totalorder %v3952, 3
        %vm3974 = vcmp.lt.s32.totalorder %v3952, 4
        %v3975 = vsel %vm3971, %v3955, %v3958
        %v3976 = vsel %vm3974, %v3964, 2102212464
        %v3977 = vsel %vm3973, %v3961, %v3976
        %v3978 = vsel %vm3972, %v3975, %v3977
        %v3979 = vsel %vm3971, %v3958, %v3961
        %v3980 = vsel %vm3974, %v3967, 920167782
        %v3981 = vsel %vm3973, %v3964, %v3980
        %v3982 = vsel %vm3972, %v3979, %v3981
        %v3983 = vsel %vm3971, %v3961, %v3964
        %v3984 = vsel %vm3974, %v3970, 1326507024
        %v3985 = vsel %vm3973, %v3967, %v3984
        %v3986 = vsel %vm3972, %v3983, %v3985
        %v3987 = vshll.u32 %v3947, 8
        %v3988 = vand.u32 %v3987, 65535
        %v3989 = vshrl.u32 %v3987, 16
        %v3990 = vand.u32 %v3986, 65535
        %v3991 = vshrl.u32 %v3986, 16
        %v3992 = vmul.u32 %v3988, %v3990
        %v3993 = vmul.u32 %v3988, %v3991
        %v3994 = vmul.u32 %v3989, %v3990
        %v3995 = vmul.u32 %v3989, %v3991
        %v3996 = vshll.u32 %v3993, 16
        %v3997 = vshrl.u32 %v3993, 16
        %v3998 = vshll.u32 %v3994, 16
        %v3999 = vshrl.u32 %v3994, 16
        %vm4000 = vc.u32 %v3992, %v3996
        %v4001 = vsel %vm4000, 1, 0
        %v4002 = vadd.s32 %v3992, %v3996
        %v4003 = vadd.s32 %v3995, %v4001
        %vm4004 = vc.u32 %v4002, %v3998
        %v4005 = vsel %vm4004, 1, 0
        %v4006 = vadd.s32 %v4002, %v3998
        %v4007 = vadd.s32 %v4003, %v4005
        %v4008 = vadd.s32 %v4007, %v3997
        %v4009 = vadd.s32 %v4008, %v3999
        %v4010 = vand.u32 %v3987, 65535
        %v4011 = vshrl.u32 %v3987, 16
        %v4012 = vand.u32 %v3982, 65535
        %v4013 = vshrl.u32 %v3982, 16
        %v4014 = vmul.u32 %v4010, %v4012
        %v4015 = vmul.u32 %v4010, %v4013
        %v4016 = vmul.u32 %v4011, %v4012
        %v4017 = vmul.u32 %v4011, %v4013
        %v4018 = vshll.u32 %v4015, 16
        %v4019 = vshrl.u32 %v4015, 16
        %v4020 = vshll.u32 %v4016, 16
        %v4021 = vshrl.u32 %v4016, 16
        %vm4022 = vc.u32 %v4014, %v4018
        %v4023 = vsel %vm4022, 1, 0
        %v4024 = vadd.s32 %v4014, %v4018
        %v4025 = vadd.s32 %v4017, %v4023
        %vm4026 = vc.u32 %v4024, %v4020
        %v4027 = vsel %vm4026, 1, 0
        %v4028 = vadd.s32 %v4024, %v4020
        %v4029 = vadd.s32 %v4025, %v4027
        %v4030 = vadd.s32 %v4029, %v4019
        %v4031 = vadd.s32 %v4030, %v4021
        %v4032 = vmul.u32 %v3987, %v3978
        %v4033 = vadd.s32 %v4009, %v4028
        %vm4034 = vc.u32 %v4009, %v4028
        %v4035 = vadd.s32 %v4031, 1
        %v4036 = vsel %vm4034, %v4035, %v4031
        %v4037 = vadd.s32 %v4032, %v4036
        %v4038 = vadd.s32 %v4037, 536870912
        %v4039 = vshrl.u32 %v4038, 30
        %v4040 = vshll.u32 %v4039, 30
        %v4041 = vsub.s32 %v4037, %v4040
        %vm4042 = vcmp.lt.s32.totalorder %v4041, 0
        %v4043 = vsub.s32 0, %v4041
        %v4044 = vsel %vm4042, %v4043, %v4041
        %v4045 = vclz %v4044
        %v4046 = vsub.s32 %v4045, 2
        %vm4047 = vcmp.gt.s32.totalorder 0, %v4046
        %v4048 = vsel %vm4047, 0, %v4046
        %v4049 = vsub.s32 32, %v4048
        %v4050 = vshll.u32 %v4041, %v4048
        %v4051 = vshrl.u32 %v4033, %v4049
        %v4052 = vor.u32 %v4050, %v4051
        %v4053 = vsub.s32 4294967266, %v4048
        %v4054 = vadd.s32 %v4053, 127
        %v4055 = vshll.u32 %v4054, 23
        %v4056 = vor.u32 4788187, %v4055
        %v4057 = vand.u32 2147483647, %v4056
        %v4059 = vcvt.s32.f32 %v4052
        %v4060 = vmul.f32 %v4059, %v4057
        %v4061 = vxor.u32 %v4060, 2147483648
        %v4062 = vsel %vm3941, %v4061, %v4060
        %v4063 = vsub.s32 4, %v4039
        %v4064 = vsel %vm3941, %v4063, %v4039
        %v4065 = vsel %vm3940, %v673, %v4062
        %v4066 = vsel %vm3940, 0, %v4064
        %v4067 = vmul.f32 %v4065, %v4065
        %v4068 = vmul.f32 %v4067, -0.001358992
        %v4069 = vadd.f32 %v4068, 0.041655596
        %v4070 = vmul.f32 %v4067, %v4069
        %v4071 = vadd.f32 %v4070, -0.4999988
        %v4072 = vmul.f32 %v4067, %v4071
        %v4073 = vadd.f32 1.0, %v4072
        %v4074 = vmul.f32 %v4065, %v4065
        %v4075 = vmul.f32 %v4074, -0.00019511016
        %v4076 = vadd.f32 %v4075, 0.008332121
        %v4077 = vmul.f32 %v4074, %v4076
        %v4078 = vadd.f32 %v4077, -0.16666654
        %v4079 = vmul.f32 %v4074, %v4078
        %v4080 = vadd.f32 %v4079, 1.0
        %v4081 = vmul.f32 %v4080, %v4065
        %vm4082 = vweird.f32 %v673
        %v4083 = vadd.s32 %v4066, 3
        %v4084 = vand.u32 %v4083, 3
        %vm4085 = vcmp.lt.s32.totalorder %v4084, 2
        %vm4086 = vcmp.eq.s32.totalorder %v4084, 0
        %v4087 = vxor.u32 %v4081, 2147483648
        %v4088 = vsel %vm4086, %v4073, %v4087
        %vm4089 = vcmp.eq.s32.totalorder %v4084, 2
        %v4090 = vxor.u32 %v4073, 2147483648
        %v4091 = vsel %vm4089, %v4090, %v4081
        %v4092 = vsel %vm4085, %v4088, %v4091
        %v4093 = vsel %vm4082, nan, %v4092
        %v4094 = vand.u32 2147483647, %v674
        %vm4095 = vcmp.le.f32.partialorder %v4094, 0.7853982
        %vm4096 = vcmp.lt.s32.totalorder %v674, 0
        %v4097 = vand.u32 %v674, 2139095040
        %v4098 = vshrl.u32 %v4097, 23
        %v4099 = vsub.s32 %v4098, 127
        %v4100 = vand.u32 2147483647, %v674
        %v4101 = vand.u32 %v4100, 8388607
        %v4102 = vor.u32 %v4101, 8388608
        %v4103 = vsub.s32 0, %v4102
        %v4104 = vadd.s32 %v4099, 1
        %vm4105 = vcmp.gt.s32.totalorder %v4104, 0
        %v4106 = vsel %vm4105, %v4104, 0
        %v4107 = vshrl.u32 %v4106, 5
        %v4108 = vand.u32 %v4106, 31
        %v4109 = vsub.s32 32, %v4108
        %v4110 = vshrl.u32 683565275, %v4109
        %v4111 = vshll.u32 683565275, %v4108
        %v4112 = vshrl.u32 2475754826, %v4109
        %v4113 = vor.u32 %v4111, %v4112
        %v4114 = vshll.u32 2475754826, %v4108
        %v4115 = vshrl.u32 2131351028, %v4109
        %v4116 = vor.u32 %v4114, %v4115
        %v4117 = vshll.u32 2131351028, %v4108
        %v4118 = vshrl.u32 2102212464, %v4109
        %v4119 = vor.u32 %v4117, %v4118
        %v4120 = vshll.u32 2102212464, %v4108
        %v4121 = vshrl.u32 920167782, %v4109
        %v4122 = vor.u32 %v4120, %v4121
        %v4123 = vshll.u32 920167782, %v4108
        %v4124 = vshrl.u32 1326507024, %v4109
        %v4125 = vor.u32 %v4123, %v4124
        %vm4126 = vcmp.lt.s32.totalorder %v4107, 1
        %vm4127 = vcmp.lt.s32.totalorder %v4107, 2
        %vm4128 = vcmp.lt.s32.totalorder %v4107, 3
        %vm4129 = vcmp.lt.s32.totalorder %v4107, 4
        %v4130 = vsel %vm4126, %v4110, %v4113
        %v4131 = vsel %vm4129, %v4119, 2102212464
        %v4132 = vsel %vm4128, %v4116, %v4131
        %v4133 = vsel %vm4127, %v4130, %v4132
        %v4134 = vsel %vm4126, %v4113, %v4116
        %v4135 = vsel %vm4129, %v4122, 920167782
        %v4136 = vsel %vm4128, %v4119, %v4135
        %v4137 = vsel %vm4127, %v4134, %v4136
        %v4138 = vsel %vm4126, %v4116, %v4119
        %v4139 = vsel %vm4129, %v4125, 1326507024
        %v4140 = vsel %vm4128, %v4122, %v4139
        %v4141 = vsel %vm4127, %v4138, %v4140
        %v4142 = vshll.u32 %v4102, 8
        %v4143 = vand.u32 %v4142, 65535
        %v4144 = vshrl.u32 %v4142, 16
        %v4145 = vand.u32 %v4141, 65535
        %v4146 = vshrl.u32 %v4141, 16
        %v4147 = vmul.u32 %v4143, %v4145
        %v4148 = vmul.u32 %v4143, %v4146
        %v4149 = vmul.u32 %v4144, %v4145
        %v4150 = vmul.u32 %v4144, %v4146
        %v4151 = vshll.u32 %v4148, 16
        %v4152 = vshrl.u32 %v4148, 16
        %v4153 = vshll.u32 %v4149, 16
        %v4154 = vshrl.u32 %v4149, 16
        %vm4155 = vc.u32 %v4147, %v4151
        %v4156 = vsel %vm4155, 1, 0
        %v4157 = vadd.s32 %v4147, %v4151
        %v4158 = vadd.s32 %v4150, %v4156
        %vm4159 = vc.u32 %v4157, %v4153
        %v4160 = vsel %vm4159, 1, 0
        %v4161 = vadd.s32 %v4157, %v4153
        %v4162 = vadd.s32 %v4158, %v4160
        %v4163 = vadd.s32 %v4162, %v4152
        %v4164 = vadd.s32 %v4163, %v4154
        %v4165 = vand.u32 %v4142, 65535
        %v4166 = vshrl.u32 %v4142, 16
        %v4167 = vand.u32 %v4137, 65535
        %v4168 = vshrl.u32 %v4137, 16
        %v4169 = vmul.u32 %v4165, %v4167
        %v4170 = vmul.u32 %v4165, %v4168
        %v4171 = vmul.u32 %v4166, %v4167
        %v4172 = vmul.u32 %v4166, %v4168
        %v4173 = vshll.u32 %v4170, 16
        %v4174 = vshrl.u32 %v4170, 16
        %v4175 = vshll.u32 %v4171, 16
        %v4176 = vshrl.u32 %v4171, 16
        %vm4177 = vc.u32 %v4169, %v4173
        %v4178 = vsel %vm4177, 1, 0
        %v4179 = vadd.s32 %v4169, %v4173
        %v4180 = vadd.s32 %v4172, %v4178
        %vm4181 = vc.u32 %v4179, %v4175
        %v4182 = vsel %vm4181, 1, 0
        %v4183 = vadd.s32 %v4179, %v4175
        %v4184 = vadd.s32 %v4180, %v4182
        %v4185 = vadd.s32 %v4184, %v4174
        %v4186 = vadd.s32 %v4185, %v4176
        %v4187 = vmul.u32 %v4142, %v4133
        %v4188 = vadd.s32 %v4164, %v4183
        %vm4189 = vc.u32 %v4164, %v4183
        %v4190 = vadd.s32 %v4186, 1
        %v4191 = vsel %vm4189, %v4190, %v4186
        %v4192 = vadd.s32 %v4187, %v4191
        %v4193 = vadd.s32 %v4192, 536870912
        %v4194 = vshrl.u32 %v4193, 30
        %v4195 = vshll.u32 %v4194, 30
        %v4196 = vsub.s32 %v4192, %v4195
        %vm4197 = vcmp.lt.s32.totalorder %v4196, 0
        %v4198 = vsub.s32 0, %v4196
        %v4199 = vsel %vm4197, %v4198, %v4196
        %v4200 = vclz %v4199
        %v4201 = vsub.s32 %v4200, 2
        %vm4202 = vcmp.gt.s32.totalorder 0, %v4201
        %v4203 = vsel %vm4202, 0, %v4201
        %v4204 = vsub.s32 32, %v4203
        %v4205 = vshll.u32 %v4196, %v4203
        %v4206 = vshrl.u32 %v4188, %v4204
        %v4207 = vor.u32 %v4205, %v4206
        %v4208 = vsub.s32 4294967266, %v4203
        %v4209 = vadd.s32 %v4208, 127
        %v4210 = vshll.u32 %v4209, 23
        %v4211 = vor.u32 4788187, %v4210
        %v4212 = vand.u32 2147483647, %v4211
        %v4214 = vcvt.s32.f32 %v4207
        %v4215 = vmul.f32 %v4214, %v4212
        %v4216 = vxor.u32 %v4215, 2147483648
        %v4217 = vsel %vm4096, %v4216, %v4215
        %v4218 = vsub.s32 4, %v4194
        %v4219 = vsel %vm4096, %v4218, %v4194
        %v4220 = vsel %vm4095, %v674, %v4217
        %v4221 = vsel %vm4095, 0, %v4219
        %v4222 = vmul.f32 %v4220, %v4220
        %v4223 = vmul.f32 %v4222, -0.001358992
        %v4224 = vadd.f32 %v4223, 0.041655596
        %v4225 = vmul.f32 %v4222, %v4224
        %v4226 = vadd.f32 %v4225, -0.4999988
        %v4227 = vmul.f32 %v4222, %v4226
        %v4228 = vadd.f32 1.0, %v4227
        %v4229 = vmul.f32 %v4220, %v4220
        %v4230 = vmul.f32 %v4229, -0.00019511016
        %v4231 = vadd.f32 %v4230, 0.008332121
        %v4232 = vmul.f32 %v4229, %v4231
        %v4233 = vadd.f32 %v4232, -0.16666654
        %v4234 = vmul.f32 %v4229, %v4233
        %v4235 = vadd.f32 %v4234, 1.0
        %v4236 = vmul.f32 %v4235, %v4220
        %vm4237 = vweird.f32 %v674
        %v4238 = vadd.s32 %v4221, 3
        %v4239 = vand.u32 %v4238, 3
        %vm4240 = vcmp.lt.s32.totalorder %v4239, 2
        %vm4241 = vcmp.eq.s32.totalorder %v4239, 0
        %v4242 = vxor.u32 %v4236, 2147483648
        %v4243 = vsel %vm4241, %v4228, %v4242
        %vm4244 = vcmp.eq.s32.totalorder %v4239, 2
        %v4245 = vxor.u32 %v4228, 2147483648
        %v4246 = vsel %vm4244, %v4245, %v4236
        %v4247 = vsel %vm4240, %v4243, %v4246
        %v4248 = vsel %vm4237, nan, %v4247
        %v4249 = vand.u32 2147483647, %v675
        %vm4250 = vcmp.le.f32.partialorder %v4249, 0.7853982
        %vm4251 = vcmp.lt.s32.totalorder %v675, 0
        %v4252 = vand.u32 %v675, 2139095040
        %v4253 = vshrl.u32 %v4252, 23
        %v4254 = vsub.s32 %v4253, 127
        %v4255 = vand.u32 2147483647, %v675
        %v4256 = vand.u32 %v4255, 8388607
        %v4257 = vor.u32 %v4256, 8388608
        %v4258 = vsub.s32 0, %v4257
        %v4259 = vadd.s32 %v4254, 1
        %vm4260 = vcmp.gt.s32.totalorder %v4259, 0
        %v4261 = vsel %vm4260, %v4259, 0
        %v4262 = vshrl.u32 %v4261, 5
        %v4263 = vand.u32 %v4261, 31
        %v4264 = vsub.s32 32, %v4263
        %v4265 = vshrl.u32 683565275, %v4264
        %v4266 = vshll.u32 683565275, %v4263
        %v4267 = vshrl.u32 2475754826, %v4264
        %v4268 = vor.u32 %v4266, %v4267
        %v4269 = vshll.u32 2475754826, %v4263
        %v4270 = vshrl.u32 2131351028, %v4264
        %v4271 = vor.u32 %v4269, %v4270
        %v4272 = vshll.u32 2131351028, %v4263
        %v4273 = vshrl.u32 2102212464, %v4264
        %v4274 = vor.u32 %v4272, %v4273
        %v4275 = vshll.u32 2102212464, %v4263
        %v4276 = vshrl.u32 920167782, %v4264
        %v4277 = vor.u32 %v4275, %v4276
        %v4278 = vshll.u32 920167782, %v4263
        %v4279 = vshrl.u32 1326507024, %v4264
        %v4280 = vor.u32 %v4278, %v4279
        %vm4281 = vcmp.lt.s32.totalorder %v4262, 1
        %vm4282 = vcmp.lt.s32.totalorder %v4262, 2
        %vm4283 = vcmp.lt.s32.totalorder %v4262, 3
        %vm4284 = vcmp.lt.s32.totalorder %v4262, 4
        %v4285 = vsel %vm4281, %v4265, %v4268
        %v4286 = vsel %vm4284, %v4274, 2102212464
        %v4287 = vsel %vm4283, %v4271, %v4286
        %v4288 = vsel %vm4282, %v4285, %v4287
        %v4289 = vsel %vm4281, %v4268, %v4271
        %v4290 = vsel %vm4284, %v4277, 920167782
        %v4291 = vsel %vm4283, %v4274, %v4290
        %v4292 = vsel %vm4282, %v4289, %v4291
        %v4293 = vsel %vm4281, %v4271, %v4274
        %v4294 = vsel %vm4284, %v4280, 1326507024
        %v4295 = vsel %vm4283, %v4277, %v4294
        %v4296 = vsel %vm4282, %v4293, %v4295
        %v4297 = vshll.u32 %v4257, 8
        %v4298 = vand.u32 %v4297, 65535
        %v4299 = vshrl.u32 %v4297, 16
        %v4300 = vand.u32 %v4296, 65535
        %v4301 = vshrl.u32 %v4296, 16
        %v4302 = vmul.u32 %v4298, %v4300
        %v4303 = vmul.u32 %v4298, %v4301
        %v4304 = vmul.u32 %v4299, %v4300
        %v4305 = vmul.u32 %v4299, %v4301
        %v4306 = vshll.u32 %v4303, 16
        %v4307 = vshrl.u32 %v4303, 16
        %v4308 = vshll.u32 %v4304, 16
        %v4309 = vshrl.u32 %v4304, 16
        %vm4310 = vc.u32 %v4302, %v4306
        %v4311 = vsel %vm4310, 1, 0
        %v4312 = vadd.s32 %v4302, %v4306
        %v4313 = vadd.s32 %v4305, %v4311
        %vm4314 = vc.u32 %v4312, %v4308
        %v4315 = vsel %vm4314, 1, 0
        %v4316 = vadd.s32 %v4312, %v4308
        %v4317 = vadd.s32 %v4313, %v4315
        %v4318 = vadd.s32 %v4317, %v4307
        %v4319 = vadd.s32 %v4318, %v4309
        %v4320 = vand.u32 %v4297, 65535
        %v4321 = vshrl.u32 %v4297, 16
        %v4322 = vand.u32 %v4292, 65535
        %v4323 = vshrl.u32 %v4292, 16
        %v4324 = vmul.u32 %v4320, %v4322
        %v4325 = vmul.u32 %v4320, %v4323
        %v4326 = vmul.u32 %v4321, %v4322
        %v4327 = vmul.u32 %v4321, %v4323
        %v4328 = vshll.u32 %v4325, 16
        %v4329 = vshrl.u32 %v4325, 16
        %v4330 = vshll.u32 %v4326, 16
        %v4331 = vshrl.u32 %v4326, 16
        %vm4332 = vc.u32 %v4324, %v4328
        %v4333 = vsel %vm4332, 1, 0
        %v4334 = vadd.s32 %v4324, %v4328
        %v4335 = vadd.s32 %v4327, %v4333
        %vm4336 = vc.u32 %v4334, %v4330
        %v4337 = vsel %vm4336, 1, 0
        %v4338 = vadd.s32 %v4334, %v4330
        %v4339 = vadd.s32 %v4335, %v4337
        %v4340 = vadd.s32 %v4339, %v4329
        %v4341 = vadd.s32 %v4340, %v4331
        %v4342 = vmul.u32 %v4297, %v4288
        %v4343 = vadd.s32 %v4319, %v4338
        %vm4344 = vc.u32 %v4319, %v4338
        %v4345 = vadd.s32 %v4341, 1
        %v4346 = vsel %vm4344, %v4345, %v4341
        %v4347 = vadd.s32 %v4342, %v4346
        %v4348 = vadd.s32 %v4347, 536870912
        %v4349 = vshrl.u32 %v4348, 30
        %v4350 = vshll.u32 %v4349, 30
        %v4351 = vsub.s32 %v4347, %v4350
        %vm4352 = vcmp.lt.s32.totalorder %v4351, 0
        %v4353 = vsub.s32 0, %v4351
        %v4354 = vsel %vm4352, %v4353, %v4351
        %v4355 = vclz %v4354
        %v4356 = vsub.s32 %v4355, 2
        %vm4357 = vcmp.gt.s32.totalorder 0, %v4356
        %v4358 = vsel %vm4357, 0, %v4356
        %v4359 = vsub.s32 32, %v4358
        %v4360 = vshll.u32 %v4351, %v4358
        %v4361 = vshrl.u32 %v4343, %v4359
        %v4362 = vor.u32 %v4360, %v4361
        %v4363 = vsub.s32 4294967266, %v4358
        %v4364 = vadd.s32 %v4363, 127
        %v4365 = vshll.u32 %v4364, 23
        %v4366 = vor.u32 4788187, %v4365
        %v4367 = vand.u32 2147483647, %v4366
        %v4369 = vcvt.s32.f32 %v4362
        %v4370 = vmul.f32 %v4369, %v4367
        %v4371 = vxor.u32 %v4370, 2147483648
        %v4372 = vsel %vm4251, %v4371, %v4370
        %v4373 = vsub.s32 4, %v4349
        %v4374 = vsel %vm4251, %v4373, %v4349
        %v4375 = vsel %vm4250, %v675, %v4372
        %v4376 = vsel %vm4250, 0, %v4374
        %v4377 = vmul.f32 %v4375, %v4375
        %v4378 = vmul.f32 %v4377, -0.001358992
        %v4379 = vadd.f32 %v4378, 0.041655596
        %v4380 = vmul.f32 %v4377, %v4379
        %v4381 = vadd.f32 %v4380, -0.4999988
        %v4382 = vmul.f32 %v4377, %v4381
        %v4383 = vadd.f32 1.0, %v4382
        %v4384 = vmul.f32 %v4375, %v4375
        %v4385 = vmul.f32 %v4384, -0.00019511016
        %v4386 = vadd.f32 %v4385, 0.008332121
        %v4387 = vmul.f32 %v4384, %v4386
        %v4388 = vadd.f32 %v4387, -0.16666654
        %v4389 = vmul.f32 %v4384, %v4388
        %v4390 = vadd.f32 %v4389, 1.0
        %v4391 = vmul.f32 %v4390, %v4375
        %vm4392 = vweird.f32 %v675
        %v4393 = vadd.s32 %v4376, 3
        %v4394 = vand.u32 %v4393, 3
        %vm4395 = vcmp.lt.s32.totalorder %v4394, 2
        %vm4396 = vcmp.eq.s32.totalorder %v4394, 0
        %v4397 = vxor.u32 %v4391, 2147483648
        %v4398 = vsel %vm4396, %v4383, %v4397
        %vm4399 = vcmp.eq.s32.totalorder %v4394, 2
        %v4400 = vxor.u32 %v4383, 2147483648
        %v4401 = vsel %vm4399, %v4400, %v4391
        %v4402 = vsel %vm4395, %v4398, %v4401
        %v4403 = vsel %vm4392, nan, %v4402
        %v4404 = vand.u32 2147483647, %v676
        %vm4405 = vcmp.le.f32.partialorder %v4404, 0.7853982
        %vm4406 = vcmp.lt.s32.totalorder %v676, 0
        %v4407 = vand.u32 %v676, 2139095040
        %v4408 = vshrl.u32 %v4407, 23
        %v4409 = vsub.s32 %v4408, 127
        %v4410 = vand.u32 2147483647, %v676
        %v4411 = vand.u32 %v4410, 8388607
        %v4412 = vor.u32 %v4411, 8388608
        %v4413 = vsub.s32 0, %v4412
        %v4414 = vadd.s32 %v4409, 1
        %vm4415 = vcmp.gt.s32.totalorder %v4414, 0
        %v4416 = vsel %vm4415, %v4414, 0
        %v4417 = vshrl.u32 %v4416, 5
        %v4418 = vand.u32 %v4416, 31
        %v4419 = vsub.s32 32, %v4418
        %v4420 = vshrl.u32 683565275, %v4419
        %v4421 = vshll.u32 683565275, %v4418
        %v4422 = vshrl.u32 2475754826, %v4419
        %v4423 = vor.u32 %v4421, %v4422
        %v4424 = vshll.u32 2475754826, %v4418
        %v4425 = vshrl.u32 2131351028, %v4419
        %v4426 = vor.u32 %v4424, %v4425
        %v4427 = vshll.u32 2131351028, %v4418
        %v4428 = vshrl.u32 2102212464, %v4419
        %v4429 = vor.u32 %v4427, %v4428
        %v4430 = vshll.u32 2102212464, %v4418
        %v4431 = vshrl.u32 920167782, %v4419
        %v4432 = vor.u32 %v4430, %v4431
        %v4433 = vshll.u32 920167782, %v4418
        %v4434 = vshrl.u32 1326507024, %v4419
        %v4435 = vor.u32 %v4433, %v4434
        %vm4436 = vcmp.lt.s32.totalorder %v4417, 1
        %vm4437 = vcmp.lt.s32.totalorder %v4417, 2
        %vm4438 = vcmp.lt.s32.totalorder %v4417, 3
        %vm4439 = vcmp.lt.s32.totalorder %v4417, 4
        %v4440 = vsel %vm4436, %v4420, %v4423
        %v4441 = vsel %vm4439, %v4429, 2102212464
        %v4442 = vsel %vm4438, %v4426, %v4441
        %v4443 = vsel %vm4437, %v4440, %v4442
        %v4444 = vsel %vm4436, %v4423, %v4426
        %v4445 = vsel %vm4439, %v4432, 920167782
        %v4446 = vsel %vm4438, %v4429, %v4445
        %v4447 = vsel %vm4437, %v4444, %v4446
        %v4448 = vsel %vm4436, %v4426, %v4429
        %v4449 = vsel %vm4439, %v4435, 1326507024
        %v4450 = vsel %vm4438, %v4432, %v4449
        %v4451 = vsel %vm4437, %v4448, %v4450
        %v4452 = vshll.u32 %v4412, 8
        %v4453 = vand.u32 %v4452, 65535
        %v4454 = vshrl.u32 %v4452, 16
        %v4455 = vand.u32 %v4451, 65535
        %v4456 = vshrl.u32 %v4451, 16
        %v4457 = vmul.u32 %v4453, %v4455
        %v4458 = vmul.u32 %v4453, %v4456
        %v4459 = vmul.u32 %v4454, %v4455
        %v4460 = vmul.u32 %v4454, %v4456
        %v4461 = vshll.u32 %v4458, 16
        %v4462 = vshrl.u32 %v4458, 16
        %v4463 = vshll.u32 %v4459, 16
        %v4464 = vshrl.u32 %v4459, 16
        %vm4465 = vc.u32 %v4457, %v4461
        %v4466 = vsel %vm4465, 1, 0
        %v4467 = vadd.s32 %v4457, %v4461
        %v4468 = vadd.s32 %v4460, %v4466
        %vm4469 = vc.u32 %v4467, %v4463
        %v4470 = vsel %vm4469, 1, 0
        %v4471 = vadd.s32 %v4467, %v4463
        %v4472 = vadd.s32 %v4468, %v4470
        %v4473 = vadd.s32 %v4472, %v4462
        %v4474 = vadd.s32 %v4473, %v4464
        %v4475 = vand.u32 %v4452, 65535
        %v4476 = vshrl.u32 %v4452, 16
        %v4477 = vand.u32 %v4447, 65535
        %v4478 = vshrl.u32 %v4447, 16
        %v4479 = vmul.u32 %v4475, %v4477
        %v4480 = vmul.u32 %v4475, %v4478
        %v4481 = vmul.u32 %v4476, %v4477
        %v4482 = vmul.u32 %v4476, %v4478
        %v4483 = vshll.u32 %v4480, 16
        %v4484 = vshrl.u32 %v4480, 16
        %v4485 = vshll.u32 %v4481, 16
        %v4486 = vshrl.u32 %v4481, 16
        %vm4487 = vc.u32 %v4479, %v4483
        %v4488 = vsel %vm4487, 1, 0
        %v4489 = vadd.s32 %v4479, %v4483
        %v4490 = vadd.s32 %v4482, %v4488
        %vm4491 = vc.u32 %v4489, %v4485
        %v4492 = vsel %vm4491, 1, 0
        %v4493 = vadd.s32 %v4489, %v4485
        %v4494 = vadd.s32 %v4490, %v4492
        %v4495 = vadd.s32 %v4494, %v4484
        %v4496 = vadd.s32 %v4495, %v4486
        %v4497 = vmul.u32 %v4452, %v4443
        %v4498 = vadd.s32 %v4474, %v4493
        %vm4499 = vc.u32 %v4474, %v4493
        %v4500 = vadd.s32 %v4496, 1
        %v4501 = vsel %vm4499, %v4500, %v4496
        %v4502 = vadd.s32 %v4497, %v4501
        %v4503 = vadd.s32 %v4502, 536870912
        %v4504 = vshrl.u32 %v4503, 30
        %v4505 = vshll.u32 %v4504, 30
        %v4506 = vsub.s32 %v4502, %v4505
        %vm4507 = vcmp.lt.s32.totalorder %v4506, 0
        %v4508 = vsub.s32 0, %v4506
        %v4509 = vsel %vm4507, %v4508, %v4506
        %v4510 = vclz %v4509
        %v4511 = vsub.s32 %v4510, 2
        %vm4512 = vcmp.gt.s32.totalorder 0, %v4511
        %v4513 = vsel %vm4512, 0, %v4511
        %v4514 = vsub.s32 32, %v4513
        %v4515 = vshll.u32 %v4506, %v4513
        %v4516 = vshrl.u32 %v4498, %v4514
        %v4517 = vor.u32 %v4515, %v4516
        %v4518 = vsub.s32 4294967266, %v4513
        %v4519 = vadd.s32 %v4518, 127
        %v4520 = vshll.u32 %v4519, 23
        %v4521 = vor.u32 4788187, %v4520
        %v4522 = vand.u32 2147483647, %v4521
        %v4524 = vcvt.s32.f32 %v4517
        %v4525 = vmul.f32 %v4524, %v4522
        %v4526 = vxor.u32 %v4525, 2147483648
        %v4527 = vsel %vm4406, %v4526, %v4525
        %v4528 = vsub.s32 4, %v4504
        %v4529 = vsel %vm4406, %v4528, %v4504
        %v4530 = vsel %vm4405, %v676, %v4527
        %v4531 = vsel %vm4405, 0, %v4529
        %v4532 = vmul.f32 %v4530, %v4530
        %v4533 = vmul.f32 %v4532, -0.001358992
        %v4534 = vadd.f32 %v4533, 0.041655596
        %v4535 = vmul.f32 %v4532, %v4534
        %v4536 = vadd.f32 %v4535, -0.4999988
        %v4537 = vmul.f32 %v4532, %v4536
        %v4538 = vadd.f32 1.0, %v4537
        %v4539 = vmul.f32 %v4530, %v4530
        %v4540 = vmul.f32 %v4539, -0.00019511016
        %v4541 = vadd.f32 %v4540, 0.008332121
        %v4542 = vmul.f32 %v4539, %v4541
        %v4543 = vadd.f32 %v4542, -0.16666654
        %v4544 = vmul.f32 %v4539, %v4543
        %v4545 = vadd.f32 %v4544, 1.0
        %v4546 = vmul.f32 %v4545, %v4530
        %vm4547 = vweird.f32 %v676
        %v4548 = vadd.s32 %v4531, 3
        %v4549 = vand.u32 %v4548, 3
        %vm4550 = vcmp.lt.s32.totalorder %v4549, 2
        %vm4551 = vcmp.eq.s32.totalorder %v4549, 0
        %v4552 = vxor.u32 %v4546, 2147483648
        %v4553 = vsel %vm4551, %v4538, %v4552
        %vm4554 = vcmp.eq.s32.totalorder %v4549, 2
        %v4555 = vxor.u32 %v4538, 2147483648
        %v4556 = vsel %vm4554, %v4555, %v4546
        %v4557 = vsel %vm4550, %v4553, %v4556
        %v4558 = vsel %vm4547, nan, %v4557
        %v4559 = vand.u32 2147483647, %v677
        %vm4560 = vcmp.le.f32.partialorder %v4559, 0.7853982
        %vm4561 = vcmp.lt.s32.totalorder %v677, 0
        %v4562 = vand.u32 %v677, 2139095040
        %v4563 = vshrl.u32 %v4562, 23
        %v4564 = vsub.s32 %v4563, 127
        %v4565 = vand.u32 2147483647, %v677
        %v4566 = vand.u32 %v4565, 8388607
        %v4567 = vor.u32 %v4566, 8388608
        %v4568 = vsub.s32 0, %v4567
        %v4569 = vadd.s32 %v4564, 1
        %vm4570 = vcmp.gt.s32.totalorder %v4569, 0
        %v4571 = vsel %vm4570, %v4569, 0
        %v4572 = vshrl.u32 %v4571, 5
        %v4573 = vand.u32 %v4571, 31
        %v4574 = vsub.s32 32, %v4573
        %v4575 = vshrl.u32 683565275, %v4574
        %v4576 = vshll.u32 683565275, %v4573
        %v4577 = vshrl.u32 2475754826, %v4574
        %v4578 = vor.u32 %v4576, %v4577
        %v4579 = vshll.u32 2475754826, %v4573
        %v4580 = vshrl.u32 2131351028, %v4574
        %v4581 = vor.u32 %v4579, %v4580
        %v4582 = vshll.u32 2131351028, %v4573
        %v4583 = vshrl.u32 2102212464, %v4574
        %v4584 = vor.u32 %v4582, %v4583
        %v4585 = vshll.u32 2102212464, %v4573
        %v4586 = vshrl.u32 920167782, %v4574
        %v4587 = vor.u32 %v4585, %v4586
        %v4588 = vshll.u32 920167782, %v4573
        %v4589 = vshrl.u32 1326507024, %v4574
        %v4590 = vor.u32 %v4588, %v4589
        %vm4591 = vcmp.lt.s32.totalorder %v4572, 1
        %vm4592 = vcmp.lt.s32.totalorder %v4572, 2
        %vm4593 = vcmp.lt.s32.totalorder %v4572, 3
        %vm4594 = vcmp.lt.s32.totalorder %v4572, 4
        %v4595 = vsel %vm4591, %v4575, %v4578
        %v4596 = vsel %vm4594, %v4584, 2102212464
        %v4597 = vsel %vm4593, %v4581, %v4596
        %v4598 = vsel %vm4592, %v4595, %v4597
        %v4599 = vsel %vm4591, %v4578, %v4581
        %v4600 = vsel %vm4594, %v4587, 920167782
        %v4601 = vsel %vm4593, %v4584, %v4600
        %v4602 = vsel %vm4592, %v4599, %v4601
        %v4603 = vsel %vm4591, %v4581, %v4584
        %v4604 = vsel %vm4594, %v4590, 1326507024
        %v4605 = vsel %vm4593, %v4587, %v4604
        %v4606 = vsel %vm4592, %v4603, %v4605
        %v4607 = vshll.u32 %v4567, 8
        %v4608 = vand.u32 %v4607, 65535
        %v4609 = vshrl.u32 %v4607, 16
        %v4610 = vand.u32 %v4606, 65535
        %v4611 = vshrl.u32 %v4606, 16
        %v4612 = vmul.u32 %v4608, %v4610
        %v4613 = vmul.u32 %v4608, %v4611
        %v4614 = vmul.u32 %v4609, %v4610
        %v4615 = vmul.u32 %v4609, %v4611
        %v4616 = vshll.u32 %v4613, 16
        %v4617 = vshrl.u32 %v4613, 16
        %v4618 = vshll.u32 %v4614, 16
        %v4619 = vshrl.u32 %v4614, 16
        %vm4620 = vc.u32 %v4612, %v4616
        %v4621 = vsel %vm4620, 1, 0
        %v4622 = vadd.s32 %v4612, %v4616
        %v4623 = vadd.s32 %v4615, %v4621
        %vm4624 = vc.u32 %v4622, %v4618
        %v4625 = vsel %vm4624, 1, 0
        %v4626 = vadd.s32 %v4622, %v4618
        %v4627 = vadd.s32 %v4623, %v4625
        %v4628 = vadd.s32 %v4627, %v4617
        %v4629 = vadd.s32 %v4628, %v4619
        %v4630 = vand.u32 %v4607, 65535
        %v4631 = vshrl.u32 %v4607, 16
        %v4632 = vand.u32 %v4602, 65535
        %v4633 = vshrl.u32 %v4602, 16
        %v4634 = vmul.u32 %v4630, %v4632
        %v4635 = vmul.u32 %v4630, %v4633
        %v4636 = vmul.u32 %v4631, %v4632
        %v4637 = vmul.u32 %v4631, %v4633
        %v4638 = vshll.u32 %v4635, 16
        %v4639 = vshrl.u32 %v4635, 16
        %v4640 = vshll.u32 %v4636, 16
        %v4641 = vshrl.u32 %v4636, 16
        %vm4642 = vc.u32 %v4634, %v4638
        %v4643 = vsel %vm4642, 1, 0
        %v4644 = vadd.s32 %v4634, %v4638
        %v4645 = vadd.s32 %v4637, %v4643
        %vm4646 = vc.u32 %v4644, %v4640
        %v4647 = vsel %vm4646, 1, 0
        %v4648 = vadd.s32 %v4644, %v4640
        %v4649 = vadd.s32 %v4645, %v4647
        %v4650 = vadd.s32 %v4649, %v4639
        %v4651 = vadd.s32 %v4650, %v4641
        %v4652 = vmul.u32 %v4607, %v4598
        %v4653 = vadd.s32 %v4629, %v4648
        %vm4654 = vc.u32 %v4629, %v4648
        %v4655 = vadd.s32 %v4651, 1
        %v4656 = vsel %vm4654, %v4655, %v4651
        %v4657 = vadd.s32 %v4652, %v4656
        %v4658 = vadd.s32 %v4657, 536870912
        %v4659 = vshrl.u32 %v4658, 30
        %v4660 = vshll.u32 %v4659, 30
        %v4661 = vsub.s32 %v4657, %v4660
        %vm4662 = vcmp.lt.s32.totalorder %v4661, 0
        %v4663 = vsub.s32 0, %v4661
        %v4664 = vsel %vm4662, %v4663, %v4661
        %v4665 = vclz %v4664
        %v4666 = vsub.s32 %v4665, 2
        %vm4667 = vcmp.gt.s32.totalorder 0, %v4666
        %v4668 = vsel %vm4667, 0, %v4666
        %v4669 = vsub.s32 32, %v4668
        %v4670 = vshll.u32 %v4661, %v4668
        %v4671 = vshrl.u32 %v4653, %v4669
        %v4672 = vor.u32 %v4670, %v4671
        %v4673 = vsub.s32 4294967266, %v4668
        %v4674 = vadd.s32 %v4673, 127
        %v4675 = vshll.u32 %v4674, 23
        %v4676 = vor.u32 4788187, %v4675
        %v4677 = vand.u32 2147483647, %v4676
        %v4679 = vcvt.s32.f32 %v4672
        %v4680 = vmul.f32 %v4679, %v4677
        %v4681 = vxor.u32 %v4680, 2147483648
        %v4682 = vsel %vm4561, %v4681, %v4680
        %v4683 = vsub.s32 4, %v4659
        %v4684 = vsel %vm4561, %v4683, %v4659
        %v4685 = vsel %vm4560, %v677, %v4682
        %v4686 = vsel %vm4560, 0, %v4684
        %v4687 = vmul.f32 %v4685, %v4685
        %v4688 = vmul.f32 %v4687, -0.001358992
        %v4689 = vadd.f32 %v4688, 0.041655596
        %v4690 = vmul.f32 %v4687, %v4689
        %v4691 = vadd.f32 %v4690, -0.4999988
        %v4692 = vmul.f32 %v4687, %v4691
        %v4693 = vadd.f32 1.0, %v4692
        %v4694 = vmul.f32 %v4685, %v4685
        %v4695 = vmul.f32 %v4694, -0.00019511016
        %v4696 = vadd.f32 %v4695, 0.008332121
        %v4697 = vmul.f32 %v4694, %v4696
        %v4698 = vadd.f32 %v4697, -0.16666654
        %v4699 = vmul.f32 %v4694, %v4698
        %v4700 = vadd.f32 %v4699, 1.0
        %v4701 = vmul.f32 %v4700, %v4685
        %vm4702 = vweird.f32 %v677
        %v4703 = vadd.s32 %v4686, 3
        %v4704 = vand.u32 %v4703, 3
        %vm4705 = vcmp.lt.s32.totalorder %v4704, 2
        %vm4706 = vcmp.eq.s32.totalorder %v4704, 0
        %v4707 = vxor.u32 %v4701, 2147483648
        %v4708 = vsel %vm4706, %v4693, %v4707
        %vm4709 = vcmp.eq.s32.totalorder %v4704, 2
        %v4710 = vxor.u32 %v4693, 2147483648
        %v4711 = vsel %vm4709, %v4710, %v4701
        %v4712 = vsel %vm4705, %v4708, %v4711
        %v4713 = vsel %vm4702, nan, %v4712
        %v4714 = vand.u32 2147483647, %v678
        %vm4715 = vcmp.le.f32.partialorder %v4714, 0.7853982
        %vm4716 = vcmp.lt.s32.totalorder %v678, 0
        %v4717 = vand.u32 %v678, 2139095040
        %v4718 = vshrl.u32 %v4717, 23
        %v4719 = vsub.s32 %v4718, 127
        %v4720 = vand.u32 2147483647, %v678
        %v4721 = vand.u32 %v4720, 8388607
        %v4722 = vor.u32 %v4721, 8388608
        %v4723 = vsub.s32 0, %v4722
        %v4724 = vadd.s32 %v4719, 1
        %vm4725 = vcmp.gt.s32.totalorder %v4724, 0
        %v4726 = vsel %vm4725, %v4724, 0
        %v4727 = vshrl.u32 %v4726, 5
        %v4728 = vand.u32 %v4726, 31
        %v4729 = vsub.s32 32, %v4728
        %v4730 = vshrl.u32 683565275, %v4729
        %v4731 = vshll.u32 683565275, %v4728
        %v4732 = vshrl.u32 2475754826, %v4729
        %v4733 = vor.u32 %v4731, %v4732
        %v4734 = vshll.u32 2475754826, %v4728
        %v4735 = vshrl.u32 2131351028, %v4729
        %v4736 = vor.u32 %v4734, %v4735
        %v4737 = vshll.u32 2131351028, %v4728
        %v4738 = vshrl.u32 2102212464, %v4729
        %v4739 = vor.u32 %v4737, %v4738
        %v4740 = vshll.u32 2102212464, %v4728
        %v4741 = vshrl.u32 920167782, %v4729
        %v4742 = vor.u32 %v4740, %v4741
        %v4743 = vshll.u32 920167782, %v4728
        %v4744 = vshrl.u32 1326507024, %v4729
        %v4745 = vor.u32 %v4743, %v4744
        %vm4746 = vcmp.lt.s32.totalorder %v4727, 1
        %vm4747 = vcmp.lt.s32.totalorder %v4727, 2
        %vm4748 = vcmp.lt.s32.totalorder %v4727, 3
        %vm4749 = vcmp.lt.s32.totalorder %v4727, 4
        %v4750 = vsel %vm4746, %v4730, %v4733
        %v4751 = vsel %vm4749, %v4739, 2102212464
        %v4752 = vsel %vm4748, %v4736, %v4751
        %v4753 = vsel %vm4747, %v4750, %v4752
        %v4754 = vsel %vm4746, %v4733, %v4736
        %v4755 = vsel %vm4749, %v4742, 920167782
        %v4756 = vsel %vm4748, %v4739, %v4755
        %v4757 = vsel %vm4747, %v4754, %v4756
        %v4758 = vsel %vm4746, %v4736, %v4739
        %v4759 = vsel %vm4749, %v4745, 1326507024
        %v4760 = vsel %vm4748, %v4742, %v4759
        %v4761 = vsel %vm4747, %v4758, %v4760
        %v4762 = vshll.u32 %v4722, 8
        %v4763 = vand.u32 %v4762, 65535
        %v4764 = vshrl.u32 %v4762, 16
        %v4765 = vand.u32 %v4761, 65535
        %v4766 = vshrl.u32 %v4761, 16
        %v4767 = vmul.u32 %v4763, %v4765
        %v4768 = vmul.u32 %v4763, %v4766
        %v4769 = vmul.u32 %v4764, %v4765
        %v4770 = vmul.u32 %v4764, %v4766
        %v4771 = vshll.u32 %v4768, 16
        %v4772 = vshrl.u32 %v4768, 16
        %v4773 = vshll.u32 %v4769, 16
        %v4774 = vshrl.u32 %v4769, 16
        %vm4775 = vc.u32 %v4767, %v4771
        %v4776 = vsel %vm4775, 1, 0
        %v4777 = vadd.s32 %v4767, %v4771
        %v4778 = vadd.s32 %v4770, %v4776
        %vm4779 = vc.u32 %v4777, %v4773
        %v4780 = vsel %vm4779, 1, 0
        %v4781 = vadd.s32 %v4777, %v4773
        %v4782 = vadd.s32 %v4778, %v4780
        %v4783 = vadd.s32 %v4782, %v4772
        %v4784 = vadd.s32 %v4783, %v4774
        %v4785 = vand.u32 %v4762, 65535
        %v4786 = vshrl.u32 %v4762, 16
        %v4787 = vand.u32 %v4757, 65535
        %v4788 = vshrl.u32 %v4757, 16
        %v4789 = vmul.u32 %v4785, %v4787
        %v4790 = vmul.u32 %v4785, %v4788
        %v4791 = vmul.u32 %v4786, %v4787
        %v4792 = vmul.u32 %v4786, %v4788
        %v4793 = vshll.u32 %v4790, 16
        %v4794 = vshrl.u32 %v4790, 16
        %v4795 = vshll.u32 %v4791, 16
        %v4796 = vshrl.u32 %v4791, 16
        %vm4797 = vc.u32 %v4789, %v4793
        %v4798 = vsel %vm4797, 1, 0
        %v4799 = vadd.s32 %v4789, %v4793
        %v4800 = vadd.s32 %v4792, %v4798
        %vm4801 = vc.u32 %v4799, %v4795
        %v4802 = vsel %vm4801, 1, 0
        %v4803 = vadd.s32 %v4799, %v4795
        %v4804 = vadd.s32 %v4800, %v4802
        %v4805 = vadd.s32 %v4804, %v4794
        %v4806 = vadd.s32 %v4805, %v4796
        %v4807 = vmul.u32 %v4762, %v4753
        %v4808 = vadd.s32 %v4784, %v4803
        %vm4809 = vc.u32 %v4784, %v4803
        %v4810 = vadd.s32 %v4806, 1
        %v4811 = vsel %vm4809, %v4810, %v4806
        %v4812 = vadd.s32 %v4807, %v4811
        %v4813 = vadd.s32 %v4812, 536870912
        %v4814 = vshrl.u32 %v4813, 30
        %v4815 = vshll.u32 %v4814, 30
        %v4816 = vsub.s32 %v4812, %v4815
        %vm4817 = vcmp.lt.s32.totalorder %v4816, 0
        %v4818 = vsub.s32 0, %v4816
        %v4819 = vsel %vm4817, %v4818, %v4816
        %v4820 = vclz %v4819
        %v4821 = vsub.s32 %v4820, 2
        %vm4822 = vcmp.gt.s32.totalorder 0, %v4821
        %v4823 = vsel %vm4822, 0, %v4821
        %v4824 = vsub.s32 32, %v4823
        %v4825 = vshll.u32 %v4816, %v4823
        %v4826 = vshrl.u32 %v4808, %v4824
        %v4827 = vor.u32 %v4825, %v4826
        %v4828 = vsub.s32 4294967266, %v4823
        %v4829 = vadd.s32 %v4828, 127
        %v4830 = vshll.u32 %v4829, 23
        %v4831 = vor.u32 4788187, %v4830
        %v4832 = vand.u32 2147483647, %v4831
        %v4834 = vcvt.s32.f32 %v4827
        %v4835 = vmul.f32 %v4834, %v4832
        %v4836 = vxor.u32 %v4835, 2147483648
        %v4837 = vsel %vm4716, %v4836, %v4835
        %v4838 = vsub.s32 4, %v4814
        %v4839 = vsel %vm4716, %v4838, %v4814
        %v4840 = vsel %vm4715, %v678, %v4837
        %v4841 = vsel %vm4715, 0, %v4839
        %v4842 = vmul.f32 %v4840, %v4840
        %v4843 = vmul.f32 %v4842, -0.001358992
        %v4844 = vadd.f32 %v4843, 0.041655596
        %v4845 = vmul.f32 %v4842, %v4844
        %v4846 = vadd.f32 %v4845, -0.4999988
        %v4847 = vmul.f32 %v4842, %v4846
        %v4848 = vadd.f32 1.0, %v4847
        %v4849 = vmul.f32 %v4840, %v4840
        %v4850 = vmul.f32 %v4849, -0.00019511016
        %v4851 = vadd.f32 %v4850, 0.008332121
        %v4852 = vmul.f32 %v4849, %v4851
        %v4853 = vadd.f32 %v4852, -0.16666654
        %v4854 = vmul.f32 %v4849, %v4853
        %v4855 = vadd.f32 %v4854, 1.0
        %v4856 = vmul.f32 %v4855, %v4840
        %vm4857 = vweird.f32 %v678
        %v4858 = vadd.s32 %v4841, 3
        %v4859 = vand.u32 %v4858, 3
        %vm4860 = vcmp.lt.s32.totalorder %v4859, 2
        %vm4861 = vcmp.eq.s32.totalorder %v4859, 0
        %v4862 = vxor.u32 %v4856, 2147483648
        %v4863 = vsel %vm4861, %v4848, %v4862
        %vm4864 = vcmp.eq.s32.totalorder %v4859, 2
        %v4865 = vxor.u32 %v4848, 2147483648
        %v4866 = vsel %vm4864, %v4865, %v4856
        %v4867 = vsel %vm4860, %v4863, %v4866
        %v4868 = vsel %vm4857, nan, %v4867
        %v4869 = vand.u32 2147483647, %v679
        %vm4870 = vcmp.le.f32.partialorder %v4869, 0.7853982
        %vm4871 = vcmp.lt.s32.totalorder %v679, 0
        %v4872 = vand.u32 %v679, 2139095040
        %v4873 = vshrl.u32 %v4872, 23
        %v4874 = vsub.s32 %v4873, 127
        %v4875 = vand.u32 2147483647, %v679
        %v4876 = vand.u32 %v4875, 8388607
        %v4877 = vor.u32 %v4876, 8388608
        %v4878 = vsub.s32 0, %v4877
        %v4879 = vadd.s32 %v4874, 1
        %vm4880 = vcmp.gt.s32.totalorder %v4879, 0
        %v4881 = vsel %vm4880, %v4879, 0
        %v4882 = vshrl.u32 %v4881, 5
        %v4883 = vand.u32 %v4881, 31
        %v4884 = vsub.s32 32, %v4883
        %v4885 = vshrl.u32 683565275, %v4884
        %v4886 = vshll.u32 683565275, %v4883
        %v4887 = vshrl.u32 2475754826, %v4884
        %v4888 = vor.u32 %v4886, %v4887
        %v4889 = vshll.u32 2475754826, %v4883
        %v4890 = vshrl.u32 2131351028, %v4884
        %v4891 = vor.u32 %v4889, %v4890
        %v4892 = vshll.u32 2131351028, %v4883
        %v4893 = vshrl.u32 2102212464, %v4884
        %v4894 = vor.u32 %v4892, %v4893
        %v4895 = vshll.u32 2102212464, %v4883
        %v4896 = vshrl.u32 920167782, %v4884
        %v4897 = vor.u32 %v4895, %v4896
        %v4898 = vshll.u32 920167782, %v4883
        %v4899 = vshrl.u32 1326507024, %v4884
        %v4900 = vor.u32 %v4898, %v4899
        %vm4901 = vcmp.lt.s32.totalorder %v4882, 1
        %vm4902 = vcmp.lt.s32.totalorder %v4882, 2
        %vm4903 = vcmp.lt.s32.totalorder %v4882, 3
        %vm4904 = vcmp.lt.s32.totalorder %v4882, 4
        %v4905 = vsel %vm4901, %v4885, %v4888
        %v4906 = vsel %vm4904, %v4894, 2102212464
        %v4907 = vsel %vm4903, %v4891, %v4906
        %v4908 = vsel %vm4902, %v4905, %v4907
        %v4909 = vsel %vm4901, %v4888, %v4891
        %v4910 = vsel %vm4904, %v4897, 920167782
        %v4911 = vsel %vm4903, %v4894, %v4910
        %v4912 = vsel %vm4902, %v4909, %v4911
        %v4913 = vsel %vm4901, %v4891, %v4894
        %v4914 = vsel %vm4904, %v4900, 1326507024
        %v4915 = vsel %vm4903, %v4897, %v4914
        %v4916 = vsel %vm4902, %v4913, %v4915
        %v4917 = vshll.u32 %v4877, 8
        %v4918 = vand.u32 %v4917, 65535
        %v4919 = vshrl.u32 %v4917, 16
        %v4920 = vand.u32 %v4916, 65535
        %v4921 = vshrl.u32 %v4916, 16
        %v4922 = vmul.u32 %v4918, %v4920
        %v4923 = vmul.u32 %v4918, %v4921
        %v4924 = vmul.u32 %v4919, %v4920
        %v4925 = vmul.u32 %v4919, %v4921
        %v4926 = vshll.u32 %v4923, 16
        %v4927 = vshrl.u32 %v4923, 16
        %v4928 = vshll.u32 %v4924, 16
        %v4929 = vshrl.u32 %v4924, 16
        %vm4930 = vc.u32 %v4922, %v4926
        %v4931 = vsel %vm4930, 1, 0
        %v4932 = vadd.s32 %v4922, %v4926
        %v4933 = vadd.s32 %v4925, %v4931
        %vm4934 = vc.u32 %v4932, %v4928
        %v4935 = vsel %vm4934, 1, 0
        %v4936 = vadd.s32 %v4932, %v4928
        %v4937 = vadd.s32 %v4933, %v4935
        %v4938 = vadd.s32 %v4937, %v4927
        %v4939 = vadd.s32 %v4938, %v4929
        %v4940 = vand.u32 %v4917, 65535
        %v4941 = vshrl.u32 %v4917, 16
        %v4942 = vand.u32 %v4912, 65535
        %v4943 = vshrl.u32 %v4912, 16
        %v4944 = vmul.u32 %v4940, %v4942
        %v4945 = vmul.u32 %v4940, %v4943
        %v4946 = vmul.u32 %v4941, %v4942
        %v4947 = vmul.u32 %v4941, %v4943
        %v4948 = vshll.u32 %v4945, 16
        %v4949 = vshrl.u32 %v4945, 16
        %v4950 = vshll.u32 %v4946, 16
        %v4951 = vshrl.u32 %v4946, 16
        %vm4952 = vc.u32 %v4944, %v4948
        %v4953 = vsel %vm4952, 1, 0
        %v4954 = vadd.s32 %v4944, %v4948
        %v4955 = vadd.s32 %v4947, %v4953
        %vm4956 = vc.u32 %v4954, %v4950
        %v4957 = vsel %vm4956, 1, 0
        %v4958 = vadd.s32 %v4954, %v4950
        %v4959 = vadd.s32 %v4955, %v4957
        %v4960 = vadd.s32 %v4959, %v4949
        %v4961 = vadd.s32 %v4960, %v4951
        %v4962 = vmul.u32 %v4917, %v4908
        %v4963 = vadd.s32 %v4939, %v4958
        %vm4964 = vc.u32 %v4939, %v4958
        %v4965 = vadd.s32 %v4961, 1
        %v4966 = vsel %vm4964, %v4965, %v4961
        %v4967 = vadd.s32 %v4962, %v4966
        %v4968 = vadd.s32 %v4967, 536870912
        %v4969 = vshrl.u32 %v4968, 30
        %v4970 = vshll.u32 %v4969, 30
        %v4971 = vsub.s32 %v4967, %v4970
        %vm4972 = vcmp.lt.s32.totalorder %v4971, 0
        %v4973 = vsub.s32 0, %v4971
        %v4974 = vsel %vm4972, %v4973, %v4971
        %v4975 = vclz %v4974
        %v4976 = vsub.s32 %v4975, 2
        %vm4977 = vcmp.gt.s32.totalorder 0, %v4976
        %v4978 = vsel %vm4977, 0, %v4976
        %v4979 = vsub.s32 32, %v4978
        %v4980 = vshll.u32 %v4971, %v4978
        %v4981 = vshrl.u32 %v4963, %v4979
        %v4982 = vor.u32 %v4980, %v4981
        %v4983 = vsub.s32 4294967266, %v4978
        %v4984 = vadd.s32 %v4983, 127
        %v4985 = vshll.u32 %v4984, 23
        %v4986 = vor.u32 4788187, %v4985
        %v4987 = vand.u32 2147483647, %v4986
        %v4989 = vcvt.s32.f32 %v4982
        %v4990 = vmul.f32 %v4989, %v4987
        %v4991 = vxor.u32 %v4990, 2147483648
        %v4992 = vsel %vm4871, %v4991, %v4990
        %v4993 = vsub.s32 4, %v4969
        %v4994 = vsel %vm4871, %v4993, %v4969
        %v4995 = vsel %vm4870, %v679, %v4992
        %v4996 = vsel %vm4870, 0, %v4994
        %v4997 = vmul.f32 %v4995, %v4995
        %v4998 = vmul.f32 %v4997, -0.001358992
        %v4999 = vadd.f32 %v4998, 0.041655596
        %v5000 = vmul.f32 %v4997, %v4999
        %v5001 = vadd.f32 %v5000, -0.4999988
        %v5002 = vmul.f32 %v4997, %v5001
        %v5003 = vadd.f32 1.0, %v5002
        %v5004 = vmul.f32 %v4995, %v4995
        %v5005 = vmul.f32 %v5004, -0.00019511016
        %v5006 = vadd.f32 %v5005, 0.008332121
        %v5007 = vmul.f32 %v5004, %v5006
        %v5008 = vadd.f32 %v5007, -0.16666654
        %v5009 = vmul.f32 %v5004, %v5008
        %v5010 = vadd.f32 %v5009, 1.0
        %v5011 = vmul.f32 %v5010, %v4995
        %vm5012 = vweird.f32 %v679
        %v5013 = vadd.s32 %v4996, 3
        %v5014 = vand.u32 %v5013, 3
        %vm5015 = vcmp.lt.s32.totalorder %v5014, 2
        %vm5016 = vcmp.eq.s32.totalorder %v5014, 0
        %v5017 = vxor.u32 %v5011, 2147483648
        %v5018 = vsel %vm5016, %v5003, %v5017
        %vm5019 = vcmp.eq.s32.totalorder %v5014, 2
        %v5020 = vxor.u32 %v5003, 2147483648
        %v5021 = vsel %vm5019, %v5020, %v5011
        %v5022 = vsel %vm5015, %v5018, %v5021
        %v5023 = vsel %vm5012, nan, %v5022
        %v5024 = vand.u32 2147483647, %v680
        %vm5025 = vcmp.le.f32.partialorder %v5024, 0.7853982
        %vm5026 = vcmp.lt.s32.totalorder %v680, 0
        %v5027 = vand.u32 %v680, 2139095040
        %v5028 = vshrl.u32 %v5027, 23
        %v5029 = vsub.s32 %v5028, 127
        %v5030 = vand.u32 2147483647, %v680
        %v5031 = vand.u32 %v5030, 8388607
        %v5032 = vor.u32 %v5031, 8388608
        %v5033 = vsub.s32 0, %v5032
        %v5034 = vadd.s32 %v5029, 1
        %vm5035 = vcmp.gt.s32.totalorder %v5034, 0
        %v5036 = vsel %vm5035, %v5034, 0
        %v5037 = vshrl.u32 %v5036, 5
        %v5038 = vand.u32 %v5036, 31
        %v5039 = vsub.s32 32, %v5038
        %v5040 = vshrl.u32 683565275, %v5039
        %v5041 = vshll.u32 683565275, %v5038
        %v5042 = vshrl.u32 2475754826, %v5039
        %v5043 = vor.u32 %v5041, %v5042
        %v5044 = vshll.u32 2475754826, %v5038
        %v5045 = vshrl.u32 2131351028, %v5039
        %v5046 = vor.u32 %v5044, %v5045
        %v5047 = vshll.u32 2131351028, %v5038
        %v5048 = vshrl.u32 2102212464, %v5039
        %v5049 = vor.u32 %v5047, %v5048
        %v5050 = vshll.u32 2102212464, %v5038
        %v5051 = vshrl.u32 920167782, %v5039
        %v5052 = vor.u32 %v5050, %v5051
        %v5053 = vshll.u32 920167782, %v5038
        %v5054 = vshrl.u32 1326507024, %v5039
        %v5055 = vor.u32 %v5053, %v5054
        %vm5056 = vcmp.lt.s32.totalorder %v5037, 1
        %vm5057 = vcmp.lt.s32.totalorder %v5037, 2
        %vm5058 = vcmp.lt.s32.totalorder %v5037, 3
        %vm5059 = vcmp.lt.s32.totalorder %v5037, 4
        %v5060 = vsel %vm5056, %v5040, %v5043
        %v5061 = vsel %vm5059, %v5049, 2102212464
        %v5062 = vsel %vm5058, %v5046, %v5061
        %v5063 = vsel %vm5057, %v5060, %v5062
        %v5064 = vsel %vm5056, %v5043, %v5046
        %v5065 = vsel %vm5059, %v5052, 920167782
        %v5066 = vsel %vm5058, %v5049, %v5065
        %v5067 = vsel %vm5057, %v5064, %v5066
        %v5068 = vsel %vm5056, %v5046, %v5049
        %v5069 = vsel %vm5059, %v5055, 1326507024
        %v5070 = vsel %vm5058, %v5052, %v5069
        %v5071 = vsel %vm5057, %v5068, %v5070
        %v5072 = vshll.u32 %v5032, 8
        %v5073 = vand.u32 %v5072, 65535
        %v5074 = vshrl.u32 %v5072, 16
        %v5075 = vand.u32 %v5071, 65535
        %v5076 = vshrl.u32 %v5071, 16
        %v5077 = vmul.u32 %v5073, %v5075
        %v5078 = vmul.u32 %v5073, %v5076
        %v5079 = vmul.u32 %v5074, %v5075
        %v5080 = vmul.u32 %v5074, %v5076
        %v5081 = vshll.u32 %v5078, 16
        %v5082 = vshrl.u32 %v5078, 16
        %v5083 = vshll.u32 %v5079, 16
        %v5084 = vshrl.u32 %v5079, 16
        %vm5085 = vc.u32 %v5077, %v5081
        %v5086 = vsel %vm5085, 1, 0
        %v5087 = vadd.s32 %v5077, %v5081
        %v5088 = vadd.s32 %v5080, %v5086
        %vm5089 = vc.u32 %v5087, %v5083
        %v5090 = vsel %vm5089, 1, 0
        %v5091 = vadd.s32 %v5087, %v5083
        %v5092 = vadd.s32 %v5088, %v5090
        %v5093 = vadd.s32 %v5092, %v5082
        %v5094 = vadd.s32 %v5093, %v5084
        %v5095 = vand.u32 %v5072, 65535
        %v5096 = vshrl.u32 %v5072, 16
        %v5097 = vand.u32 %v5067, 65535
        %v5098 = vshrl.u32 %v5067, 16
        %v5099 = vmul.u32 %v5095, %v5097
        %v5100 = vmul.u32 %v5095, %v5098
        %v5101 = vmul.u32 %v5096, %v5097
        %v5102 = vmul.u32 %v5096, %v5098
        %v5103 = vshll.u32 %v5100, 16
        %v5104 = vshrl.u32 %v5100, 16
        %v5105 = vshll.u32 %v5101, 16
        %v5106 = vshrl.u32 %v5101, 16
        %vm5107 = vc.u32 %v5099, %v5103
        %v5108 = vsel %vm5107, 1, 0
        %v5109 = vadd.s32 %v5099, %v5103
        %v5110 = vadd.s32 %v5102, %v5108
        %vm5111 = vc.u32 %v5109, %v5105
        %v5112 = vsel %vm5111, 1, 0
        %v5113 = vadd.s32 %v5109, %v5105
        %v5114 = vadd.s32 %v5110, %v5112
        %v5115 = vadd.s32 %v5114, %v5104
        %v5116 = vadd.s32 %v5115, %v5106
        %v5117 = vmul.u32 %v5072, %v5063
        %v5118 = vadd.s32 %v5094, %v5113
        %vm5119 = vc.u32 %v5094, %v5113
        %v5120 = vadd.s32 %v5116, 1
        %v5121 = vsel %vm5119, %v5120, %v5116
        %v5122 = vadd.s32 %v5117, %v5121
        %v5123 = vadd.s32 %v5122, 536870912
        %v5124 = vshrl.u32 %v5123, 30
        %v5125 = vshll.u32 %v5124, 30
        %v5126 = vsub.s32 %v5122, %v5125
        %vm5127 = vcmp.lt.s32.totalorder %v5126, 0
        %v5128 = vsub.s32 0, %v5126
        %v5129 = vsel %vm5127, %v5128, %v5126
        %v5130 = vclz %v5129
        %v5131 = vsub.s32 %v5130, 2
        %vm5132 = vcmp.gt.s32.totalorder 0, %v5131
        %v5133 = vsel %vm5132, 0, %v5131
        %v5134 = vsub.s32 32, %v5133
        %v5135 = vshll.u32 %v5126, %v5133
        %v5136 = vshrl.u32 %v5118, %v5134
        %v5137 = vor.u32 %v5135, %v5136
        %v5138 = vsub.s32 4294967266, %v5133
        %v5139 = vadd.s32 %v5138, 127
        %v5140 = vshll.u32 %v5139, 23
        %v5141 = vor.u32 4788187, %v5140
        %v5142 = vand.u32 2147483647, %v5141
        %v5144 = vcvt.s32.f32 %v5137
        %v5145 = vmul.f32 %v5144, %v5142
        %v5146 = vxor.u32 %v5145, 2147483648
        %v5147 = vsel %vm5026, %v5146, %v5145
        %v5148 = vsub.s32 4, %v5124
        %v5149 = vsel %vm5026, %v5148, %v5124
        %v5150 = vsel %vm5025, %v680, %v5147
        %v5151 = vsel %vm5025, 0, %v5149
        %v5152 = vmul.f32 %v5150, %v5150
        %v5153 = vmul.f32 %v5152, -0.001358992
        %v5154 = vadd.f32 %v5153, 0.041655596
        %v5155 = vmul.f32 %v5152, %v5154
        %v5156 = vadd.f32 %v5155, -0.4999988
        %v5157 = vmul.f32 %v5152, %v5156
        %v5158 = vadd.f32 1.0, %v5157
        %v5159 = vmul.f32 %v5150, %v5150
        %v5160 = vmul.f32 %v5159, -0.00019511016
        %v5161 = vadd.f32 %v5160, 0.008332121
        %v5162 = vmul.f32 %v5159, %v5161
        %v5163 = vadd.f32 %v5162, -0.16666654
        %v5164 = vmul.f32 %v5159, %v5163
        %v5165 = vadd.f32 %v5164, 1.0
        %v5166 = vmul.f32 %v5165, %v5150
        %vm5167 = vweird.f32 %v680
        %v5168 = vadd.s32 %v5151, 3
        %v5169 = vand.u32 %v5168, 3
        %vm5170 = vcmp.lt.s32.totalorder %v5169, 2
        %vm5171 = vcmp.eq.s32.totalorder %v5169, 0
        %v5172 = vxor.u32 %v5166, 2147483648
        %v5173 = vsel %vm5171, %v5158, %v5172
        %vm5174 = vcmp.eq.s32.totalorder %v5169, 2
        %v5175 = vxor.u32 %v5158, 2147483648
        %v5176 = vsel %vm5174, %v5175, %v5166
        %v5177 = vsel %vm5170, %v5173, %v5176
        %v5178 = vsel %vm5167, nan, %v5177
        %v5179 = vand.u32 2147483647, %v681
        %vm5180 = vcmp.le.f32.partialorder %v5179, 0.7853982
        %vm5181 = vcmp.lt.s32.totalorder %v681, 0
        %v5182 = vand.u32 %v681, 2139095040
        %v5183 = vshrl.u32 %v5182, 23
        %v5184 = vsub.s32 %v5183, 127
        %v5185 = vand.u32 2147483647, %v681
        %v5186 = vand.u32 %v5185, 8388607
        %v5187 = vor.u32 %v5186, 8388608
        %v5188 = vsub.s32 0, %v5187
        %v5189 = vadd.s32 %v5184, 1
        %vm5190 = vcmp.gt.s32.totalorder %v5189, 0
        %v5191 = vsel %vm5190, %v5189, 0
        %v5192 = vshrl.u32 %v5191, 5
        %v5193 = vand.u32 %v5191, 31
        %v5194 = vsub.s32 32, %v5193
        %v5195 = vshrl.u32 683565275, %v5194
        %v5196 = vshll.u32 683565275, %v5193
        %v5197 = vshrl.u32 2475754826, %v5194
        %v5198 = vor.u32 %v5196, %v5197
        %v5199 = vshll.u32 2475754826, %v5193
        %v5200 = vshrl.u32 2131351028, %v5194
        %v5201 = vor.u32 %v5199, %v5200
        %v5202 = vshll.u32 2131351028, %v5193
        %v5203 = vshrl.u32 2102212464, %v5194
        %v5204 = vor.u32 %v5202, %v5203
        %v5205 = vshll.u32 2102212464, %v5193
        %v5206 = vshrl.u32 920167782, %v5194
        %v5207 = vor.u32 %v5205, %v5206
        %v5208 = vshll.u32 920167782, %v5193
        %v5209 = vshrl.u32 1326507024, %v5194
        %v5210 = vor.u32 %v5208, %v5209
        %vm5211 = vcmp.lt.s32.totalorder %v5192, 1
        %vm5212 = vcmp.lt.s32.totalorder %v5192, 2
        %vm5213 = vcmp.lt.s32.totalorder %v5192, 3
        %vm5214 = vcmp.lt.s32.totalorder %v5192, 4
        %v5215 = vsel %vm5211, %v5195, %v5198
        %v5216 = vsel %vm5214, %v5204, 2102212464
        %v5217 = vsel %vm5213, %v5201, %v5216
        %v5218 = vsel %vm5212, %v5215, %v5217
        %v5219 = vsel %vm5211, %v5198, %v5201
        %v5220 = vsel %vm5214, %v5207, 920167782
        %v5221 = vsel %vm5213, %v5204, %v5220
        %v5222 = vsel %vm5212, %v5219, %v5221
        %v5223 = vsel %vm5211, %v5201, %v5204
        %v5224 = vsel %vm5214, %v5210, 1326507024
        %v5225 = vsel %vm5213, %v5207, %v5224
        %v5226 = vsel %vm5212, %v5223, %v5225
        %v5227 = vshll.u32 %v5187, 8
        %v5228 = vand.u32 %v5227, 65535
        %v5229 = vshrl.u32 %v5227, 16
        %v5230 = vand.u32 %v5226, 65535
        %v5231 = vshrl.u32 %v5226, 16
        %v5232 = vmul.u32 %v5228, %v5230
        %v5233 = vmul.u32 %v5228, %v5231
        %v5234 = vmul.u32 %v5229, %v5230
        %v5235 = vmul.u32 %v5229, %v5231
        %v5236 = vshll.u32 %v5233, 16
        %v5237 = vshrl.u32 %v5233, 16
        %v5238 = vshll.u32 %v5234, 16
        %v5239 = vshrl.u32 %v5234, 16
        %vm5240 = vc.u32 %v5232, %v5236
        %v5241 = vsel %vm5240, 1, 0
        %v5242 = vadd.s32 %v5232, %v5236
        %v5243 = vadd.s32 %v5235, %v5241
        %vm5244 = vc.u32 %v5242, %v5238
        %v5245 = vsel %vm5244, 1, 0
        %v5246 = vadd.s32 %v5242, %v5238
        %v5247 = vadd.s32 %v5243, %v5245
        %v5248 = vadd.s32 %v5247, %v5237
        %v5249 = vadd.s32 %v5248, %v5239
        %v5250 = vand.u32 %v5227, 65535
        %v5251 = vshrl.u32 %v5227, 16
        %v5252 = vand.u32 %v5222, 65535
        %v5253 = vshrl.u32 %v5222, 16
        %v5254 = vmul.u32 %v5250, %v5252
        %v5255 = vmul.u32 %v5250, %v5253
        %v5256 = vmul.u32 %v5251, %v5252
        %v5257 = vmul.u32 %v5251, %v5253
        %v5258 = vshll.u32 %v5255, 16
        %v5259 = vshrl.u32 %v5255, 16
        %v5260 = vshll.u32 %v5256, 16
        %v5261 = vshrl.u32 %v5256, 16
        %vm5262 = vc.u32 %v5254, %v5258
        %v5263 = vsel %vm5262, 1, 0
        %v5264 = vadd.s32 %v5254, %v5258
        %v5265 = vadd.s32 %v5257, %v5263
        %vm5266 = vc.u32 %v5264, %v5260
        %v5267 = vsel %vm5266, 1, 0
        %v5268 = vadd.s32 %v5264, %v5260
        %v5269 = vadd.s32 %v5265, %v5267
        %v5270 = vadd.s32 %v5269, %v5259
        %v5271 = vadd.s32 %v5270, %v5261
        %v5272 = vmul.u32 %v5227, %v5218
        %v5273 = vadd.s32 %v5249, %v5268
        %vm5274 = vc.u32 %v5249, %v5268
        %v5275 = vadd.s32 %v5271, 1
        %v5276 = vsel %vm5274, %v5275, %v5271
        %v5277 = vadd.s32 %v5272, %v5276
        %v5278 = vadd.s32 %v5277, 536870912
        %v5279 = vshrl.u32 %v5278, 30
        %v5280 = vshll.u32 %v5279, 30
        %v5281 = vsub.s32 %v5277, %v5280
        %vm5282 = vcmp.lt.s32.totalorder %v5281, 0
        %v5283 = vsub.s32 0, %v5281
        %v5284 = vsel %vm5282, %v5283, %v5281
        %v5285 = vclz %v5284
        %v5286 = vsub.s32 %v5285, 2
        %vm5287 = vcmp.gt.s32.totalorder 0, %v5286
        %v5288 = vsel %vm5287, 0, %v5286
        %v5289 = vsub.s32 32, %v5288
        %v5290 = vshll.u32 %v5281, %v5288
        %v5291 = vshrl.u32 %v5273, %v5289
        %v5292 = vor.u32 %v5290, %v5291
        %v5293 = vsub.s32 4294967266, %v5288
        %v5294 = vadd.s32 %v5293, 127
        %v5295 = vshll.u32 %v5294, 23
        %v5296 = vor.u32 4788187, %v5295
        %v5297 = vand.u32 2147483647, %v5296
        %v5299 = vcvt.s32.f32 %v5292
        %v5300 = vmul.f32 %v5299, %v5297
        %v5301 = vxor.u32 %v5300, 2147483648
        %v5302 = vsel %vm5181, %v5301, %v5300
        %v5303 = vsub.s32 4, %v5279
        %v5304 = vsel %vm5181, %v5303, %v5279
        %v5305 = vsel %vm5180, %v681, %v5302
        %v5306 = vsel %vm5180, 0, %v5304
        %v5307 = vmul.f32 %v5305, %v5305
        %v5308 = vmul.f32 %v5307, -0.001358992
        %v5309 = vadd.f32 %v5308, 0.041655596
        %v5310 = vmul.f32 %v5307, %v5309
        %v5311 = vadd.f32 %v5310, -0.4999988
        %v5312 = vmul.f32 %v5307, %v5311
        %v5313 = vadd.f32 1.0, %v5312
        %v5314 = vmul.f32 %v5305, %v5305
        %v5315 = vmul.f32 %v5314, -0.00019511016
        %v5316 = vadd.f32 %v5315, 0.008332121
        %v5317 = vmul.f32 %v5314, %v5316
        %v5318 = vadd.f32 %v5317, -0.16666654
        %v5319 = vmul.f32 %v5314, %v5318
        %v5320 = vadd.f32 %v5319, 1.0
        %v5321 = vmul.f32 %v5320, %v5305
        %vm5322 = vweird.f32 %v681
        %v5323 = vadd.s32 %v5306, 3
        %v5324 = vand.u32 %v5323, 3
        %vm5325 = vcmp.lt.s32.totalorder %v5324, 2
        %vm5326 = vcmp.eq.s32.totalorder %v5324, 0
        %v5327 = vxor.u32 %v5321, 2147483648
        %v5328 = vsel %vm5326, %v5313, %v5327
        %vm5329 = vcmp.eq.s32.totalorder %v5324, 2
        %v5330 = vxor.u32 %v5313, 2147483648
        %v5331 = vsel %vm5329, %v5330, %v5321
        %v5332 = vsel %vm5325, %v5328, %v5331
        %v5333 = vsel %vm5322, nan, %v5332
        %v5334 = vand.u32 2147483647, %v682
        %vm5335 = vcmp.le.f32.partialorder %v5334, 0.7853982
        %vm5336 = vcmp.lt.s32.totalorder %v682, 0
        %v5337 = vand.u32 %v682, 2139095040
        %v5338 = vshrl.u32 %v5337, 23
        %v5339 = vsub.s32 %v5338, 127
        %v5340 = vand.u32 2147483647, %v682
        %v5341 = vand.u32 %v5340, 8388607
        %v5342 = vor.u32 %v5341, 8388608
        %v5343 = vsub.s32 0, %v5342
        %v5344 = vadd.s32 %v5339, 1
        %vm5345 = vcmp.gt.s32.totalorder %v5344, 0
        %v5346 = vsel %vm5345, %v5344, 0
        %v5347 = vshrl.u32 %v5346, 5
        %v5348 = vand.u32 %v5346, 31
        %v5349 = vsub.s32 32, %v5348
        %v5350 = vshrl.u32 683565275, %v5349
        %v5351 = vshll.u32 683565275, %v5348
        %v5352 = vshrl.u32 2475754826, %v5349
        %v5353 = vor.u32 %v5351, %v5352
        %v5354 = vshll.u32 2475754826, %v5348
        %v5355 = vshrl.u32 2131351028, %v5349
        %v5356 = vor.u32 %v5354, %v5355
        %v5357 = vshll.u32 2131351028, %v5348
        %v5358 = vshrl.u32 2102212464, %v5349
        %v5359 = vor.u32 %v5357, %v5358
        %v5360 = vshll.u32 2102212464, %v5348
        %v5361 = vshrl.u32 920167782, %v5349
        %v5362 = vor.u32 %v5360, %v5361
        %v5363 = vshll.u32 920167782, %v5348
        %v5364 = vshrl.u32 1326507024, %v5349
        %v5365 = vor.u32 %v5363, %v5364
        %vm5366 = vcmp.lt.s32.totalorder %v5347, 1
        %vm5367 = vcmp.lt.s32.totalorder %v5347, 2
        %vm5368 = vcmp.lt.s32.totalorder %v5347, 3
        %vm5369 = vcmp.lt.s32.totalorder %v5347, 4
        %v5370 = vsel %vm5366, %v5350, %v5353
        %v5371 = vsel %vm5369, %v5359, 2102212464
        %v5372 = vsel %vm5368, %v5356, %v5371
        %v5373 = vsel %vm5367, %v5370, %v5372
        %v5374 = vsel %vm5366, %v5353, %v5356
        %v5375 = vsel %vm5369, %v5362, 920167782
        %v5376 = vsel %vm5368, %v5359, %v5375
        %v5377 = vsel %vm5367, %v5374, %v5376
        %v5378 = vsel %vm5366, %v5356, %v5359
        %v5379 = vsel %vm5369, %v5365, 1326507024
        %v5380 = vsel %vm5368, %v5362, %v5379
        %v5381 = vsel %vm5367, %v5378, %v5380
        %v5382 = vshll.u32 %v5342, 8
        %v5383 = vand.u32 %v5382, 65535
        %v5384 = vshrl.u32 %v5382, 16
        %v5385 = vand.u32 %v5381, 65535
        %v5386 = vshrl.u32 %v5381, 16
        %v5387 = vmul.u32 %v5383, %v5385
        %v5388 = vmul.u32 %v5383, %v5386
        %v5389 = vmul.u32 %v5384, %v5385
        %v5390 = vmul.u32 %v5384, %v5386
        %v5391 = vshll.u32 %v5388, 16
        %v5392 = vshrl.u32 %v5388, 16
        %v5393 = vshll.u32 %v5389, 16
        %v5394 = vshrl.u32 %v5389, 16
        %vm5395 = vc.u32 %v5387, %v5391
        %v5396 = vsel %vm5395, 1, 0
        %v5397 = vadd.s32 %v5387, %v5391
        %v5398 = vadd.s32 %v5390, %v5396
        %vm5399 = vc.u32 %v5397, %v5393
        %v5400 = vsel %vm5399, 1, 0
        %v5401 = vadd.s32 %v5397, %v5393
        %v5402 = vadd.s32 %v5398, %v5400
        %v5403 = vadd.s32 %v5402, %v5392
        %v5404 = vadd.s32 %v5403, %v5394
        %v5405 = vand.u32 %v5382, 65535
        %v5406 = vshrl.u32 %v5382, 16
        %v5407 = vand.u32 %v5377, 65535
        %v5408 = vshrl.u32 %v5377, 16
        %v5409 = vmul.u32 %v5405, %v5407
        %v5410 = vmul.u32 %v5405, %v5408
        %v5411 = vmul.u32 %v5406, %v5407
        %v5412 = vmul.u32 %v5406, %v5408
        %v5413 = vshll.u32 %v5410, 16
        %v5414 = vshrl.u32 %v5410, 16
        %v5415 = vshll.u32 %v5411, 16
        %v5416 = vshrl.u32 %v5411, 16
        %vm5417 = vc.u32 %v5409, %v5413
        %v5418 = vsel %vm5417, 1, 0
        %v5419 = vadd.s32 %v5409, %v5413
        %v5420 = vadd.s32 %v5412, %v5418
        %vm5421 = vc.u32 %v5419, %v5415
        %v5422 = vsel %vm5421, 1, 0
        %v5423 = vadd.s32 %v5419, %v5415
        %v5424 = vadd.s32 %v5420, %v5422
        %v5425 = vadd.s32 %v5424, %v5414
        %v5426 = vadd.s32 %v5425, %v5416
        %v5427 = vmul.u32 %v5382, %v5373
        %v5428 = vadd.s32 %v5404, %v5423
        %vm5429 = vc.u32 %v5404, %v5423
        %v5430 = vadd.s32 %v5426, 1
        %v5431 = vsel %vm5429, %v5430, %v5426
        %v5432 = vadd.s32 %v5427, %v5431
        %v5433 = vadd.s32 %v5432, 536870912
        %v5434 = vshrl.u32 %v5433, 30
        %v5435 = vshll.u32 %v5434, 30
        %v5436 = vsub.s32 %v5432, %v5435
        %vm5437 = vcmp.lt.s32.totalorder %v5436, 0
        %v5438 = vsub.s32 0, %v5436
        %v5439 = vsel %vm5437, %v5438, %v5436
        %v5440 = vclz %v5439
        %v5441 = vsub.s32 %v5440, 2
        %vm5442 = vcmp.gt.s32.totalorder 0, %v5441
        %v5443 = vsel %vm5442, 0, %v5441
        %v5444 = vsub.s32 32, %v5443
        %v5445 = vshll.u32 %v5436, %v5443
        %v5446 = vshrl.u32 %v5428, %v5444
        %v5447 = vor.u32 %v5445, %v5446
        %v5448 = vsub.s32 4294967266, %v5443
        %v5449 = vadd.s32 %v5448, 127
        %v5450 = vshll.u32 %v5449, 23
        %v5451 = vor.u32 4788187, %v5450
        %v5452 = vand.u32 2147483647, %v5451
        %v5454 = vcvt.s32.f32 %v5447
        %v5455 = vmul.f32 %v5454, %v5452
        %v5456 = vxor.u32 %v5455, 2147483648
        %v5457 = vsel %vm5336, %v5456, %v5455
        %v5458 = vsub.s32 4, %v5434
        %v5459 = vsel %vm5336, %v5458, %v5434
        %v5460 = vsel %vm5335, %v682, %v5457
        %v5461 = vsel %vm5335, 0, %v5459
        %v5462 = vmul.f32 %v5460, %v5460
        %v5463 = vmul.f32 %v5462, -0.001358992
        %v5464 = vadd.f32 %v5463, 0.041655596
        %v5465 = vmul.f32 %v5462, %v5464
        %v5466 = vadd.f32 %v5465, -0.4999988
        %v5467 = vmul.f32 %v5462, %v5466
        %v5468 = vadd.f32 1.0, %v5467
        %v5469 = vmul.f32 %v5460, %v5460
        %v5470 = vmul.f32 %v5469, -0.00019511016
        %v5471 = vadd.f32 %v5470, 0.008332121
        %v5472 = vmul.f32 %v5469, %v5471
        %v5473 = vadd.f32 %v5472, -0.16666654
        %v5474 = vmul.f32 %v5469, %v5473
        %v5475 = vadd.f32 %v5474, 1.0
        %v5476 = vmul.f32 %v5475, %v5460
        %vm5477 = vweird.f32 %v682
        %v5478 = vadd.s32 %v5461, 3
        %v5479 = vand.u32 %v5478, 3
        %vm5480 = vcmp.lt.s32.totalorder %v5479, 2
        %vm5481 = vcmp.eq.s32.totalorder %v5479, 0
        %v5482 = vxor.u32 %v5476, 2147483648
        %v5483 = vsel %vm5481, %v5468, %v5482
        %vm5484 = vcmp.eq.s32.totalorder %v5479, 2
        %v5485 = vxor.u32 %v5468, 2147483648
        %v5486 = vsel %vm5484, %v5485, %v5476
        %v5487 = vsel %vm5480, %v5483, %v5486
        %v5488 = vsel %vm5477, nan, %v5487
        %v5489 = vand.u32 2147483647, %v683
        %vm5490 = vcmp.le.f32.partialorder %v5489, 0.7853982
        %vm5491 = vcmp.lt.s32.totalorder %v683, 0
        %v5492 = vand.u32 %v683, 2139095040
        %v5493 = vshrl.u32 %v5492, 23
        %v5494 = vsub.s32 %v5493, 127
        %v5495 = vand.u32 2147483647, %v683
        %v5496 = vand.u32 %v5495, 8388607
        %v5497 = vor.u32 %v5496, 8388608
        %v5498 = vsub.s32 0, %v5497
        %v5499 = vadd.s32 %v5494, 1
        %vm5500 = vcmp.gt.s32.totalorder %v5499, 0
        %v5501 = vsel %vm5500, %v5499, 0
        %v5502 = vshrl.u32 %v5501, 5
        %v5503 = vand.u32 %v5501, 31
        %v5504 = vsub.s32 32, %v5503
        %v5505 = vshrl.u32 683565275, %v5504
        %v5506 = vshll.u32 683565275, %v5503
        %v5507 = vshrl.u32 2475754826, %v5504
        %v5508 = vor.u32 %v5506, %v5507
        %v5509 = vshll.u32 2475754826, %v5503
        %v5510 = vshrl.u32 2131351028, %v5504
        %v5511 = vor.u32 %v5509, %v5510
        %v5512 = vshll.u32 2131351028, %v5503
        %v5513 = vshrl.u32 2102212464, %v5504
        %v5514 = vor.u32 %v5512, %v5513
        %v5515 = vshll.u32 2102212464, %v5503
        %v5516 = vshrl.u32 920167782, %v5504
        %v5517 = vor.u32 %v5515, %v5516
        %v5518 = vshll.u32 920167782, %v5503
        %v5519 = vshrl.u32 1326507024, %v5504
        %v5520 = vor.u32 %v5518, %v5519
        %vm5521 = vcmp.lt.s32.totalorder %v5502, 1
        %vm5522 = vcmp.lt.s32.totalorder %v5502, 2
        %vm5523 = vcmp.lt.s32.totalorder %v5502, 3
        %vm5524 = vcmp.lt.s32.totalorder %v5502, 4
        %v5525 = vsel %vm5521, %v5505, %v5508
        %v5526 = vsel %vm5524, %v5514, 2102212464
        %v5527 = vsel %vm5523, %v5511, %v5526
        %v5528 = vsel %vm5522, %v5525, %v5527
        %v5529 = vsel %vm5521, %v5508, %v5511
        %v5530 = vsel %vm5524, %v5517, 920167782
        %v5531 = vsel %vm5523, %v5514, %v5530
        %v5532 = vsel %vm5522, %v5529, %v5531
        %v5533 = vsel %vm5521, %v5511, %v5514
        %v5534 = vsel %vm5524, %v5520, 1326507024
        %v5535 = vsel %vm5523, %v5517, %v5534
        %v5536 = vsel %vm5522, %v5533, %v5535
        %v5537 = vshll.u32 %v5497, 8
        %v5538 = vand.u32 %v5537, 65535
        %v5539 = vshrl.u32 %v5537, 16
        %v5540 = vand.u32 %v5536, 65535
        %v5541 = vshrl.u32 %v5536, 16
        %v5542 = vmul.u32 %v5538, %v5540
        %v5543 = vmul.u32 %v5538, %v5541
        %v5544 = vmul.u32 %v5539, %v5540
        %v5545 = vmul.u32 %v5539, %v5541
        %v5546 = vshll.u32 %v5543, 16
        %v5547 = vshrl.u32 %v5543, 16
        %v5548 = vshll.u32 %v5544, 16
        %v5549 = vshrl.u32 %v5544, 16
        %vm5550 = vc.u32 %v5542, %v5546
        %v5551 = vsel %vm5550, 1, 0
        %v5552 = vadd.s32 %v5542, %v5546
        %v5553 = vadd.s32 %v5545, %v5551
        %vm5554 = vc.u32 %v5552, %v5548
        %v5555 = vsel %vm5554, 1, 0
        %v5556 = vadd.s32 %v5552, %v5548
        %v5557 = vadd.s32 %v5553, %v5555
        %v5558 = vadd.s32 %v5557, %v5547
        %v5559 = vadd.s32 %v5558, %v5549
        %v5560 = vand.u32 %v5537, 65535
        %v5561 = vshrl.u32 %v5537, 16
        %v5562 = vand.u32 %v5532, 65535
        %v5563 = vshrl.u32 %v5532, 16
        %v5564 = vmul.u32 %v5560, %v5562
        %v5565 = vmul.u32 %v5560, %v5563
        %v5566 = vmul.u32 %v5561, %v5562
        %v5567 = vmul.u32 %v5561, %v5563
        %v5568 = vshll.u32 %v5565, 16
        %v5569 = vshrl.u32 %v5565, 16
        %v5570 = vshll.u32 %v5566, 16
        %v5571 = vshrl.u32 %v5566, 16
        %vm5572 = vc.u32 %v5564, %v5568
        %v5573 = vsel %vm5572, 1, 0
        %v5574 = vadd.s32 %v5564, %v5568
        %v5575 = vadd.s32 %v5567, %v5573
        %vm5576 = vc.u32 %v5574, %v5570
        %v5577 = vsel %vm5576, 1, 0
        %v5578 = vadd.s32 %v5574, %v5570
        %v5579 = vadd.s32 %v5575, %v5577
        %v5580 = vadd.s32 %v5579, %v5569
        %v5581 = vadd.s32 %v5580, %v5571
        %v5582 = vmul.u32 %v5537, %v5528
        %v5583 = vadd.s32 %v5559, %v5578
        %vm5584 = vc.u32 %v5559, %v5578
        %v5585 = vadd.s32 %v5581, 1
        %v5586 = vsel %vm5584, %v5585, %v5581
        %v5587 = vadd.s32 %v5582, %v5586
        %v5588 = vadd.s32 %v5587, 536870912
        %v5589 = vshrl.u32 %v5588, 30
        %v5590 = vshll.u32 %v5589, 30
        %v5591 = vsub.s32 %v5587, %v5590
        %vm5592 = vcmp.lt.s32.totalorder %v5591, 0
        %v5593 = vsub.s32 0, %v5591
        %v5594 = vsel %vm5592, %v5593, %v5591
        %v5595 = vclz %v5594
        %v5596 = vsub.s32 %v5595, 2
        %vm5597 = vcmp.gt.s32.totalorder 0, %v5596
        %v5598 = vsel %vm5597, 0, %v5596
        %v5599 = vsub.s32 32, %v5598
        %v5600 = vshll.u32 %v5591, %v5598
        %v5601 = vshrl.u32 %v5583, %v5599
        %v5602 = vor.u32 %v5600, %v5601
        %v5603 = vsub.s32 4294967266, %v5598
        %v5604 = vadd.s32 %v5603, 127
        %v5605 = vshll.u32 %v5604, 23
        %v5606 = vor.u32 4788187, %v5605
        %v5607 = vand.u32 2147483647, %v5606
        %v5609 = vcvt.s32.f32 %v5602
        %v5610 = vmul.f32 %v5609, %v5607
        %v5611 = vxor.u32 %v5610, 2147483648
        %v5612 = vsel %vm5491, %v5611, %v5610
        %v5613 = vsub.s32 4, %v5589
        %v5614 = vsel %vm5491, %v5613, %v5589
        %v5615 = vsel %vm5490, %v683, %v5612
        %v5616 = vsel %vm5490, 0, %v5614
        %v5617 = vmul.f32 %v5615, %v5615
        %v5618 = vmul.f32 %v5617, -0.001358992
        %v5619 = vadd.f32 %v5618, 0.041655596
        %v5620 = vmul.f32 %v5617, %v5619
        %v5621 = vadd.f32 %v5620, -0.4999988
        %v5622 = vmul.f32 %v5617, %v5621
        %v5623 = vadd.f32 1.0, %v5622
        %v5624 = vmul.f32 %v5615, %v5615
        %v5625 = vmul.f32 %v5624, -0.00019511016
        %v5626 = vadd.f32 %v5625, 0.008332121
        %v5627 = vmul.f32 %v5624, %v5626
        %v5628 = vadd.f32 %v5627, -0.16666654
        %v5629 = vmul.f32 %v5624, %v5628
        %v5630 = vadd.f32 %v5629, 1.0
        %v5631 = vmul.f32 %v5630, %v5615
        %vm5632 = vweird.f32 %v683
        %v5633 = vadd.s32 %v5616, 3
        %v5634 = vand.u32 %v5633, 3
        %vm5635 = vcmp.lt.s32.totalorder %v5634, 2
        %vm5636 = vcmp.eq.s32.totalorder %v5634, 0
        %v5637 = vxor.u32 %v5631, 2147483648
        %v5638 = vsel %vm5636, %v5623, %v5637
        %vm5639 = vcmp.eq.s32.totalorder %v5634, 2
        %v5640 = vxor.u32 %v5623, 2147483648
        %v5641 = vsel %vm5639, %v5640, %v5631
        %v5642 = vsel %vm5635, %v5638, %v5641
        %v5643 = vsel %vm5632, nan, %v5642
        %5644 = vst [vmem:[%s244] sm:$0xff] %v838
        %5645 = vst [vmem:[%s244 + $0x8] sm:$0xff] %v993
        %5646 = vst [vmem:[%s244 + $0x10] sm:$0xff] %v1148
        %5647 = vst [vmem:[%s244 + $0x18] sm:$0xff] %v1303
        %5648 = vst [vmem:[%s244 + $0x20] sm:$0xff] %v1458
        %5649 = vst [vmem:[%s244 + $0x28] sm:$0xff] %v1613
        %5650 = vst [vmem:[%s244 + $0x30] sm:$0xff] %v1768
        %5651 = vst [vmem:[%s244 + $0x38] sm:$0xff] %v1923
        %5652 = vst [vmem:[%s244 + $0x40] sm:$0xff] %v2078
        %5653 = vst [vmem:[%s244 + $0x48] sm:$0xff] %v2233
        %5654 = vst [vmem:[%s244 + $0x50] sm:$0xff] %v2388
        %5655 = vst [vmem:[%s244 + $0x58] sm:$0xff] %v2543
        %5656 = vst [vmem:[%s244 + $0x60] sm:$0xff] %v2698
        %5657 = vst [vmem:[%s244 + $0x68] sm:$0xff] %v2853
        %5658 = vst [vmem:[%s244 + $0x70] sm:$0xff] %v3008
        %5659 = vst [vmem:[%s244 + $0x78] sm:$0xff] %v3163
        %5660 = vst [vmem:[%s244 + $0x80] sm:$0xff] %v3318
        %5661 = vst [vmem:[%s244 + $0x88] sm:$0xff] %v3473
        %5662 = vst [vmem:[%s244 + $0x90] sm:$0xff] %v3628
        %5663 = vst [vmem:[%s244 + $0x98] sm:$0xff] %v3783
        %5664 = vst [vmem:[%s244 + $0xa0] sm:$0xff] %v3938
        %5665 = vst [vmem:[%s244 + $0xa8] sm:$0xff] %v4093
        %5666 = vst [vmem:[%s244 + $0xb0] sm:$0xff] %v4248
        %5667 = vst [vmem:[%s244 + $0xb8] sm:$0xff] %v4403
        %5668 = vst [vmem:[%s244 + $0xc0] sm:$0xff] %v4558
        %5669 = vst [vmem:[%s244 + $0xc8] sm:$0xff] %v4713
        %5670 = vst [vmem:[%s244 + $0xd0] sm:$0xff] %v4868
        %5671 = vst [vmem:[%s244 + $0xd8] sm:$0xff] %v5023
        %5672 = vst [vmem:[%s244 + $0xe0] sm:$0xff] %v5178
        %5673 = vst [vmem:[%s244 + $0xe8] sm:$0xff] %v5333
        %5674 = vst [vmem:[%s244 + $0xf0] sm:$0xff] %v5488
        %5675 = vst [vmem:[%s244 + $0xf8] sm:$0xff] %v5643
        %s5676 = sand.u32 %s156, 1
        %s5677 = scalar_lea.sflag [#allocation3], %s5676
        %s5678 = sand.u32 %s156, 1
        %s5679 = smul.addr %s5678, 256
        %s5680 = scalar_lea.vmem [#allocation2], %s5679
        // Predicated region
        $region41: #{tpu_custom_call.1} parent=39 // pred_check
          %p5681 = pneg %p166
        $region42: #{tpu_custom_call.1} parent=39 // pred_check_branch
          %5683 = sbr.rel (%p5681) target = $region44
        $region43: #{tpu_custom_call.1} parent=39 // pred_region
          %s5684 = smul.u32 2, %s24
          %5686 = vsyncadd %s5677, 0
          %s5687 = smul.addr %s23, 32
          %s5688 = sadd.s32 %s5684, %s5687
          %s5689 = smul.addr %s5688, 8
          %s5690 = scalar_lea.hbm %s5, %s5689
          %s5691 = sshll.u32 %s5680, 4
          %s5692 = int_to_ptr.vmem [resolvable:$true] %s5691
          %s5693 = sshll.u32 %s5690, 4
          %s5694 = int_to_ptr.hbm [resolvable:$true] %s5693
          %5699 = dma.vmem_to_hbm [thread:$0]  %s5692, 4096, %s5694, %s5677, 256, 256, 16
        $region44: #{tpu_custom_call.1} parent=39 // pred_fallthru
          _
      $region40: #{tpu_custom_call.1} parent=5 // pred_fallthru
        _
      %p5700 = scmp.le.s32.totalorder 2, %s14
      // Predicated region
      $region45: #{tpu_custom_call.1} parent=5 // pred_check
        %p5701 = pneg %p5700
      $region46: #{tpu_custom_call.1} parent=5 // pred_check_branch
        %5703 = sbr.rel (%p5701) target = $region48
      $region47: #{tpu_custom_call.1} parent=5 // pred_region
        %s5704 = ssub.s32 %s14, 2
        // Predicated region
        $region49: #{tpu_custom_call.1} parent=47 // pred_check
          %p5705 = pneg %p172
        $region50: #{tpu_custom_call.1} parent=47 // pred_check_branch
          %5707 = sbr.rel (%p5705) target = $region52
        $region51: #{tpu_custom_call.1} parent=47 // pred_region
          %s5708 = sand.u32 %s157, 1
          %s5709 = scalar_lea.sflag [#allocation3], %s5708
          %s5710 = sand.u32 %s157, 1
          %s5711 = smul.addr %s5710, 256
          %s5712 = scalar_lea.vmem [#allocation2], %s5711
          %5714 = dma.done %s5709, 4096
        $region52: #{tpu_custom_call.1} parent=47 // pred_fallthru
          _
      $region48: #{tpu_custom_call.1} parent=5 // pred_fallthru
        _
    $region6: #{tpu_custom_call.1} parent=1 // loop_footer
      %s18 = sadd.s32 1, %s14
    $region7: #{tpu_custom_call.1} parent=1 // loop_footer_branch
      %13 = sbr.rel target = $region3
    $region8: #{tpu_custom_call.1} parent=1 // loop_exit
      _
    %5715 = vsyncpa [#allocation3], 1
    %s5716 = scalar_lea.sflag [#allocation3], 1
    %5717 = vsyncpa %s5716, 1

</llo_original>
